<compile_context>
chip_gen: v6e
topology: v6e:2x2x1
jax: 0.10.0
libtpu: 0.0.40
codegen_flags: <defaults>
</compile_context>

<pallas_src>
import functools
import math

import jax
import jax.numpy as jnp
from jax import lax
from jax.experimental import pallas as pl
from jax.experimental.pallas import tpu as pltpu

BN_EPS = 1e-5
_VMEM_LIMIT = 32 * 1024 * 1024


def _round_up(x, m):
    return (x + m - 1) // m * m


def _pick_tm(m):
    """Row-tile size for the GEMMs: large tiles (<=512) for DMA efficiency,
    >=2 tiles so both TensorCores (v7x) get work, exact divisors preferred so
    no M padding / output slicing is ever needed."""
    if m <= 8:
        return _round_up(m, 8)
    cap = min(512, max(8, _round_up(m // 2, 8)))
    for tm in range(cap, 7, -8):
        if m % tm == 0:
            return tm
    return cap  # rare: falls back to padded M


# ---------------------------------------------------------------------------
# Fused 1x1-conv GEMM + BN shift + (residual) + (ReLU) kernel
# ---------------------------------------------------------------------------

def _gemm_bn_kernel(*refs, has_residual, input_relu, out_relu, residual_relu):
    """out = maybe_relu( maybe_relu(x) @ w_scaled + shift [+ maybe_relu(res)] )."""
    if has_residual:
        x_ref, w_ref, shift_ref, res_ref, o_ref = refs
    else:
        x_ref, w_ref, shift_ref, o_ref = refs

    xb = x_ref[...]                         # bf16 (TM, K)
    if input_relu:                          # folded leading ReLU of the block
        xb = jnp.maximum(xb, 0)
    y = jnp.dot(xb, w_ref[...], preferred_element_type=jnp.float32)
    y = y + shift_ref[...]                  # f32 epilogue (v5e-safe)
    if has_residual:
        r = res_ref[...].astype(jnp.float32)
        if residual_relu:                   # identity residual = relu(x)
            r = jnp.maximum(r, 0.0)
        y = y + r
    if out_relu:
        y = jnp.maximum(y, 0.0)
    o_ref[...] = y.astype(o_ref.dtype)


def fused_gemm_bn(x, w, shift, *, residual=None, input_relu=False,
                  out_relu=False, residual_relu=False, out_dtype=jnp.float32):
    """(M,K)@(K,N): K and N are single full blocks (weights resident in VMEM
    for the whole call); only M is tiled and streamed.  bf16 MXU inputs,
    f32 accumulation and f32 epilogue."""
    M, K = x.shape
    K2, N = w.shape
    assert K == K2, (K, K2)

    TM = _pick_tm(M)
    Mp = _round_up(M, TM)

    x = x.astype(jnp.bfloat16)
    if Mp != M:
        x = jnp.pad(x, ((0, Mp - M), (0, 0)))

    operands = [x, w.astype(jnp.bfloat16),
                shift.astype(jnp.float32).reshape(1, N)]
    in_specs = [
        pl.BlockSpec((TM, K), lambda i: (i, 0)),   # activations stream over M
        pl.BlockSpec((K, N), lambda i: (0, 0)),    # weights: grid-invariant
        pl.BlockSpec((1, N), lambda i: (0, 0)),    # BN shift: grid-invariant
    ]
    has_residual = residual is not None
    if has_residual:
        r = residual.astype(jnp.bfloat16)          # bf16 residual stream
        if Mp != M:
            r = jnp.pad(r, ((0, Mp - M), (0, 0)))
        operands.append(r)
        in_specs.append(pl.BlockSpec((TM, N), lambda i: (i, 0)))

    kernel = functools.partial(
        _gemm_bn_kernel, has_residual=has_residual, input_relu=input_relu,
        out_relu=out_relu, residual_relu=residual_relu)

    out = pl.pallas_call(
        kernel,
        out_shape=jax.ShapeDtypeStruct((Mp, N), out_dtype),
        grid_spec=pltpu.PrefetchScalarGridSpec(
            num_scalar_prefetch=0,
            grid=(Mp // TM,),
            in_specs=in_specs,
            out_specs=pl.BlockSpec((TM, N), lambda i: (i, 0)),
        ),
        compiler_params=pltpu.CompilerParams(
            dimension_semantics=("parallel",),
            vmem_limit_bytes=_VMEM_LIMIT),
    )(*operands)
    if Mp != M:
        out = out[:M]
    return out


# ---------------------------------------------------------------------------
# Fused 3x3 conv + BN shift + ReLU kernel (im2col done in-kernel)
# ---------------------------------------------------------------------------

def _conv3x3_kernel(slab_ref, w_ref, shift_ref, o_ref, *, stride, ho, wo):
    """One image per grid step.  slab_ref is the zero-padded input
    (1, H+2, W+2, Cin) for stride 1, or its 2x2 phase decomposition
    (1, 2, 2, Ho+1, Wo+1, Cin) for stride 2.  The 9 (dy, dx) taps are plain
    MXU dots on static contiguous slices — no strided access in-kernel."""
    cout = w_ref.shape[-1]
    acc = jnp.zeros((ho * wo, cout), jnp.float32)
    for dy in range(3):
        for dx in range(3):
            if stride == 1:
                patch = slab_ref[0, dy:dy + ho, dx:dx + wo, :]
            else:
                patch = slab_ref[0, dy % 2, dx % 2,
                                 dy // 2:dy // 2 + ho,
                                 dx // 2:dx // 2 + wo, :]
            acc = acc + jnp.dot(patch.reshape(ho * wo, patch.shape[-1]),
                                w_ref[dy * 3 + dx],
                                preferred_element_type=jnp.float32)
    y = jnp.maximum(acc + shift_ref[...], 0.0)     # BN shift + ReLU, f32
    o_ref[0] = y.astype(o_ref.dtype)


def conv3x3_bn_fused(h1, w9, shift, *, stride, out_dtype=jnp.bfloat16):
    """3x3 Conv2d(pad=1, bias folded out) + BN(eval) + ReLU.
    h1: (B, H, W, Cin) bf16, w9: (9, Cin, Cout) bf16 (BN scale folded)."""
    B, H, W, Cin = h1.shape
    Cout = w9.shape[-1]

    if stride == 1:
        Ho, Wo = H, W
        slab = jnp.pad(h1, ((0, 0), (1, 1), (1, 1), (0, 0)))
        in_spec = pl.BlockSpec((1, H + 2, W + 2, Cin),
                               lambda b: (b, 0, 0, 0))
    else:
        assert stride == 2 and H % 2 == 0 and W % 2 == 0, (stride, H, W)
        Ho, Wo = H // 2, W // 2
        hph, wph = Ho + 1, Wo + 1
        # Single cheap pad + phase transpose (replaces the 9x im2col tensor):
        # phases[b, py, px, i, j] = padded[b, 2i+py, 2j+px]
        slab = jnp.pad(h1, ((0, 0), (1, 1), (1, 1), (0, 0)))
        slab = slab.reshape(B, hph, 2, wph, 2, Cin).transpose(0, 2, 4, 1, 3, 5)
        in_spec = pl.BlockSpec((1, 2, 2, hph, wph, Cin),
                               lambda b: (b, 0, 0, 0, 0, 0))

    kernel = functools.partial(_conv3x3_kernel, stride=stride, ho=Ho, wo=Wo)
    out = pl.pallas_call(
        kernel,
        out_shape=jax.ShapeDtypeStruct((B, Ho * Wo, Cout), out_dtype),
        grid_spec=pltpu.PrefetchScalarGridSpec(
            num_scalar_prefetch=0,
            grid=(B,),
            in_specs=[
                in_spec,
                pl.BlockSpec((9, Cin, Cout), lambda b: (0, 0, 0)),  # resident
                pl.BlockSpec((1, Cout), lambda b: (0, 0)),          # resident
            ],
            out_specs=pl.BlockSpec((1, Ho * Wo, Cout), lambda b: (b, 0, 0)),
        ),
        compiler_params=pltpu.CompilerParams(
            dimension_semantics=("parallel",),
            vmem_limit_bytes=_VMEM_LIMIT),
    )(slab, w9.astype(jnp.bfloat16), shift.astype(jnp.float32).reshape(1, Cout))
    return out.reshape(B, Ho, Wo, Cout)


# ---------------------------------------------------------------------------
# Parameter preparation (done ONCE, outside the per-forward path)
# ---------------------------------------------------------------------------

def _fold_bn(bn):
    gamma, beta, mean, var = bn
    scale = gamma / jnp.sqrt(var + BN_EPS)
    shift = beta - mean * scale
    return scale, shift


def prepare_bottleneck(params):
    """Fold eval-mode BN into the conv weights, repack the 3x3 weights as
    (9, Cin, Cout), and cast to bf16 — static inference constants."""
    prep = {}
    s1, b1 = _fold_bn(params["bn1"])
    prep["w1"] = (params["conv1"] * s1[None, :]).astype(jnp.bfloat16)
    prep["b1"] = b1.reshape(1, -1).astype(jnp.float32)

    s2, b2 = _fold_bn(params["bn2"])
    w2 = params["conv2"] * s2[None, None, None, :]          # (3,3,Ci,Co)
    prep["w2"] = w2.reshape(9, w2.shape[2], w2.shape[3]).astype(jnp.bfloat16)
    prep["b2"] = b2.reshape(1, -1).astype(jnp.float32)

    s3, b3 = _fold_bn(params["bn3"])
    prep["w3"] = (params["conv3"] * s3[None, :]).astype(jnp.bfloat16)
    prep["b3"] = b3.reshape(1, -1).astype(jnp.float32)

    if "down_w" in params:
        sd, bd = _fold_bn(params["down_bn"])
        prep["wd"] = (params["down_w"] * sd[None, :]).astype(jnp.bfloat16)
        prep["bd"] = bd.reshape(1, -1).astype(jnp.float32)
    return prep


# ---------------------------------------------------------------------------
# Bottleneck forward (matches the PyTorch module; with_ibn/with_se = False,
# BatchNorm in eval mode; NO ReLU after the residual add)
# ---------------------------------------------------------------------------

def bottleneck_forward(prep, x_nchw, stride):
    # NCHW -> NHWC and f32 -> bf16 exactly once; this x feeds conv1, the
    # downsample and the identity residual with no further casts/pads.
    x = jnp.transpose(x_nchw, (0, 2, 3, 1)).astype(jnp.bfloat16)
    B, H, W, Cin = x.shape
    xmat = x.reshape(B * H * W, Cin)
    planes = prep["w1"].shape[1]

    # conv1 + bn1 + relu; the block's leading `x = relu(x)` is input_relu.
    h1 = fused_gemm_bn(xmat, prep["w1"], prep["b1"], input_relu=True,
                       out_relu=True, out_dtype=jnp.bfloat16)
    h1 = h1.reshape(B, H, W, planes)

    # conv2 (3x3, stride) + bn2 + relu; patch extraction fused in-kernel.
    h2 = conv3x3_bn_fused(h1, prep["w2"], prep["b2"], stride=stride,
                          out_dtype=jnp.bfloat16)
    _, Ho, Wo, _ = h2.shape
    h2mat = h2.reshape(B * Ho * Wo, planes)

    if "wd" in prep:
        xs = x if stride == 1 else x[:, ::stride, ::stride, :]
        res = fused_gemm_bn(xs.reshape(B * Ho * Wo, Cin), prep["wd"],
                            prep["bd"], input_relu=True,
                            out_dtype=jnp.bfloat16)
        residual_relu = False
    else:
        res = xmat                        # relu(x) applied in conv3's epilogue
        residual_relu = True

    # conv3 + bn3 + residual add (se == Identity, no ReLU after the add).
    cout = prep["w3"].shape[1]
    out = fused_gemm_bn(h2mat, prep["w3"], prep["b3"], residual=res,
                        residual_relu=residual_relu, out_dtype=jnp.float32)
    out = out.reshape(B, Ho, Wo, cout)
    return jnp.transpose(out, (0, 3, 1, 2))                 # NHWC -> NCHW


bottleneck_forward_jit = jax.jit(bottleneck_forward, static_argnums=2)


# ---------------------------------------------------------------------------
# Parameters (deterministic; BN mildly random so the folded affine is used)
# ---------------------------------------------------------------------------

def _init_conv(key, kh, kw, cin, cout):
    n = kh * kw * cout
    return jax.random.normal(key, (kh, kw, cin, cout), jnp.float32) * math.sqrt(2.0 / n)


def _init_bn(key, c):
    kg, kb, km, kv = jax.random.split(key, 4)
    gamma = 1.0 + 0.1 * jax.random.normal(kg, (c,), jnp.float32)
    beta = 0.1 * jax.random.normal(kb, (c,), jnp.float32)
    mean = 0.1 * jax.random.normal(km, (c,), jnp.float32)
    var = 0.5 + jax.random.uniform(kv, (c,), jnp.float32)
    return gamma, beta, mean, var


def make_bottleneck_params(key, inplanes, planes, stride):
    expansion = 4
    keys = jax.random.split(key, 8)
    p = {
        "conv1": _init_conv(keys[0], 1, 1, inplanes, planes)[0, 0],   # (Cin,Cout)
        "bn1": _init_bn(keys[1], planes),
        "conv2": _init_conv(keys[2], 3, 3, planes, planes),
        "bn2": _init_bn(keys[3], planes),
        "conv3": _init_conv(keys[4], 1, 1, planes, planes * expansion)[0, 0],
        "bn3": _init_bn(keys[5], planes * expansion),
    }
    if stride != 1 or inplanes != planes * expansion:
        p["down_w"] = _init_conv(keys[6], 1, 1, inplanes, planes * expansion)[0, 0]
        p["down_bn"] = _init_bn(keys[7], planes * expansion)
    return p


# ---------------------------------------------------------------------------
# Pure-JAX f32 reference (sanity check for the bf16 Pallas path)
# ---------------------------------------------------------------------------

def _conv_ref(x, w, stride, padding):
    return lax.conv_general_dilated(
        x, w, window_strides=(stride, stride), padding=padding,
        dimension_numbers=("NHWC", "HWIO", "NHWC"))


def _bn_ref(y, bn):
    gamma, beta, mean, var = bn
    return (y - mean) / jnp.sqrt(var + BN_EPS) * gamma + beta


def bottleneck_ref(params, x_nchw, stride):
    x = jnp.transpose(x_nchw, (0, 2, 3, 1)).astype(jnp.float32)
    x = jax.nn.relu(x)
    residual = x
    out = jax.nn.relu(_bn_ref(_conv_ref(x, params["conv1"][None, None], 1, "VALID"),
                              params["bn1"]))
    out = jax.nn.relu(_bn_ref(_conv_ref(out, params["conv2"], stride,
                                        ((1, 1), (1, 1))), params["bn2"]))
    out = _bn_ref(_conv_ref(out, params["conv3"][None, None], 1, "VALID"),
                  params["bn3"])
    if "down_w" in params:
        residual = _bn_ref(_conv_ref(x, params["down_w"][None, None], stride,
                                     "VALID"), params["down_bn"])
    out = out + residual
    return jnp.transpose(out, (0, 3, 1, 2))


def _max_rel_err(a, b):
    return float(jnp.max(jnp.abs(a - b)) / (jnp.max(jnp.abs(b)) + 1e-6))


# ---------------------------------------------------------------------------

if __name__ == "__main__":
    key = jax.random.PRNGKey(0)
    kp1, kp2, kx1, kx2 = jax.random.split(key, 4)

    # Case 1: stride=2 with downsample (inplanes != planes*expansion).
    inplanes, planes, stride = 64, 32, 2
    p1 = make_bottleneck_params(kp1, inplanes, planes, stride)
    prep1 = prepare_bottleneck(p1)           # folded/cast weights, done once
    x1 = jax.random.normal(kx1, (2, inplanes, 16, 16), jnp.float32)
    out1 = bottleneck_forward_jit(prep1, x1, stride)
    jax.block_until_ready(out1)
    assert out1.shape == (2, planes * 4, 8, 8), out1.shape
    err1 = _max_rel_err(out1, bottleneck_ref(p1, x1, stride))
    assert err1 < 5e-2, f"case1 rel err {err1}"

    # Case 2: stride=1, identity residual (no downsample).
    inplanes, planes, stride = 128, 32, 1
    p2 = make_bottleneck_params(kp2, inplanes, planes, stride)
    prep2 = prepare_bottleneck(p2)
    x2 = jax.random.normal(kx2, (2, inplanes, 16, 16), jnp.float32)
    out2 = bottleneck_forward_jit(prep2, x2, stride)
    jax.block_until_ready(out2)
    assert out2.shape == (2, planes * 4, 16, 16), out2.shape
    err2 = _max_rel_err(out2, bottleneck_ref(p2, x2, stride))
    assert err2 < 5e-2, f"case2 rel err {err2}"

    print("KERNEL_OK")
</pallas_src>

<mosaic_0001>
module attributes {stable_mosaic.version = 11 : i64} {
  func.func @_gemm_bn_kernel(%arg0: i32, %arg1: memref<256x64xbf16, #tpu.memory_space<vmem>>, %arg2: memref<64x32xbf16, #tpu.memory_space<vmem>>, %arg3: memref<1x32xf32, #tpu.memory_space<vmem>>, %arg4: memref<256x32xbf16, #tpu.memory_space<vmem>>) attributes {dimension_semantics = [#tpu.dimension_semantics<parallel>], iteration_bounds = array<i64: 2>, scalar_prefetch = 0 : i64, scratch_operands = 0 : i64, tpu.core_type = #tpu.core_type<tc>, window_params = [{transform_indices = @transform_0, window_bounds = array<i64: 256, 64>}, {pipeline_mode = #tpu.pipeline_mode<synchronous>, transform_indices = @transform_1, window_bounds = array<i64: 64, 32>}, {pipeline_mode = #tpu.pipeline_mode<synchronous>, transform_indices = @transform_2, window_bounds = array<i64: 1, 32>}, {transform_indices = @transform_3, window_bounds = array<i64: 256, 32>}]} {
    %c0 = arith.constant 0 : index
    %c0_0 = arith.constant 0 : index
    %0 = vector.load %arg1[%c0, %c0_0] : memref<256x64xbf16, #tpu.memory_space<vmem>>, vector<256x64xbf16>
    %cst = arith.constant 0.000000e+00 : bf16
    %1 = vector.broadcast %cst : bf16 to vector<256x64xbf16>
    %2 = arith.maximumf %0, %1 : vector<256x64xbf16>
    %c0_1 = arith.constant 0 : index
    %c0_2 = arith.constant 0 : index
    %3 = vector.load %arg2[%c0_1, %c0_2] : memref<64x32xbf16, #tpu.memory_space<vmem>>, vector<64x32xbf16>
    %cst_3 = arith.constant dense<0.000000e+00> : vector<256x32xf32>
    %4 = tpu.matmul %2, %3, %cst_3 {dimension_numbers = #tpu.dot_dimension_numbers<[1], [0], [0], [1], [0, 0, 1, 1], [], []>} : vector<256x64xbf16>, vector<64x32xbf16>, vector<256x32xf32> -> vector<256x32xf32>
    %c0_4 = arith.constant 0 : index
    %c0_5 = arith.constant 0 : index
    %5 = vector.load %arg3[%c0_4, %c0_5] : memref<1x32xf32, #tpu.memory_space<vmem>>, vector<1x32xf32>
    %6 = vector.broadcast %5 : vector<1x32xf32> to vector<256x32xf32>
    %7 = arith.addf %4, %6 : vector<256x32xf32>
    %cst_6 = arith.constant 0.000000e+00 : f32
    %8 = vector.broadcast %cst_6 : f32 to vector<256x32xf32>
    %9 = arith.maximumf %7, %8 : vector<256x32xf32>
    %10 = arith.truncf %9 : vector<256x32xf32> to vector<256x32xbf16>
    %c0_7 = arith.constant 0 : index
    %c0_8 = arith.constant 0 : index
    %11 = vector.load %arg4[%c0_7, %c0_8] : memref<256x32xbf16, #tpu.memory_space<vmem>>, vector<256x32xbf16>
    tpu.vector_store %arg4[%c0_7, %c0_8], %10 {strides = array<i32>} : memref<256x32xbf16, #tpu.memory_space<vmem>>, vector<256x32xbf16>,
    return
  }
  func.func @transform_0(%arg0: i32) -> (i32, i32) {
    %c0_i32 = arith.constant 0 : i32
    %c0_i32_0 = arith.constant 0 : i32
    return %arg0, %c0_i32 : i32, i32
  }
  func.func @transform_1(%arg0: i32) -> (i32, i32) {
    %c0_i32 = arith.constant 0 : i32
    %c0_i32_0 = arith.constant 0 : i32
    %c0_i32_1 = arith.constant 0 : i32
    return %c0_i32, %c0_i32_0 : i32, i32
  }
  func.func @transform_2(%arg0: i32) -> (i32, i32) {
    %c0_i32 = arith.constant 0 : i32
    %c0_i32_0 = arith.constant 0 : i32
    %c0_i32_1 = arith.constant 0 : i32
    return %c0_i32, %c0_i32_0 : i32, i32
  }
  func.func @transform_3(%arg0: i32) -> (i32, i32) {
    %c0_i32 = arith.constant 0 : i32
    %c0_i32_0 = arith.constant 0 : i32
    return %arg0, %c0_i32 : i32, i32
  }
}

module attributes {stable_mosaic.version = 11 : i64} {
  func.func @_conv3x3_kernel(%arg0: i32, %arg1: memref<1x2x2x9x9x32xbf16, #tpu.memory_space<vmem>>, %arg2: memref<9x32x32xbf16, #tpu.memory_space<vmem>>, %arg3: memref<1x32xf32, #tpu.memory_space<vmem>>, %arg4: memref<1x64x32xbf16, #tpu.memory_space<vmem>>) attributes {dimension_semantics = [#tpu.dimension_semantics<parallel>], iteration_bounds = array<i64: 2>, scalar_prefetch = 0 : i64, scratch_operands = 0 : i64, tpu.core_type = #tpu.core_type<tc>, window_params = [{transform_indices = @transform_0, window_bounds = array<i64: 1, 2, 2, 9, 9, 32>}, {pipeline_mode = #tpu.pipeline_mode<synchronous>, transform_indices = @transform_1, window_bounds = array<i64: 9, 32, 32>}, {pipeline_mode = #tpu.pipeline_mode<synchronous>, transform_indices = @transform_2, window_bounds = array<i64: 1, 32>}, {transform_indices = @transform_3, window_bounds = array<i64: 1, 64, 32>}]} {
    %cst = arith.constant 0.000000e+00 : f32
    %0 = vector.broadcast %cst : f32 to vector<64x32xf32>
    %c0 = arith.constant 0 : index
    %c0_0 = arith.constant 0 : index
    %c0_1 = arith.constant 0 : index
    %c0_2 = arith.constant 0 : index
    %c0_3 = arith.constant 0 : index
    %c0_4 = arith.constant 0 : index
    %1 = vector.load %arg1[%c0, %c0_0, %c0_1, %c0_2, %c0_3, %c0_4] : memref<1x2x2x9x9x32xbf16, #tpu.memory_space<vmem>>, vector<1x1x1x8x8x32xbf16>
    %2 = vector.shape_cast %1 : vector<1x1x1x8x8x32xbf16> to vector<8x8x32xbf16>
    %3 = vector.shape_cast %2 : vector<8x8x32xbf16> to vector<64x32xbf16>
    %c0_5 = arith.constant 0 : index
    %c0_6 = arith.constant 0 : index
    %c0_7 = arith.constant 0 : index
    %4 = vector.load %arg2[%c0_5, %c0_6, %c0_7] : memref<9x32x32xbf16, #tpu.memory_space<vmem>>, vector<1x32x32xbf16>
    %5 = vector.shape_cast %4 : vector<1x32x32xbf16> to vector<32x32xbf16>
    %cst_8 = arith.constant dense<0.000000e+00> : vector<64x32xf32>
    %6 = tpu.matmul %3, %5, %cst_8 {dimension_numbers = #tpu.dot_dimension_numbers<[1], [0], [0], [1], [0, 0, 1, 1], [], []>} : vector<64x32xbf16>, vector<32x32xbf16>, vector<64x32xf32> -> vector<64x32xf32>
    %7 = arith.addf %0, %6 : vector<64x32xf32>
    %c0_9 = arith.constant 0 : index
    %c0_10 = arith.constant 0 : index
    %c1 = arith.constant 1 : index
    %c0_11 = arith.constant 0 : index
    %c0_12 = arith.constant 0 : index
    %c0_13 = arith.constant 0 : index
    %8 = vector.load %arg1[%c0_9, %c0_10, %c1, %c0_11, %c0_12, %c0_13] : memref<1x2x2x9x9x32xbf16, #tpu.memory_space<vmem>>, vector<1x1x1x8x8x32xbf16>
    %9 = vector.shape_cast %8 : vector<1x1x1x8x8x32xbf16> to vector<8x8x32xbf16>
    %10 = vector.shape_cast %9 : vector<8x8x32xbf16> to vector<64x32xbf16>
    %c1_14 = arith.constant 1 : index
    %c0_15 = arith.constant 0 : index
    %c0_16 = arith.constant 0 : index
    %11 = vector.load %arg2[%c1_14, %c0_15, %c0_16] : memref<9x32x32xbf16, #tpu.memory_space<vmem>>, vector<1x32x32xbf16>
    %12 = vector.shape_cast %11 : vector<1x32x32xbf16> to vector<32x32xbf16>
    %cst_17 = arith.constant dense<0.000000e+00> : vector<64x32xf32>
    %13 = tpu.matmul %10, %12, %cst_17 {dimension_numbers = #tpu.dot_dimension_numbers<[1], [0], [0], [1], [0, 0, 1, 1], [], []>} : vector<64x32xbf16>, vector<32x32xbf16>, vector<64x32xf32> -> vector<64x32xf32>
    %14 = arith.addf %7, %13 : vector<64x32xf32>
    %c0_18 = arith.constant 0 : index
    %c0_19 = arith.constant 0 : index
    %c0_20 = arith.constant 0 : index
    %c0_21 = arith.constant 0 : index
    %c1_22 = arith.constant 1 : index
    %c0_23 = arith.constant 0 : index
    %15 = vector.load %arg1[%c0_18, %c0_19, %c0_20, %c0_21, %c1_22, %c0_23] : memref<1x2x2x9x9x32xbf16, #tpu.memory_space<vmem>>, vector<1x1x1x8x8x32xbf16>
    %16 = vector.shape_cast %15 : vector<1x1x1x8x8x32xbf16> to vector<8x8x32xbf16>
    %17 = vector.shape_cast %16 : vector<8x8x32xbf16> to vector<64x32xbf16>
    %c2 = arith.constant 2 : index
    %c0_24 = arith.constant 0 : index
    %c0_25 = arith.constant 0 : index
    %18 = vector.load %arg2[%c2, %c0_24, %c0_25] : memref<9x32x32xbf16, #tpu.memory_space<vmem>>, vector<1x32x32xbf16>
    %19 = vector.shape_cast %18 : vector<1x32x32xbf16> to vector<32x32xbf16>
    %cst_26 = arith.constant dense<0.000000e+00> : vector<64x32xf32>
    %20 = tpu.matmul %17, %19, %cst_26 {dimension_numbers = #tpu.dot_dimension_numbers<[1], [0], [0], [1], [0, 0, 1, 1], [], []>} : vector<64x32xbf16>, vector<32x32xbf16>, vector<64x32xf32> -> vector<64x32xf32>
    %21 = arith.addf %14, %20 : vector<64x32xf32>
    %c0_27 = arith.constant 0 : index
    %c1_28 = arith.constant 1 : index
    %c0_29 = arith.constant 0 : index
    %c0_30 = arith.constant 0 : index
    %c0_31 = arith.constant 0 : index
    %c0_32 = arith.constant 0 : index
    %22 = vector.load %arg1[%c0_27, %c1_28, %c0_29, %c0_30, %c0_31, %c0_32] : memref<1x2x2x9x9x32xbf16, #tpu.memory_space<vmem>>, vector<1x1x1x8x8x32xbf16>
    %23 = vector.shape_cast %22 : vector<1x1x1x8x8x32xbf16> to vector<8x8x32xbf16>
    %24 = vector.shape_cast %23 : vector<8x8x32xbf16> to vector<64x32xbf16>
    %c3 = arith.constant 3 : index
    %c0_33 = arith.constant 0 : index
    %c0_34 = arith.constant 0 : index
    %25 = vector.load %arg2[%c3, %c0_33, %c0_34] : memref<9x32x32xbf16, #tpu.memory_space<vmem>>, vector<1x32x32xbf16>
    %26 = vector.shape_cast %25 : vector<1x32x32xbf16> to vector<32x32xbf16>
    %cst_35 = arith.constant dense<0.000000e+00> : vector<64x32xf32>
    %27 = tpu.matmul %24, %26, %cst_35 {dimension_numbers = #tpu.dot_dimension_numbers<[1], [0], [0], [1], [0, 0, 1, 1], [], []>} : vector<64x32xbf16>, vector<32x32xbf16>, vector<64x32xf32> -> vector<64x32xf32>
    %28 = arith.addf %21, %27 : vector<64x32xf32>
    %c0_36 = arith.constant 0 : index
    %c1_37 = arith.constant 1 : index
    %c1_38 = arith.constant 1 : index
    %c0_39 = arith.constant 0 : index
    %c0_40 = arith.constant 0 : index
    %c0_41 = arith.constant 0 : index
    %29 = vector.load %arg1[%c0_36, %c1_37, %c1_38, %c0_39, %c0_40, %c0_41] : memref<1x2x2x9x9x32xbf16, #tpu.memory_space<vmem>>, vector<1x1x1x8x8x32xbf16>
    %30 = vector.shape_cast %29 : vector<1x1x1x8x8x32xbf16> to vector<8x8x32xbf16>
    %31 = vector.shape_cast %30 : vector<8x8x32xbf16> to vector<64x32xbf16>
    %c4 = arith.constant 4 : index
    %c0_42 = arith.constant 0 : index
    %c0_43 = arith.constant 0 : index
    %32 = vector.load %arg2[%c4, %c0_42, %c0_43] : memref<9x32x32xbf16, #tpu.memory_space<vmem>>, vector<1x32x32xbf16>
    %33 = vector.shape_cast %32 : vector<1x32x32xbf16> to vector<32x32xbf16>
    %cst_44 = arith.constant dense<0.000000e+00> : vector<64x32xf32>
    %34 = tpu.matmul %31, %33, %cst_44 {dimension_numbers = #tpu.dot_dimension_numbers<[1], [0], [0], [1], [0, 0, 1, 1], [], []>} : vector<64x32xbf16>, vector<32x32xbf16>, vector<64x32xf32> -> vector<64x32xf32>
    %35 = arith.addf %28, %34 : vector<64x32xf32>
    %c0_45 = arith.constant 0 : index
    %c1_46 = arith.constant 1 : index
    %c0_47 = arith.constant 0 : index
    %c0_48 = arith.constant 0 : index
    %c1_49 = arith.constant 1 : index
    %c0_50 = arith.constant 0 : index
    %36 = vector.load %arg1[%c0_45, %c1_46, %c0_47, %c0_48, %c1_49, %c0_50] : memref<1x2x2x9x9x32xbf16, #tpu.memory_space<vmem>>, vector<1x1x1x8x8x32xbf16>
    %37 = vector.shape_cast %36 : vector<1x1x1x8x8x32xbf16> to vector<8x8x32xbf16>
    %38 = vector.shape_cast %37 : vector<8x8x32xbf16> to vector<64x32xbf16>
    %c5 = arith.constant 5 : index
    %c0_51 = arith.constant 0 : index
    %c0_52 = arith.constant 0 : index
    %39 = vector.load %arg2[%c5, %c0_51, %c0_52] : memref<9x32x32xbf16, #tpu.memory_space<vmem>>, vector<1x32x32xbf16>
    %40 = vector.shape_cast %39 : vector<1x32x32xbf16> to vector<32x32xbf16>
    %cst_53 = arith.constant dense<0.000000e+00> : vector<64x32xf32>
    %41 = tpu.matmul %38, %40, %cst_53 {dimension_numbers = #tpu.dot_dimension_numbers<[1], [0], [0], [1], [0, 0, 1, 1], [], []>} : vector<64x32xbf16>, vector<32x32xbf16>, vector<64x32xf32> -> vector<64x32xf32>
    %42 = arith.addf %35, %41 : vector<64x32xf32>
    %c0_54 = arith.constant 0 : index
    %c0_55 = arith.constant 0 : index
    %c0_56 = arith.constant 0 : index
    %c1_57 = arith.constant 1 : index
    %c0_58 = arith.constant 0 : index
    %c0_59 = arith.constant 0 : index
    %43 = vector.load %arg1[%c0_54, %c0_55, %c0_56, %c1_57, %c0_58, %c0_59] : memref<1x2x2x9x9x32xbf16, #tpu.memory_space<vmem>>, vector<1x1x1x8x8x32xbf16>
    %44 = vector.shape_cast %43 : vector<1x1x1x8x8x32xbf16> to vector<8x8x32xbf16>
    %45 = vector.shape_cast %44 : vector<8x8x32xbf16> to vector<64x32xbf16>
    %c6 = arith.constant 6 : index
    %c0_60 = arith.constant 0 : index
    %c0_61 = arith.constant 0 : index
    %46 = vector.load %arg2[%c6, %c0_60, %c0_61] : memref<9x32x32xbf16, #tpu.memory_space<vmem>>, vector<1x32x32xbf16>
    %47 = vector.shape_cast %46 : vector<1x32x32xbf16> to vector<32x32xbf16>
    %cst_62 = arith.constant dense<0.000000e+00> : vector<64x32xf32>
    %48 = tpu.matmul %45, %47, %cst_62 {dimension_numbers = #tpu.dot_dimension_numbers<[1], [0], [0], [1], [0, 0, 1, 1], [], []>} : vector<64x32xbf16>, vector<32x32xbf16>, vector<64x32xf32> -> vector<64x32xf32>
    %49 = arith.addf %42, %48 : vector<64x32xf32>
    %c0_63 = arith.constant 0 : index
    %c0_64 = arith.constant 0 : index
    %c1_65 = arith.constant 1 : index
    %c1_66 = arith.constant 1 : index
    %c0_67 = arith.constant 0 : index
    %c0_68 = arith.constant 0 : index
    %50 = vector.load %arg1[%c0_63, %c0_64, %c1_65, %c1_66, %c0_67, %c0_68] : memref<1x2x2x9x9x32xbf16, #tpu.memory_space<vmem>>, vector<1x1x1x8x8x32xbf16>
    %51 = vector.shape_cast %50 : vector<1x1x1x8x8x32xbf16> to vector<8x8x32xbf16>
    %52 = vector.shape_cast %51 : vector<8x8x32xbf16> to vector<64x32xbf16>
    %c7 = arith.constant 7 : index
    %c0_69 = arith.constant 0 : index
    %c0_70 = arith.constant 0 : index
    %53 = vector.load %arg2[%c7, %c0_69, %c0_70] : memref<9x32x32xbf16, #tpu.memory_space<vmem>>, vector<1x32x32xbf16>
    %54 = vector.shape_cast %53 : vector<1x32x32xbf16> to vector<32x32xbf16>
    %cst_71 = arith.constant dense<0.000000e+00> : vector<64x32xf32>
    %55 = tpu.matmul %52, %54, %cst_71 {dimension_numbers = #tpu.dot_dimension_numbers<[1], [0], [0], [1], [0, 0, 1, 1], [], []>} : vector<64x32xbf16>, vector<32x32xbf16>, vector<64x32xf32> -> vector<64x32xf32>
    %56 = arith.addf %49, %55 : vector<64x32xf32>
    %c0_72 = arith.constant 0 : index
    %c0_73 = arith.constant 0 : index
    %c0_74 = arith.constant 0 : index
    %c1_75 = arith.constant 1 : index
    %c1_76 = arith.constant 1 : index
    %c0_77 = arith.constant 0 : index
    %57 = vector.load %arg1[%c0_72, %c0_73, %c0_74, %c1_75, %c1_76, %c0_77] : memref<1x2x2x9x9x32xbf16, #tpu.memory_space<vmem>>, vector<1x1x1x8x8x32xbf16>
    %58 = vector.shape_cast %57 : vector<1x1x1x8x8x32xbf16> to vector<8x8x32xbf16>
    %59 = vector.shape_cast %58 : vector<8x8x32xbf16> to vector<64x32xbf16>
    %c8 = arith.constant 8 : index
    %c0_78 = arith.constant 0 : index
    %c0_79 = arith.constant 0 : index
    %60 = vector.load %arg2[%c8, %c0_78, %c0_79] : memref<9x32x32xbf16, #tpu.memory_space<vmem>>, vector<1x32x32xbf16>
    %61 = vector.shape_cast %60 : vector<1x32x32xbf16> to vector<32x32xbf16>
    %cst_80 = arith.constant dense<0.000000e+00> : vector<64x32xf32>
    %62 = tpu.matmul %59, %61, %cst_80 {dimension_numbers = #tpu.dot_dimension_numbers<[1], [0], [0], [1], [0, 0, 1, 1], [], []>} : vector<64x32xbf16>, vector<32x32xbf16>, vector<64x32xf32> -> vector<64x32xf32>
    %63 = arith.addf %56, %62 : vector<64x32xf32>
    %c0_81 = arith.constant 0 : index
    %c0_82 = arith.constant 0 : index
    %64 = vector.load %arg3[%c0_81, %c0_82] : memref<1x32xf32, #tpu.memory_space<vmem>>, vector<1x32xf32>
    %65 = vector.broadcast %64 : vector<1x32xf32> to vector<64x32xf32>
    %66 = arith.addf %63, %65 : vector<64x32xf32>
    %cst_83 = arith.constant 0.000000e+00 : f32
    %67 = vector.broadcast %cst_83 : f32 to vector<64x32xf32>
    %68 = arith.maximumf %66, %67 : vector<64x32xf32>
    %69 = arith.truncf %68 : vector<64x32xf32> to vector<64x32xbf16>
    %c0_84 = arith.constant 0 : index
    %c0_85 = arith.constant 0 : index
    %c0_86 = arith.constant 0 : index
    %70 = vector.load %arg4[%c0_84, %c0_85, %c0_86] : memref<1x64x32xbf16, #tpu.memory_space<vmem>>, vector<1x64x32xbf16>
    %71 = vector.shape_cast %70 : vector<1x64x32xbf16> to vector<64x32xbf16>
    %72 = vector.shape_cast %69 : vector<64x32xbf16> to vector<1x64x32xbf16>
    tpu.vector_store %arg4[%c0_84, %c0_85, %c0_86], %72 {strides = array<i32>} : memref<1x64x32xbf16, #tpu.memory_space<vmem>>, vector<1x64x32xbf16>,
    return
  }
  func.func @transform_0(%arg0: i32) -> (i32, i32, i32, i32, i32, i32) {
    %c0_i32 = arith.constant 0 : i32
    %c0_i32_0 = arith.constant 0 : i32
    %c0_i32_1 = arith.constant 0 : i32
    %c0_i32_2 = arith.constant 0 : i32
    %c0_i32_3 = arith.constant 0 : i32
    %c0_i32_4 = arith.constant 0 : i32
    return %arg0, %c0_i32, %c0_i32_0, %c0_i32_1, %c0_i32_2, %c0_i32_3 : i32, i32, i32, i32, i32, i32
  }
  func.func @transform_1(%arg0: i32) -> (i32, i32, i32) {
    %c0_i32 = arith.constant 0 : i32
    %c0_i32_0 = arith.constant 0 : i32
    %c0_i32_1 = arith.constant 0 : i32
    %c0_i32_2 = arith.constant 0 : i32
    return %c0_i32, %c0_i32_0, %c0_i32_1 : i32, i32, i32
  }
  func.func @transform_2(%arg0: i32) -> (i32, i32) {
    %c0_i32 = arith.constant 0 : i32
    %c0_i32_0 = arith.constant 0 : i32
    %c0_i32_1 = arith.constant 0 : i32
    return %c0_i32, %c0_i32_0 : i32, i32
  }
  func.func @transform_3(%arg0: i32) -> (i32, i32, i32) {
    %c0_i32 = arith.constant 0 : i32
    %c0_i32_0 = arith.constant 0 : i32
    %c0_i32_1 = arith.constant 0 : i32
    return %arg0, %c0_i32, %c0_i32_0 : i32, i32, i32
  }
}

module attributes {stable_mosaic.version = 11 : i64} {
  func.func @_gemm_bn_kernel(%arg0: i32, %arg1: memref<64x64xbf16, #tpu.memory_space<vmem>>, %arg2: memref<64x128xbf16, #tpu.memory_space<vmem>>, %arg3: memref<1x128xf32, #tpu.memory_space<vmem>>, %arg4: memref<64x128xbf16, #tpu.memory_space<vmem>>) attributes {dimension_semantics = [#tpu.dimension_semantics<parallel>], iteration_bounds = array<i64: 2>, scalar_prefetch = 0 : i64, scratch_operands = 0 : i64, tpu.core_type = #tpu.core_type<tc>, window_params = [{transform_indices = @transform_0, window_bounds = array<i64: 64, 64>}, {pipeline_mode = #tpu.pipeline_mode<synchronous>, transform_indices = @transform_1, window_bounds = array<i64: 64, 128>}, {pipeline_mode = #tpu.pipeline_mode<synchronous>, transform_indices = @transform_2, window_bounds = array<i64: 1, 128>}, {transform_indices = @transform_3, window_bounds = array<i64: 64, 128>}]} {
    %c0 = arith.constant 0 : index
    %c0_0 = arith.constant 0 : index
    %0 = vector.load %arg1[%c0, %c0_0] : memref<64x64xbf16, #tpu.memory_space<vmem>>, vector<64x64xbf16>
    %cst = arith.constant 0.000000e+00 : bf16
    %1 = vector.broadcast %cst : bf16 to vector<64x64xbf16>
    %2 = arith.maximumf %0, %1 : vector<64x64xbf16>
    %c0_1 = arith.constant 0 : index
    %c0_2 = arith.constant 0 : index
    %3 = vector.load %arg2[%c0_1, %c0_2] : memref<64x128xbf16, #tpu.memory_space<vmem>>, vector<64x128xbf16>
    %cst_3 = arith.constant dense<0.000000e+00> : vector<64x128xf32>
    %4 = tpu.matmul %2, %3, %cst_3 {dimension_numbers = #tpu.dot_dimension_numbers<[1], [0], [0], [1], [0, 0, 1, 1], [], []>} : vector<64x64xbf16>, vector<64x128xbf16>, vector<64x128xf32> -> vector<64x128xf32>
    %c0_4 = arith.constant 0 : index
    %c0_5 = arith.constant 0 : index
    %5 = vector.load %arg3[%c0_4, %c0_5] : memref<1x128xf32, #tpu.memory_space<vmem>>, vector<1x128xf32>
    %6 = vector.broadcast %5 : vector<1x128xf32> to vector<64x128xf32>
    %7 = arith.addf %4, %6 : vector<64x128xf32>
    %8 = arith.truncf %7 : vector<64x128xf32> to vector<64x128xbf16>
    %c0_6 = arith.constant 0 : index
    %c0_7 = arith.constant 0 : index
    %9 = vector.load %arg4[%c0_6, %c0_7] : memref<64x128xbf16, #tpu.memory_space<vmem>>, vector<64x128xbf16>
    tpu.vector_store %arg4[%c0_6, %c0_7], %8 {strides = array<i32>} : memref<64x128xbf16, #tpu.memory_space<vmem>>, vector<64x128xbf16>,
    return
  }
  func.func @transform_0(%arg0: i32) -> (i32, i32) {
    %c0_i32 = arith.constant 0 : i32
    %c0_i32_0 = arith.constant 0 : i32
    return %arg0, %c0_i32 : i32, i32
  }
  func.func @transform_1(%arg0: i32) -> (i32, i32) {
    %c0_i32 = arith.constant 0 : i32
    %c0_i32_0 = arith.constant 0 : i32
    %c0_i32_1 = arith.constant 0 : i32
    return %c0_i32, %c0_i32_0 : i32, i32
  }
  func.func @transform_2(%arg0: i32) -> (i32, i32) {
    %c0_i32 = arith.constant 0 : i32
    %c0_i32_0 = arith.constant 0 : i32
    %c0_i32_1 = arith.constant 0 : i32
    return %c0_i32, %c0_i32_0 : i32, i32
  }
  func.func @transform_3(%arg0: i32) -> (i32, i32) {
    %c0_i32 = arith.constant 0 : i32
    %c0_i32_0 = arith.constant 0 : i32
    return %arg0, %c0_i32 : i32, i32
  }
}

module attributes {stable_mosaic.version = 11 : i64} {
  func.func @_gemm_bn_kernel(%arg0: i32, %arg1: memref<64x32xbf16, #tpu.memory_space<vmem>>, %arg2: memref<32x128xbf16, #tpu.memory_space<vmem>>, %arg3: memref<1x128xf32, #tpu.memory_space<vmem>>, %arg4: memref<64x128xbf16, #tpu.memory_space<vmem>>, %arg5: memref<64x128xf32, #tpu.memory_space<vmem>>) attributes {dimension_semantics = [#tpu.dimension_semantics<parallel>], iteration_bounds = array<i64: 2>, scalar_prefetch = 0 : i64, scratch_operands = 0 : i64, tpu.core_type = #tpu.core_type<tc>, window_params = [{transform_indices = @transform_0, window_bounds = array<i64: 64, 32>}, {pipeline_mode = #tpu.pipeline_mode<synchronous>, transform_indices = @transform_1, window_bounds = array<i64: 32, 128>}, {pipeline_mode = #tpu.pipeline_mode<synchronous>, transform_indices = @transform_2, window_bounds = array<i64: 1, 128>}, {transform_indices = @transform_3, window_bounds = array<i64: 64, 128>}, {transform_indices = @transform_4, window_bounds = array<i64: 64, 128>}]} {
    %c0 = arith.constant 0 : index
    %c0_0 = arith.constant 0 : index
    %0 = vector.load %arg1[%c0, %c0_0] : memref<64x32xbf16, #tpu.memory_space<vmem>>, vector<64x32xbf16>
    %c0_1 = arith.constant 0 : index
    %c0_2 = arith.constant 0 : index
    %1 = vector.load %arg2[%c0_1, %c0_2] : memref<32x128xbf16, #tpu.memory_space<vmem>>, vector<32x128xbf16>
    %cst = arith.constant dense<0.000000e+00> : vector<64x128xf32>
    %2 = tpu.matmul %0, %1, %cst {dimension_numbers = #tpu.dot_dimension_numbers<[1], [0], [0], [1], [0, 0, 1, 1], [], []>} : vector<64x32xbf16>, vector<32x128xbf16>, vector<64x128xf32> -> vector<64x128xf32>
    %c0_3 = arith.constant 0 : index
    %c0_4 = arith.constant 0 : index
    %3 = vector.load %arg3[%c0_3, %c0_4] : memref<1x128xf32, #tpu.memory_space<vmem>>, vector<1x128xf32>
    %4 = vector.broadcast %3 : vector<1x128xf32> to vector<64x128xf32>
    %5 = arith.addf %2, %4 : vector<64x128xf32>
    %c0_5 = arith.constant 0 : index
    %c0_6 = arith.constant 0 : index
    %6 = vector.load %arg4[%c0_5, %c0_6] : memref<64x128xbf16, #tpu.memory_space<vmem>>, vector<64x128xbf16>
    %7 = arith.extf %6 : vector<64x128xbf16> to vector<64x128xf32>
    %8 = arith.addf %5, %7 : vector<64x128xf32>
    %c0_7 = arith.constant 0 : index
    %c0_8 = arith.constant 0 : index
    %9 = vector.load %arg5[%c0_7, %c0_8] : memref<64x128xf32, #tpu.memory_space<vmem>>, vector<64x128xf32>
    tpu.vector_store %arg5[%c0_7, %c0_8], %8 {strides = array<i32>} : memref<64x128xf32, #tpu.memory_space<vmem>>, vector<64x128xf32>,
    return
  }
  func.func @transform_0(%arg0: i32) -> (i32, i32) {
    %c0_i32 = arith.constant 0 : i32
    %c0_i32_0 = arith.constant 0 : i32
    return %arg0, %c0_i32 : i32, i32
  }
  func.func @transform_1(%arg0: i32) -> (i32, i32) {
    %c0_i32 = arith.constant 0 : i32
    %c0_i32_0 = arith.constant 0 : i32
    %c0_i32_1 = arith.constant 0 : i32
    return %c0_i32, %c0_i32_0 : i32, i32
  }
  func.func @transform_2(%arg0: i32) -> (i32, i32) {
    %c0_i32 = arith.constant 0 : i32
    %c0_i32_0 = arith.constant 0 : i32
    %c0_i32_1 = arith.constant 0 : i32
    return %c0_i32, %c0_i32_0 : i32, i32
  }
  func.func @transform_3(%arg0: i32) -> (i32, i32) {
    %c0_i32 = arith.constant 0 : i32
    %c0_i32_0 = arith.constant 0 : i32
    return %arg0, %c0_i32 : i32, i32
  }
  func.func @transform_4(%arg0: i32) -> (i32, i32) {
    %c0_i32 = arith.constant 0 : i32
    %c0_i32_0 = arith.constant 0 : i32
    return %arg0, %c0_i32 : i32, i32
  }
}

</mosaic_0001>

<llo_original>
// kernel: bottleneck_forward.4
$region0: #{bottleneck_forward.4}
  #allocation0 [shape = 'u32[]', space=smem, size = 0x4, offset = 0x4, fixed_abs, tag = 'smem constant byte address 0x4 - core index']
  #allocation1 [shape = 'u32[144,128]{1,0:T(1,128)}', space=vmem, size = 0x12000, scoped, tag = 'internal scratch']
  %s0 = inlined_call_operand.vmem [shape: bf16[512,64], index: 0, kind: input, shape index: {}]
  %s1 = inlined_call_operand.vmem [shape: bf16[64,32], index: 1, kind: input, shape index: {}]
  %s2 = inlined_call_operand.vmem [shape: f32[1,32], index: 2, kind: input, shape index: {}]
  %s3 = inlined_call_operand.vmem [shape: bf16[512,32], index: 3, kind: output, shape index: {}]
  %s4 = sld [smem:[#allocation0]]
  $region45: #{bottleneck_forward.4} parent=0
    _
  %s6 = ssub.s32 1, %s4
  %s7 = scalar_select 0, %s6, %s4
  loop: start=0, step=1, limit=4
  $region2: #{bottleneck_forward.4} parent=0 // loop_pre_header
    _
  $region3: #{bottleneck_forward.4} parent=0 // loop_header
    %s9 = sphi 0, %s13
    %p10 = scmp.ge.s32.totalorder %s9, 4
    %s19 = sphi 0, %s21
    %s22 = sphi 0, %s19
    %s23 = sphi 0, %s22
    %s39 = sphi 0, %s23
    %s43 = sphi 0, %s43
    %s45 = sphi 0, %s43
    %s46 = sphi 0, %s45
    %s60 = sphi 0, %s46
    %s64 = sphi 0, %s64
    %s66 = sphi 0, %s64
    %s67 = sphi 0, %s66
    %s81 = sphi 0, %s67
    %s87 = sphi 0, %s89
    %s90 = sphi 0, %s87
    %s91 = sphi 0, %s90
    %s107 = sphi 0, %s91
  $region4: #{bottleneck_forward.4} parent=0 // loop_header_branch
    %12 = sbr.rel (%p10) target = $region8
  $region5: #{bottleneck_forward.4} parent=0 // loop_body
    %s14 = ssub.s32 %s9, 1
    %s15 = ssub.s32 %s9, 2
    %s16 = sadd.s32 %s9, 1
    %s17 = ssub.s32 %s9, %s16
    %p18 = scmp.eq.s32.totalorder %s17, 0
    %s20 = sadd.s32 %s19, 1
    %s21 = scalar_select %p18, %s19, %s20
    %p24 = pneg %p18
    %p25 = scmp.eq.s32.totalorder %s9, 1
    %p26 = por %p24, %p25
    %p27 = scmp.ne.s32.totalorder %s19, %s22
    %p28 = scmp.eq.s32.totalorder %s9, 0
    %p29 = por %p27, %p28
    %p30 = scmp.ne.s32.totalorder %s19, %s22
    %p31 = scmp.eq.s32.totalorder %s14, 1
    %p32 = por %p30, %p31
    %p33 = scmp.ne.s32.totalorder %s22, %s23
    %p34 = scmp.eq.s32.totalorder %s14, 0
    %p35 = por %p33, %p34
    %p36 = scmp.ne.s32.totalorder %s22, %s23
    %p37 = scmp.eq.s32.totalorder %s15, 1
    %p38 = por %p36, %p37
    %p40 = scmp.ne.s32.totalorder %s23, %s39
    %p41 = scmp.eq.s32.totalorder %s15, 0
    %p42 = por %p40, %p41
    %s44 = sadd.s32 %s43, 1
    %p47 = scmp.eq.s32.totalorder %s9, 1
    %p48 = scmp.ne.s32.totalorder %s43, %s45
    %p49 = scmp.eq.s32.totalorder %s9, 0
    %p50 = por %p48, %p49
    %p51 = scmp.ne.s32.totalorder %s43, %s45
    %p52 = scmp.eq.s32.totalorder %s14, 1
    %p53 = por %p51, %p52
    %p54 = scmp.ne.s32.totalorder %s45, %s46
    %p55 = scmp.eq.s32.totalorder %s14, 0
    %p56 = por %p54, %p55
    %p57 = scmp.ne.s32.totalorder %s45, %s46
    %p58 = scmp.eq.s32.totalorder %s15, 1
    %p59 = por %p57, %p58
    %p61 = scmp.ne.s32.totalorder %s46, %s60
    %p62 = scmp.eq.s32.totalorder %s15, 0
    %p63 = por %p61, %p62
    %s65 = sadd.s32 %s64, 1
    %p68 = scmp.eq.s32.totalorder %s9, 1
    %p69 = scmp.ne.s32.totalorder %s64, %s66
    %p70 = scmp.eq.s32.totalorder %s9, 0
    %p71 = por %p69, %p70
    %p72 = scmp.ne.s32.totalorder %s64, %s66
    %p73 = scmp.eq.s32.totalorder %s14, 1
    %p74 = por %p72, %p73
    %p75 = scmp.ne.s32.totalorder %s66, %s67
    %p76 = scmp.eq.s32.totalorder %s14, 0
    %p77 = por %p75, %p76
    %p78 = scmp.ne.s32.totalorder %s66, %s67
    %p79 = scmp.eq.s32.totalorder %s15, 1
    %p80 = por %p78, %p79
    %p82 = scmp.ne.s32.totalorder %s67, %s81
    %p83 = scmp.eq.s32.totalorder %s15, 0
    %p84 = por %p82, %p83
    %s85 = ssub.s32 %s9, %s16
    %p86 = scmp.eq.s32.totalorder %s85, 0
    %s88 = sadd.s32 %s87, 1
    %s89 = scalar_select %p86, %s87, %s88
    %p92 = pneg %p86
    %p93 = scmp.eq.s32.totalorder %s9, 1
    %p94 = por %p92, %p93
    %p95 = scmp.ne.s32.totalorder %s87, %s90
    %p96 = scmp.eq.s32.totalorder %s9, 0
    %p97 = por %p95, %p96
    %p98 = scmp.ne.s32.totalorder %s87, %s90
    %p99 = scmp.eq.s32.totalorder %s14, 1
    %p100 = por %p98, %p99
    %p101 = scmp.ne.s32.totalorder %s90, %s91
    %p102 = scmp.eq.s32.totalorder %s14, 0
    %p103 = por %p101, %p102
    %p104 = scmp.ne.s32.totalorder %s90, %s91
    %p105 = scmp.eq.s32.totalorder %s15, 1
    %p106 = por %p104, %p105
    %p108 = scmp.ne.s32.totalorder %s91, %s107
    %p109 = scmp.eq.s32.totalorder %s15, 0
    %p110 = por %p108, %p109
    %p111 = scmp.le.s32.totalorder 1, %s9
    %p112 = scmp.lt.s32.totalorder %s9, 3
    %p113 = pnand %p111, %p112
    %p114 = pneg %p113
    // Predicated region
    $region9: #{bottleneck_forward.4} parent=5 // pred_check
      _
    $region10: #{bottleneck_forward.4} parent=5 // pred_check_branch
      %116 = sbr.rel (%p113) target = $region12
    $region11: #{bottleneck_forward.4} parent=5 // pred_region
      %s117 = ssub.s32 %s9, 1
      // Predicated region
      $region13: #{bottleneck_forward.4} parent=11 // pred_check
        %p118 = pneg %p56
      $region14: #{bottleneck_forward.4} parent=11 // pred_check_branch
        %120 = sbr.rel (%p118) target = $region16
      $region15: #{bottleneck_forward.4} parent=11 // pred_region
        _
      $region16: #{bottleneck_forward.4} parent=11 // pred_fallthru
        _
      // Predicated region
      $region17: #{bottleneck_forward.4} parent=11 // pred_check
        %p121 = pneg %p77
      $region18: #{bottleneck_forward.4} parent=11 // pred_check_branch
        %123 = sbr.rel (%p121) target = $region20
      $region19: #{bottleneck_forward.4} parent=11 // pred_region
        _
      $region20: #{bottleneck_forward.4} parent=11 // pred_fallthru
        _
    $region12: #{bottleneck_forward.4} parent=5 // pred_fallthru
      _
    %p124 = scmp.lt.s32.totalorder %s9, 2
    // Predicated region
    $region21: #{bottleneck_forward.4} parent=5 // pred_check
      %p125 = pneg %p124
    $region22: #{bottleneck_forward.4} parent=5 // pred_check_branch
      %127 = sbr.rel (%p125) target = $region24
    $region23: #{bottleneck_forward.4} parent=5 // pred_region
      // Predicated region
      $region25: #{bottleneck_forward.4} parent=23 // pred_check
        %p128 = pneg %p29
      $region26: #{bottleneck_forward.4} parent=23 // pred_check_branch
        %130 = sbr.rel (%p128) target = $region28
      $region27: #{bottleneck_forward.4} parent=23 // pred_region
        %s131 = smul.u32 32, %s9
        %p132 = scmp.lt.s32.totalorder %s131, 63
        %s133 = scalar_select %p132, %s131, 63
        %s134 = smul.addr %s133, 4
        %s135 = scalar_lea.vmem %s0, %s134
        %s136 = smul.u32 32, %s9
      $region28: #{bottleneck_forward.4} parent=23 // pred_fallthru
        _
    $region24: #{bottleneck_forward.4} parent=5 // pred_fallthru
      _
    %p137 = scmp.le.s32.totalorder 1, %s9
    %p138 = scmp.lt.s32.totalorder %s9, 3
    %p139 = pnand %p137, %p138
    %p140 = pneg %p139
    // Predicated region
    $region29: #{bottleneck_forward.4} parent=5 // pred_check
      _
    $region30: #{bottleneck_forward.4} parent=5 // pred_check_branch
      %142 = sbr.rel (%p139) target = $region32
    $region31: #{bottleneck_forward.4} parent=5 // pred_region
      %s143 = ssub.s32 %s9, 1
      %s144 = smul.u32 32, %s14
      %p145 = scmp.lt.s32.totalorder %s144, 63
      %s146 = scalar_select %p145, %s144, 63
      %s147 = smul.addr %s146, 4
      %s148 = scalar_lea.vmem %s0, %s147
      %p149 = pneg %p35
      %p150 = pneg %p32
      %p151 = pneg %p56
      %p152 = pneg %p53
      %p153 = pneg %p77
      %p154 = pneg %p74
      %p155 = pneg %p103
      %p156 = pneg %p100
      %s157 = smul.u32 32, %s14
      %p158 = scmp.lt.s32.totalorder %s157, 63
      %s159 = scalar_select %p158, %s157, 63
      %s160 = smul.addr %s159, 4
      %s161 = scalar_lea.vmem %s3, %s160
      %s162 = smul.u32 32, %s14
      %p163 = scmp.lt.s32.totalorder %s162, 63
      %s164 = scalar_select %p163, %s162, 63
      %s165 = smul.addr %s164, 4
      %s166 = scalar_lea.vmem %s0, %s165
      %s167 = smul.u32 32, %s14
      %s168 = smul.u32 32, %s14
      %p169 = scmp.lt.s32.totalorder %s168, 63
      %s170 = scalar_select %p169, %s168, 63
      %s171 = smul.addr %s170, 4
      %s172 = scalar_lea.vmem %s3, %s171
      %s173 = smul.u32 32, %s14
      %v175 = vld [vmem:[%s166] sm:$0xf]
      %v176 = vld [vmem:[%s166 + $0x4] sm:$0xf]
      %v177 = vld [vmem:[%s166 + $0x8] sm:$0xf]
      %v178 = vld [vmem:[%s166 + $0xc] sm:$0xf]
      %v179 = vld [vmem:[%s166 + $0x10] sm:$0xf]
      %v180 = vld [vmem:[%s166 + $0x14] sm:$0xf]
      %v181 = vld [vmem:[%s166 + $0x18] sm:$0xf]
      %v182 = vld [vmem:[%s166 + $0x1c] sm:$0xf]
      %v183 = vld [vmem:[%s166 + $0x20] sm:$0xf]
      %v184 = vld [vmem:[%s166 + $0x24] sm:$0xf]
      %v185 = vld [vmem:[%s166 + $0x28] sm:$0xf]
      %v186 = vld [vmem:[%s166 + $0x2c] sm:$0xf]
      %v187 = vld [vmem:[%s166 + $0x30] sm:$0xf]
      %v188 = vld [vmem:[%s166 + $0x34] sm:$0xf]
      %v189 = vld [vmem:[%s166 + $0x38] sm:$0xf]
      %v190 = vld [vmem:[%s166 + $0x3c] sm:$0xf]
      %v191 = vld [vmem:[%s166 + $0x40] sm:$0xf]
      %v192 = vld [vmem:[%s166 + $0x44] sm:$0xf]
      %v193 = vld [vmem:[%s166 + $0x48] sm:$0xf]
      %v194 = vld [vmem:[%s166 + $0x4c] sm:$0xf]
      %v195 = vld [vmem:[%s166 + $0x50] sm:$0xf]
      %v196 = vld [vmem:[%s166 + $0x54] sm:$0xf]
      %v197 = vld [vmem:[%s166 + $0x58] sm:$0xf]
      %v198 = vld [vmem:[%s166 + $0x5c] sm:$0xf]
      %v199 = vld [vmem:[%s166 + $0x60] sm:$0xf]
      %v200 = vld [vmem:[%s166 + $0x64] sm:$0xf]
      %v201 = vld [vmem:[%s166 + $0x68] sm:$0xf]
      %v202 = vld [vmem:[%s166 + $0x6c] sm:$0xf]
      %v203 = vld [vmem:[%s166 + $0x70] sm:$0xf]
      %v204 = vld [vmem:[%s166 + $0x74] sm:$0xf]
      %v205 = vld [vmem:[%s166 + $0x78] sm:$0xf]
      %v206 = vld [vmem:[%s166 + $0x7c] sm:$0xf]
      %v207 = vmax.bf16 %v175, 0
      %v208 = vmax.bf16 %v176, 0
      %v209 = vmax.bf16 %v177, 0
      %v210 = vmax.bf16 %v178, 0
      %v211 = vmax.bf16 %v179, 0
      %v212 = vmax.bf16 %v180, 0
      %v213 = vmax.bf16 %v181, 0
      %v214 = vmax.bf16 %v182, 0
      %v215 = vmax.bf16 %v183, 0
      %v216 = vmax.bf16 %v184, 0
      %v217 = vmax.bf16 %v185, 0
      %v218 = vmax.bf16 %v186, 0
      %v219 = vmax.bf16 %v187, 0
      %v220 = vmax.bf16 %v188, 0
      %v221 = vmax.bf16 %v189, 0
      %v222 = vmax.bf16 %v190, 0
      %v223 = vmax.bf16 %v191, 0
      %v224 = vmax.bf16 %v192, 0
      %v225 = vmax.bf16 %v193, 0
      %v226 = vmax.bf16 %v194, 0
      %v227 = vmax.bf16 %v195, 0
      %v228 = vmax.bf16 %v196, 0
      %v229 = vmax.bf16 %v197, 0
      %v230 = vmax.bf16 %v198, 0
      %v231 = vmax.bf16 %v199, 0
      %v232 = vmax.bf16 %v200, 0
      %v233 = vmax.bf16 %v201, 0
      %v234 = vmax.bf16 %v202, 0
      %v235 = vmax.bf16 %v203, 0
      %v236 = vmax.bf16 %v204, 0
      %v237 = vmax.bf16 %v205, 0
      %v238 = vmax.bf16 %v206, 0
      %v239 = vld [vmem:[%s1] sm:$0xf]
      %v240 = vld [vmem:[%s1 + $0x4] sm:$0xf]
      %v241 = vld [vmem:[%s1 + $0x8] sm:$0xf]
      %v242 = vld [vmem:[%s1 + $0xc] sm:$0xf]
      %v243 = vld [vmem:[%s1 + $0x10] sm:$0xf]
      %v244 = vld [vmem:[%s1 + $0x14] sm:$0xf]
      %v245 = vld [vmem:[%s1 + $0x18] sm:$0xf]
      %v246 = vld [vmem:[%s1 + $0x1c] sm:$0xf]
      %v247 = vld [vmem:[%s2] sm:$0x1]
      %v249 = vlaneseq
      %v250 = vshrl.u32 %v249, 7
      %v251 = vsub.s32 0, %v250
      %v252 = vrot.slane %v247, %v251
      %v286 = vunpack.c.l.b16 %v207
      %v287 = vunpack.c.l.b16 %v208
      %v288 = vunpack.c.l.b16 %v209
      %v289 = vunpack.c.l.b16 %v210
      %v290 = vunpack.c.l.b16 %v211
      %v291 = vunpack.c.l.b16 %v212
      %v292 = vunpack.c.l.b16 %v213
      %v293 = vunpack.c.l.b16 %v214
      %v294 = vunpack.c.l.b16 %v215
      %v295 = vunpack.c.l.b16 %v216
      %v296 = vunpack.c.l.b16 %v217
      %v297 = vunpack.c.l.b16 %v218
      %v298 = vunpack.c.l.b16 %v219
      %v299 = vunpack.c.l.b16 %v220
      %v300 = vunpack.c.l.b16 %v221
      %v301 = vunpack.c.l.b16 %v222
      %v302 = vunpack.c.l.b16 %v223
      %v303 = vunpack.c.l.b16 %v224
      %v304 = vunpack.c.l.b16 %v225
      %v305 = vunpack.c.l.b16 %v226
      %v306 = vunpack.c.l.b16 %v227
      %v307 = vunpack.c.l.b16 %v228
      %v308 = vunpack.c.l.b16 %v229
      %v309 = vunpack.c.l.b16 %v230
      %v310 = vunpack.c.l.b16 %v231
      %v311 = vunpack.c.l.b16 %v232
      %v312 = vunpack.c.l.b16 %v233
      %v313 = vunpack.c.l.b16 %v234
      %v314 = vunpack.c.l.b16 %v235
      %v315 = vunpack.c.l.b16 %v236
      %v316 = vunpack.c.l.b16 %v237
      %v317 = vunpack.c.l.b16 %v238
      %v318 = vpack.c.b16 %v287, %v286
      %v319 = vpack.c.b16 %v289, %v288
      %v320 = vpack.c.b16 %v291, %v290
      %v321 = vpack.c.b16 %v293, %v292
      %v322 = vpack.c.b16 %v295, %v294
      %v323 = vpack.c.b16 %v297, %v296
      %v324 = vpack.c.b16 %v299, %v298
      %v325 = vpack.c.b16 %v301, %v300
      %v326 = vpack.c.b16 %v303, %v302
      %v327 = vpack.c.b16 %v305, %v304
      %v328 = vpack.c.b16 %v307, %v306
      %v329 = vpack.c.b16 %v309, %v308
      %v330 = vpack.c.b16 %v311, %v310
      %v331 = vpack.c.b16 %v313, %v312
      %v332 = vpack.c.b16 %v315, %v314
      %v333 = vpack.c.b16 %v317, %v316
      %v342 = vunpack.c.l.b16 %v239
      %v343 = vunpack.c.l.b16 %v240
      %v344 = vunpack.c.l.b16 %v241
      %v345 = vunpack.c.l.b16 %v242
      %v346 = vunpack.c.l.b16 %v243
      %v347 = vunpack.c.l.b16 %v244
      %v348 = vunpack.c.l.b16 %v245
      %v349 = vunpack.c.l.b16 %v246
      %v350 = vpack.c.b16 %v343, %v342
      %v351 = vpack.c.b16 %v345, %v344
      %v352 = vpack.c.b16 %v347, %v346
      %v353 = vpack.c.b16 %v349, %v348
      %vm358 = vcmask 523264
      %v360 = vsel %vm358, %v318, 0
      %v363 = vsel %vm358, %v319, 0
      %v366 = vsel %vm358, %v320, 0
      %v369 = vsel %vm358, %v321, 0
      %v372 = vsel %vm358, %v322, 0
      %v375 = vsel %vm358, %v323, 0
      %v378 = vsel %vm358, %v324, 0
      %v381 = vsel %vm358, %v325, 0
      %v384 = vsel %vm358, %v326, 0
      %v387 = vsel %vm358, %v327, 0
      %v390 = vsel %vm358, %v328, 0
      %v393 = vsel %vm358, %v329, 0
      %v396 = vsel %vm358, %v330, 0
      %v399 = vsel %vm358, %v331, 0
      %v402 = vsel %vm358, %v332, 0
      %v405 = vsel %vm358, %v333, 0
      %407 = vmatprep.subr.bf16.mxu0 0
      %408 = vmatpush1.bf16.msra.mxu0 0
      %409 = vmatprep.subr.bf16.mxu0 0
      %410 = vmatpush1.bf16.msra.mxu0 0
      %411 = vmatprep.subr.bf16.mxu0 0
      %412 = vmatpush1.bf16.msra.mxu0 0
      %413 = vmatprep.subr.bf16.mxu0 0
      %414 = vmatpush1.bf16.msra.mxu0 0
      %415 = vmatprep.subr.bf16.mxu0 0
      %416 = vmatpush1.bf16.msra.mxu0 %v353
      %417 = vmatprep.subr.bf16.mxu0 0
      %418 = vmatpush1.bf16.msra.mxu0 %v352
      %419 = vmatprep.subr.bf16.mxu0 0
      %420 = vmatpush1.bf16.msra.mxu0 %v351
      %421 = vmatprep.subr.bf16.mxu0 0
      %422 = vmatpush1.bf16.msra.mxu0 %v350
      %423 = vmatprep.subr.bf16.mxu0 0
      %424 = vmatpush2.bf16.msra.mxu0 0
      %425 = vmatprep.subr.bf16.mxu0 0
      %426 = vmatpush2.bf16.msra.mxu0 0
      %427 = vmatprep.subr.bf16.mxu0 0
      %428 = vmatpush2.bf16.msra.mxu0 0
      %429 = vmatprep.subr.bf16.mxu0 0
      %430 = vmatpush2.bf16.msra.mxu0 0
      %431 = vmatprep.subr.bf16.mxu0 0
      %432 = vmatpush2.bf16.msra.mxu0 0
      %433 = vmatprep.subr.bf16.mxu0 0
      %434 = vmatpush2.bf16.msra.mxu0 0
      %435 = vmatprep.subr.bf16.mxu0 0
      %436 = vmatpush2.bf16.msra.mxu0 0
      %437 = vmatprep.subr.bf16.mxu0 0
      %438 = vmatpush2.bf16.msra.mxu0 0
      %439 = vmatprep.mubr.bf16.mxu0 0
      %440 = vmatmul.mubr.bf16.gmra.mxu0 %v360
      %v441 = vpop.f32.mrf.mxu0
      %v442 = vadd.f32 %v252, %v441
      %v443 = vpop.f32.mrf.mxu0
      %v444 = vpop.f32.mrf.mxu0
      %v445 = vadd.f32 %v252, %v444
      %v446 = vpop.f32.mrf.mxu0
      %447 = vmatprep.mubr.bf16.mxu0 0
      %448 = vmatmul.mubr.bf16.gmra.mxu0 %v363
      %v449 = vpop.f32.mrf.mxu0
      %v450 = vadd.f32 %v252, %v449
      %v451 = vpop.f32.mrf.mxu0
      %v452 = vpop.f32.mrf.mxu0
      %v453 = vadd.f32 %v252, %v452
      %v454 = vpop.f32.mrf.mxu0
      %455 = vmatprep.mubr.bf16.mxu0 0
      %456 = vmatmul.mubr.bf16.gmra.mxu0 %v366
      %v457 = vpop.f32.mrf.mxu0
      %v458 = vadd.f32 %v252, %v457
      %v459 = vpop.f32.mrf.mxu0
      %v460 = vpop.f32.mrf.mxu0
      %v461 = vadd.f32 %v252, %v460
      %v462 = vpop.f32.mrf.mxu0
      %463 = vmatprep.mubr.bf16.mxu0 0
      %464 = vmatmul.mubr.bf16.gmra.mxu0 %v369
      %v465 = vpop.f32.mrf.mxu0
      %v466 = vadd.f32 %v252, %v465
      %v467 = vpop.f32.mrf.mxu0
      %v468 = vpop.f32.mrf.mxu0
      %v469 = vadd.f32 %v252, %v468
      %v470 = vpop.f32.mrf.mxu0
      %471 = vmatprep.mubr.bf16.mxu0 0
      %472 = vmatmul.mubr.bf16.gmra.mxu0 %v372
      %v473 = vpop.f32.mrf.mxu0
      %v474 = vadd.f32 %v252, %v473
      %v475 = vpop.f32.mrf.mxu0
      %v476 = vpop.f32.mrf.mxu0
      %v477 = vadd.f32 %v252, %v476
      %v478 = vpop.f32.mrf.mxu0
      %479 = vmatprep.mubr.bf16.mxu0 0
      %480 = vmatmul.mubr.bf16.gmra.mxu0 %v375
      %v481 = vpop.f32.mrf.mxu0
      %v482 = vadd.f32 %v252, %v481
      %v483 = vpop.f32.mrf.mxu0
      %v484 = vpop.f32.mrf.mxu0
      %v485 = vadd.f32 %v252, %v484
      %v486 = vpop.f32.mrf.mxu0
      %487 = vmatprep.mubr.bf16.mxu0 0
      %488 = vmatmul.mubr.bf16.gmra.mxu0 %v378
      %v489 = vpop.f32.mrf.mxu0
      %v490 = vadd.f32 %v252, %v489
      %v491 = vpop.f32.mrf.mxu0
      %v492 = vpop.f32.mrf.mxu0
      %v493 = vadd.f32 %v252, %v492
      %v494 = vpop.f32.mrf.mxu0
      %495 = vmatprep.mubr.bf16.mxu0 0
      %496 = vmatmul.mubr.bf16.gmra.mxu0 %v381
      %v497 = vpop.f32.mrf.mxu0
      %v498 = vadd.f32 %v252, %v497
      %v499 = vpop.f32.mrf.mxu0
      %v500 = vpop.f32.mrf.mxu0
      %v501 = vadd.f32 %v252, %v500
      %v502 = vpop.f32.mrf.mxu0
      %503 = vmatprep.mubr.bf16.mxu0 0
      %504 = vmatmul.mubr.bf16.gmra.mxu0 %v384
      %v505 = vpop.f32.mrf.mxu0
      %v506 = vadd.f32 %v252, %v505
      %v507 = vpop.f32.mrf.mxu0
      %v508 = vpop.f32.mrf.mxu0
      %v509 = vadd.f32 %v252, %v508
      %v510 = vpop.f32.mrf.mxu0
      %511 = vmatprep.mubr.bf16.mxu0 0
      %512 = vmatmul.mubr.bf16.gmra.mxu0 %v387
      %v513 = vpop.f32.mrf.mxu0
      %v514 = vadd.f32 %v252, %v513
      %v515 = vpop.f32.mrf.mxu0
      %v516 = vpop.f32.mrf.mxu0
      %v517 = vadd.f32 %v252, %v516
      %v518 = vpop.f32.mrf.mxu0
      %519 = vmatprep.mubr.bf16.mxu0 0
      %520 = vmatmul.mubr.bf16.gmra.mxu0 %v390
      %v521 = vpop.f32.mrf.mxu0
      %v522 = vadd.f32 %v252, %v521
      %v523 = vpop.f32.mrf.mxu0
      %v524 = vpop.f32.mrf.mxu0
      %v525 = vadd.f32 %v252, %v524
      %v526 = vpop.f32.mrf.mxu0
      %527 = vmatprep.mubr.bf16.mxu0 0
      %528 = vmatmul.mubr.bf16.gmra.mxu0 %v393
      %v529 = vpop.f32.mrf.mxu0
      %v530 = vadd.f32 %v252, %v529
      %v531 = vpop.f32.mrf.mxu0
      %v532 = vpop.f32.mrf.mxu0
      %v533 = vadd.f32 %v252, %v532
      %v534 = vpop.f32.mrf.mxu0
      %535 = vmatprep.mubr.bf16.mxu0 0
      %536 = vmatmul.mubr.bf16.gmra.mxu0 %v396
      %v537 = vpop.f32.mrf.mxu0
      %v538 = vadd.f32 %v252, %v537
      %v539 = vpop.f32.mrf.mxu0
      %v540 = vpop.f32.mrf.mxu0
      %v541 = vadd.f32 %v252, %v540
      %v542 = vpop.f32.mrf.mxu0
      %543 = vmatprep.mubr.bf16.mxu0 0
      %544 = vmatmul.mubr.bf16.gmra.mxu0 %v399
      %v545 = vpop.f32.mrf.mxu0
      %v546 = vadd.f32 %v252, %v545
      %v547 = vpop.f32.mrf.mxu0
      %v548 = vpop.f32.mrf.mxu0
      %v549 = vadd.f32 %v252, %v548
      %v550 = vpop.f32.mrf.mxu0
      %551 = vmatprep.mubr.bf16.mxu0 0
      %552 = vmatmul.mubr.bf16.gmra.mxu0 %v402
      %v553 = vpop.f32.mrf.mxu0
      %v554 = vadd.f32 %v252, %v553
      %v555 = vpop.f32.mrf.mxu0
      %v556 = vpop.f32.mrf.mxu0
      %v557 = vadd.f32 %v252, %v556
      %v558 = vpop.f32.mrf.mxu0
      %559 = vmatprep.mubr.bf16.mxu0 0
      %560 = vmatmul.mubr.bf16.gmra.mxu0 %v405
      %v561 = vpop.f32.mrf.mxu0
      %v562 = vadd.f32 %v252, %v561
      %v563 = vpop.f32.mrf.mxu0
      %v564 = vpop.f32.mrf.mxu0
      %v565 = vadd.f32 %v252, %v564
      %v566 = vpop.f32.mrf.mxu0
      %567 = vdwg.mxu0
      %v568 = vmax.f32 %v442, 0.0
      %v569 = vmax.f32 %v445, 0.0
      %v570 = vmax.f32 %v450, 0.0
      %v571 = vmax.f32 %v453, 0.0
      %v572 = vmax.f32 %v458, 0.0
      %v573 = vmax.f32 %v461, 0.0
      %v574 = vmax.f32 %v466, 0.0
      %v575 = vmax.f32 %v469, 0.0
      %v576 = vmax.f32 %v474, 0.0
      %v577 = vmax.f32 %v477, 0.0
      %v578 = vmax.f32 %v482, 0.0
      %v579 = vmax.f32 %v485, 0.0
      %v580 = vmax.f32 %v490, 0.0
      %v581 = vmax.f32 %v493, 0.0
      %v582 = vmax.f32 %v498, 0.0
      %v583 = vmax.f32 %v501, 0.0
      %v584 = vmax.f32 %v506, 0.0
      %v585 = vmax.f32 %v509, 0.0
      %v586 = vmax.f32 %v514, 0.0
      %v587 = vmax.f32 %v517, 0.0
      %v588 = vmax.f32 %v522, 0.0
      %v589 = vmax.f32 %v525, 0.0
      %v590 = vmax.f32 %v530, 0.0
      %v591 = vmax.f32 %v533, 0.0
      %v592 = vmax.f32 %v538, 0.0
      %v593 = vmax.f32 %v541, 0.0
      %v594 = vmax.f32 %v546, 0.0
      %v595 = vmax.f32 %v549, 0.0
      %v596 = vmax.f32 %v554, 0.0
      %v597 = vmax.f32 %v557, 0.0
      %v598 = vmax.f32 %v562, 0.0
      %v599 = vmax.f32 %v565, 0.0
      %v600 = vpack.c.bf16 %v569, %v568
      %v601 = vpack.c.bf16 %v571, %v570
      %v602 = vpack.c.bf16 %v573, %v572
      %v603 = vpack.c.bf16 %v575, %v574
      %v604 = vpack.c.bf16 %v577, %v576
      %v605 = vpack.c.bf16 %v579, %v578
      %v606 = vpack.c.bf16 %v581, %v580
      %v607 = vpack.c.bf16 %v583, %v582
      %v608 = vpack.c.bf16 %v585, %v584
      %v609 = vpack.c.bf16 %v587, %v586
      %v610 = vpack.c.bf16 %v589, %v588
      %v611 = vpack.c.bf16 %v591, %v590
      %v612 = vpack.c.bf16 %v593, %v592
      %v613 = vpack.c.bf16 %v595, %v594
      %v614 = vpack.c.bf16 %v597, %v596
      %v615 = vpack.c.bf16 %v599, %v598
      %v632 = vunpack.c.l.b16 %v600
      %v633 = vunpack.c.h.b16 %v600
      %v634 = vunpack.c.l.b16 %v601
      %v635 = vunpack.c.h.b16 %v601
      %v636 = vunpack.c.l.b16 %v602
      %v637 = vunpack.c.h.b16 %v602
      %v638 = vunpack.c.l.b16 %v603
      %v639 = vunpack.c.h.b16 %v603
      %v640 = vunpack.c.l.b16 %v604
      %v641 = vunpack.c.h.b16 %v604
      %v642 = vunpack.c.l.b16 %v605
      %v643 = vunpack.c.h.b16 %v605
      %v644 = vunpack.c.l.b16 %v606
      %v645 = vunpack.c.h.b16 %v606
      %v646 = vunpack.c.l.b16 %v607
      %v647 = vunpack.c.h.b16 %v607
      %v648 = vunpack.c.l.b16 %v608
      %v649 = vunpack.c.h.b16 %v608
      %v650 = vunpack.c.l.b16 %v609
      %v651 = vunpack.c.h.b16 %v609
      %v652 = vunpack.c.l.b16 %v610
      %v653 = vunpack.c.h.b16 %v610
      %v654 = vunpack.c.l.b16 %v611
      %v655 = vunpack.c.h.b16 %v611
      %v656 = vunpack.c.l.b16 %v612
      %v657 = vunpack.c.h.b16 %v612
      %v658 = vunpack.c.l.b16 %v613
      %v659 = vunpack.c.h.b16 %v613
      %v660 = vunpack.c.l.b16 %v614
      %v661 = vunpack.c.h.b16 %v614
      %v662 = vunpack.c.l.b16 %v615
      %v663 = vunpack.c.h.b16 %v615
      %v664 = vpack.c.b16 %v632, %v632
      %v665 = vpack.c.b16 %v633, %v633
      %v666 = vpack.c.b16 %v634, %v634
      %v667 = vpack.c.b16 %v635, %v635
      %v668 = vpack.c.b16 %v636, %v636
      %v669 = vpack.c.b16 %v637, %v637
      %v670 = vpack.c.b16 %v638, %v638
      %v671 = vpack.c.b16 %v639, %v639
      %v672 = vpack.c.b16 %v640, %v640
      %v673 = vpack.c.b16 %v641, %v641
      %v674 = vpack.c.b16 %v642, %v642
      %v675 = vpack.c.b16 %v643, %v643
      %v676 = vpack.c.b16 %v644, %v644
      %v677 = vpack.c.b16 %v645, %v645
      %v678 = vpack.c.b16 %v646, %v646
      %v679 = vpack.c.b16 %v647, %v647
      %v680 = vpack.c.b16 %v648, %v648
      %v681 = vpack.c.b16 %v649, %v649
      %v682 = vpack.c.b16 %v650, %v650
      %v683 = vpack.c.b16 %v651, %v651
      %v684 = vpack.c.b16 %v652, %v652
      %v685 = vpack.c.b16 %v653, %v653
      %v686 = vpack.c.b16 %v654, %v654
      %v687 = vpack.c.b16 %v655, %v655
      %v688 = vpack.c.b16 %v656, %v656
      %v689 = vpack.c.b16 %v657, %v657
      %v690 = vpack.c.b16 %v658, %v658
      %v691 = vpack.c.b16 %v659, %v659
      %v692 = vpack.c.b16 %v660, %v660
      %v693 = vpack.c.b16 %v661, %v661
      %v694 = vpack.c.b16 %v662, %v662
      %v695 = vpack.c.b16 %v663, %v663
      %vm728 = vcmask 257024
      %729 = vst.msk [vmem:[%s172] sm:$0xf] %vm728, %v664
      %730 = vst.msk [vmem:[%s172 + $0x4] sm:$0xf] %vm728, %v665
      %731 = vst.msk [vmem:[%s172 + $0x8] sm:$0xf] %vm728, %v666
      %732 = vst.msk [vmem:[%s172 + $0xc] sm:$0xf] %vm728, %v667
      %733 = vst.msk [vmem:[%s172 + $0x10] sm:$0xf] %vm728, %v668
      %734 = vst.msk [vmem:[%s172 + $0x14] sm:$0xf] %vm728, %v669
      %735 = vst.msk [vmem:[%s172 + $0x18] sm:$0xf] %vm728, %v670
      %736 = vst.msk [vmem:[%s172 + $0x1c] sm:$0xf] %vm728, %v671
      %737 = vst.msk [vmem:[%s172 + $0x20] sm:$0xf] %vm728, %v672
      %738 = vst.msk [vmem:[%s172 + $0x24] sm:$0xf] %vm728, %v673
      %739 = vst.msk [vmem:[%s172 + $0x28] sm:$0xf] %vm728, %v674
      %740 = vst.msk [vmem:[%s172 + $0x2c] sm:$0xf] %vm728, %v675
      %741 = vst.msk [vmem:[%s172 + $0x30] sm:$0xf] %vm728, %v676
      %742 = vst.msk [vmem:[%s172 + $0x34] sm:$0xf] %vm728, %v677
      %743 = vst.msk [vmem:[%s172 + $0x38] sm:$0xf] %vm728, %v678
      %744 = vst.msk [vmem:[%s172 + $0x3c] sm:$0xf] %vm728, %v679
      %745 = vst.msk [vmem:[%s172 + $0x40] sm:$0xf] %vm728, %v680
      %746 = vst.msk [vmem:[%s172 + $0x44] sm:$0xf] %vm728, %v681
      %747 = vst.msk [vmem:[%s172 + $0x48] sm:$0xf] %vm728, %v682
      %748 = vst.msk [vmem:[%s172 + $0x4c] sm:$0xf] %vm728, %v683
      %749 = vst.msk [vmem:[%s172 + $0x50] sm:$0xf] %vm728, %v684
      %750 = vst.msk [vmem:[%s172 + $0x54] sm:$0xf] %vm728, %v685
      %751 = vst.msk [vmem:[%s172 + $0x58] sm:$0xf] %vm728, %v686
      %752 = vst.msk [vmem:[%s172 + $0x5c] sm:$0xf] %vm728, %v687
      %753 = vst.msk [vmem:[%s172 + $0x60] sm:$0xf] %vm728, %v688
      %754 = vst.msk [vmem:[%s172 + $0x64] sm:$0xf] %vm728, %v689
      %755 = vst.msk [vmem:[%s172 + $0x68] sm:$0xf] %vm728, %v690
      %756 = vst.msk [vmem:[%s172 + $0x6c] sm:$0xf] %vm728, %v691
      %757 = vst.msk [vmem:[%s172 + $0x70] sm:$0xf] %vm728, %v692
      %758 = vst.msk [vmem:[%s172 + $0x74] sm:$0xf] %vm728, %v693
      %759 = vst.msk [vmem:[%s172 + $0x78] sm:$0xf] %vm728, %v694
      %760 = vst.msk [vmem:[%s172 + $0x7c] sm:$0xf] %vm728, %v695
      %s761 = smul.u32 32, %s14
      %p762 = scmp.lt.s32.totalorder %s761, 63
      %s763 = scalar_select %p762, %s761, 63
      %s764 = smul.addr %s763, 4
      %s765 = scalar_lea.vmem %s3, %s764
      // Predicated region
      $region33: #{bottleneck_forward.4} parent=31 // pred_check
        %p766 = pneg %p100
      $region34: #{bottleneck_forward.4} parent=31 // pred_check_branch
        %768 = sbr.rel (%p766) target = $region36
      $region35: #{bottleneck_forward.4} parent=31 // pred_region
        %s769 = smul.u32 32, %s14
      $region36: #{bottleneck_forward.4} parent=31 // pred_fallthru
        _
    $region32: #{bottleneck_forward.4} parent=5 // pred_fallthru
      _
    %p770 = scmp.le.s32.totalorder 2, %s9
    // Predicated region
    $region37: #{bottleneck_forward.4} parent=5 // pred_check
      %p771 = pneg %p770
    $region38: #{bottleneck_forward.4} parent=5 // pred_check_branch
      %773 = sbr.rel (%p771) target = $region40
    $region39: #{bottleneck_forward.4} parent=5 // pred_region
      %s774 = ssub.s32 %s9, 2
      // Predicated region
      $region41: #{bottleneck_forward.4} parent=39 // pred_check
        %p775 = pneg %p106
      $region42: #{bottleneck_forward.4} parent=39 // pred_check_branch
        %777 = sbr.rel (%p775) target = $region44
      $region43: #{bottleneck_forward.4} parent=39 // pred_region
        %s778 = smul.u32 32, %s15
        %p779 = scmp.lt.s32.totalorder %s778, 63
        %s780 = scalar_select %p779, %s778, 63
        %s781 = smul.addr %s780, 4
        %s782 = scalar_lea.vmem %s3, %s781
      $region44: #{bottleneck_forward.4} parent=39 // pred_fallthru
        _
    $region40: #{bottleneck_forward.4} parent=5 // pred_fallthru
      _
  $region6: #{bottleneck_forward.4} parent=0 // loop_footer
    %s13 = sadd.s32 1, %s9
  $region7: #{bottleneck_forward.4} parent=0 // loop_footer_branch
    %8 = sbr.rel target = $region3
  $region8: #{bottleneck_forward.4} parent=0 // loop_exit
    _

// kernel: bottleneck_forward.6
$region0: #{bottleneck_forward.6}
  #allocation0 [shape = 'u32[]', space=smem, size = 0x4, offset = 0x4, fixed_abs, tag = 'smem constant byte address 0x4 - core index']
  #allocation1 [shape = 'u32[144,128]{1,0:T(1,128)}', space=vmem, size = 0x12000, scoped, tag = 'internal scratch']
  %s0 = inlined_call_operand.vmem [shape: bf16[128,64], index: 0, kind: input, shape index: {}]
  %s1 = inlined_call_operand.vmem [shape: bf16[64,128], index: 1, kind: input, shape index: {}]
  %s2 = inlined_call_operand.vmem [shape: f32[1,128], index: 2, kind: input, shape index: {}]
  %s3 = inlined_call_operand.vmem [shape: bf16[128,128], index: 3, kind: output, shape index: {}]
  %s4 = sld [smem:[#allocation0]]
  $region45: #{bottleneck_forward.6} parent=0
    _
  %s6 = ssub.s32 1, %s4
  %s7 = scalar_select 0, %s6, %s4
  loop: start=0, step=1, limit=4
  $region2: #{bottleneck_forward.6} parent=0 // loop_pre_header
    _
  $region3: #{bottleneck_forward.6} parent=0 // loop_header
    %s9 = sphi 0, %s13
    %p10 = scmp.ge.s32.totalorder %s9, 4
    %s19 = sphi 0, %s21
    %s22 = sphi 0, %s19
    %s23 = sphi 0, %s22
    %s39 = sphi 0, %s23
    %s43 = sphi 0, %s43
    %s45 = sphi 0, %s43
    %s46 = sphi 0, %s45
    %s60 = sphi 0, %s46
    %s64 = sphi 0, %s64
    %s66 = sphi 0, %s64
    %s67 = sphi 0, %s66
    %s81 = sphi 0, %s67
    %s87 = sphi 0, %s89
    %s90 = sphi 0, %s87
    %s91 = sphi 0, %s90
    %s107 = sphi 0, %s91
  $region4: #{bottleneck_forward.6} parent=0 // loop_header_branch
    %12 = sbr.rel (%p10) target = $region8
  $region5: #{bottleneck_forward.6} parent=0 // loop_body
    %s14 = ssub.s32 %s9, 1
    %s15 = ssub.s32 %s9, 2
    %s16 = sadd.s32 %s9, 1
    %s17 = ssub.s32 %s9, %s16
    %p18 = scmp.eq.s32.totalorder %s17, 0
    %s20 = sadd.s32 %s19, 1
    %s21 = scalar_select %p18, %s19, %s20
    %p24 = pneg %p18
    %p25 = scmp.eq.s32.totalorder %s9, 1
    %p26 = por %p24, %p25
    %p27 = scmp.ne.s32.totalorder %s19, %s22
    %p28 = scmp.eq.s32.totalorder %s9, 0
    %p29 = por %p27, %p28
    %p30 = scmp.ne.s32.totalorder %s19, %s22
    %p31 = scmp.eq.s32.totalorder %s14, 1
    %p32 = por %p30, %p31
    %p33 = scmp.ne.s32.totalorder %s22, %s23
    %p34 = scmp.eq.s32.totalorder %s14, 0
    %p35 = por %p33, %p34
    %p36 = scmp.ne.s32.totalorder %s22, %s23
    %p37 = scmp.eq.s32.totalorder %s15, 1
    %p38 = por %p36, %p37
    %p40 = scmp.ne.s32.totalorder %s23, %s39
    %p41 = scmp.eq.s32.totalorder %s15, 0
    %p42 = por %p40, %p41
    %s44 = sadd.s32 %s43, 1
    %p47 = scmp.eq.s32.totalorder %s9, 1
    %p48 = scmp.ne.s32.totalorder %s43, %s45
    %p49 = scmp.eq.s32.totalorder %s9, 0
    %p50 = por %p48, %p49
    %p51 = scmp.ne.s32.totalorder %s43, %s45
    %p52 = scmp.eq.s32.totalorder %s14, 1
    %p53 = por %p51, %p52
    %p54 = scmp.ne.s32.totalorder %s45, %s46
    %p55 = scmp.eq.s32.totalorder %s14, 0
    %p56 = por %p54, %p55
    %p57 = scmp.ne.s32.totalorder %s45, %s46
    %p58 = scmp.eq.s32.totalorder %s15, 1
    %p59 = por %p57, %p58
    %p61 = scmp.ne.s32.totalorder %s46, %s60
    %p62 = scmp.eq.s32.totalorder %s15, 0
    %p63 = por %p61, %p62
    %s65 = sadd.s32 %s64, 1
    %p68 = scmp.eq.s32.totalorder %s9, 1
    %p69 = scmp.ne.s32.totalorder %s64, %s66
    %p70 = scmp.eq.s32.totalorder %s9, 0
    %p71 = por %p69, %p70
    %p72 = scmp.ne.s32.totalorder %s64, %s66
    %p73 = scmp.eq.s32.totalorder %s14, 1
    %p74 = por %p72, %p73
    %p75 = scmp.ne.s32.totalorder %s66, %s67
    %p76 = scmp.eq.s32.totalorder %s14, 0
    %p77 = por %p75, %p76
    %p78 = scmp.ne.s32.totalorder %s66, %s67
    %p79 = scmp.eq.s32.totalorder %s15, 1
    %p80 = por %p78, %p79
    %p82 = scmp.ne.s32.totalorder %s67, %s81
    %p83 = scmp.eq.s32.totalorder %s15, 0
    %p84 = por %p82, %p83
    %s85 = ssub.s32 %s9, %s16
    %p86 = scmp.eq.s32.totalorder %s85, 0
    %s88 = sadd.s32 %s87, 1
    %s89 = scalar_select %p86, %s87, %s88
    %p92 = pneg %p86
    %p93 = scmp.eq.s32.totalorder %s9, 1
    %p94 = por %p92, %p93
    %p95 = scmp.ne.s32.totalorder %s87, %s90
    %p96 = scmp.eq.s32.totalorder %s9, 0
    %p97 = por %p95, %p96
    %p98 = scmp.ne.s32.totalorder %s87, %s90
    %p99 = scmp.eq.s32.totalorder %s14, 1
    %p100 = por %p98, %p99
    %p101 = scmp.ne.s32.totalorder %s90, %s91
    %p102 = scmp.eq.s32.totalorder %s14, 0
    %p103 = por %p101, %p102
    %p104 = scmp.ne.s32.totalorder %s90, %s91
    %p105 = scmp.eq.s32.totalorder %s15, 1
    %p106 = por %p104, %p105
    %p108 = scmp.ne.s32.totalorder %s91, %s107
    %p109 = scmp.eq.s32.totalorder %s15, 0
    %p110 = por %p108, %p109
    %p111 = scmp.le.s32.totalorder 1, %s9
    %p112 = scmp.lt.s32.totalorder %s9, 3
    %p113 = pnand %p111, %p112
    %p114 = pneg %p113
    // Predicated region
    $region9: #{bottleneck_forward.6} parent=5 // pred_check
      _
    $region10: #{bottleneck_forward.6} parent=5 // pred_check_branch
      %116 = sbr.rel (%p113) target = $region12
    $region11: #{bottleneck_forward.6} parent=5 // pred_region
      %s117 = ssub.s32 %s9, 1
      // Predicated region
      $region13: #{bottleneck_forward.6} parent=11 // pred_check
        %p118 = pneg %p56
      $region14: #{bottleneck_forward.6} parent=11 // pred_check_branch
        %120 = sbr.rel (%p118) target = $region16
      $region15: #{bottleneck_forward.6} parent=11 // pred_region
        _
      $region16: #{bottleneck_forward.6} parent=11 // pred_fallthru
        _
      // Predicated region
      $region17: #{bottleneck_forward.6} parent=11 // pred_check
        %p121 = pneg %p77
      $region18: #{bottleneck_forward.6} parent=11 // pred_check_branch
        %123 = sbr.rel (%p121) target = $region20
      $region19: #{bottleneck_forward.6} parent=11 // pred_region
        _
      $region20: #{bottleneck_forward.6} parent=11 // pred_fallthru
        _
    $region12: #{bottleneck_forward.6} parent=5 // pred_fallthru
      _
    %p124 = scmp.lt.s32.totalorder %s9, 2
    // Predicated region
    $region21: #{bottleneck_forward.6} parent=5 // pred_check
      %p125 = pneg %p124
    $region22: #{bottleneck_forward.6} parent=5 // pred_check_branch
      %127 = sbr.rel (%p125) target = $region24
    $region23: #{bottleneck_forward.6} parent=5 // pred_region
      // Predicated region
      $region25: #{bottleneck_forward.6} parent=23 // pred_check
        %p128 = pneg %p29
      $region26: #{bottleneck_forward.6} parent=23 // pred_check_branch
        %130 = sbr.rel (%p128) target = $region28
      $region27: #{bottleneck_forward.6} parent=23 // pred_region
        %s131 = smul.u32 8, %s9
        %p132 = scmp.lt.s32.totalorder %s131, 15
        %s133 = scalar_select %p132, %s131, 15
        %s134 = smul.addr %s133, 4
        %s135 = scalar_lea.vmem %s0, %s134
        %s136 = smul.u32 8, %s9
      $region28: #{bottleneck_forward.6} parent=23 // pred_fallthru
        _
    $region24: #{bottleneck_forward.6} parent=5 // pred_fallthru
      _
    %p137 = scmp.le.s32.totalorder 1, %s9
    %p138 = scmp.lt.s32.totalorder %s9, 3
    %p139 = pnand %p137, %p138
    %p140 = pneg %p139
    // Predicated region
    $region29: #{bottleneck_forward.6} parent=5 // pred_check
      _
    $region30: #{bottleneck_forward.6} parent=5 // pred_check_branch
      %142 = sbr.rel (%p139) target = $region32
    $region31: #{bottleneck_forward.6} parent=5 // pred_region
      %s143 = ssub.s32 %s9, 1
      %s144 = smul.u32 8, %s14
      %p145 = scmp.lt.s32.totalorder %s144, 15
      %s146 = scalar_select %p145, %s144, 15
      %s147 = smul.addr %s146, 4
      %s148 = scalar_lea.vmem %s0, %s147
      %p149 = pneg %p35
      %p150 = pneg %p32
      %p151 = pneg %p56
      %p152 = pneg %p53
      %p153 = pneg %p77
      %p154 = pneg %p74
      %p155 = pneg %p103
      %p156 = pneg %p100
      %s157 = smul.u32 8, %s14
      %p158 = scmp.lt.s32.totalorder %s157, 15
      %s159 = scalar_select %p158, %s157, 15
      %s160 = smul.addr %s159, 4
      %s161 = scalar_lea.vmem %s3, %s160
      %s162 = smul.u32 8, %s14
      %p163 = scmp.lt.s32.totalorder %s162, 15
      %s164 = scalar_select %p163, %s162, 15
      %s165 = smul.addr %s164, 4
      %s166 = scalar_lea.vmem %s0, %s165
      %s167 = smul.u32 8, %s14
      %s168 = smul.u32 8, %s14
      %p169 = scmp.lt.s32.totalorder %s168, 15
      %s170 = scalar_select %p169, %s168, 15
      %s171 = smul.addr %s170, 4
      %s172 = scalar_lea.vmem %s3, %s171
      %s173 = smul.u32 8, %s14
      %v175 = vld [vmem:[%s166] sm:$0xf]
      %v176 = vld [vmem:[%s166 + $0x4] sm:$0xf]
      %v177 = vld [vmem:[%s166 + $0x8] sm:$0xf]
      %v178 = vld [vmem:[%s166 + $0xc] sm:$0xf]
      %v179 = vld [vmem:[%s166 + $0x10] sm:$0xf]
      %v180 = vld [vmem:[%s166 + $0x14] sm:$0xf]
      %v181 = vld [vmem:[%s166 + $0x18] sm:$0xf]
      %v182 = vld [vmem:[%s166 + $0x1c] sm:$0xf]
      %v183 = vmax.bf16 %v175, 0
      %v184 = vmax.bf16 %v176, 0
      %v185 = vmax.bf16 %v177, 0
      %v186 = vmax.bf16 %v178, 0
      %v187 = vmax.bf16 %v179, 0
      %v188 = vmax.bf16 %v180, 0
      %v189 = vmax.bf16 %v181, 0
      %v190 = vmax.bf16 %v182, 0
      %v191 = vld [vmem:[%s1] sm:$0xf]
      %v192 = vld [vmem:[%s1 + $0x4] sm:$0xf]
      %v193 = vld [vmem:[%s1 + $0x8] sm:$0xf]
      %v194 = vld [vmem:[%s1 + $0xc] sm:$0xf]
      %v195 = vld [vmem:[%s1 + $0x10] sm:$0xf]
      %v196 = vld [vmem:[%s1 + $0x14] sm:$0xf]
      %v197 = vld [vmem:[%s1 + $0x18] sm:$0xf]
      %v198 = vld [vmem:[%s1 + $0x1c] sm:$0xf]
      %v199 = vld [vmem:[%s2] sm:$0x1]
      %v201 = vlaneseq
      %v202 = vshrl.u32 %v201, 7
      %v203 = vsub.s32 0, %v202
      %v204 = vrot.slane %v199, %v203
      %v214 = vunpack.c.l.b16 %v183
      %v215 = vunpack.c.l.b16 %v184
      %v216 = vunpack.c.l.b16 %v185
      %v217 = vunpack.c.l.b16 %v186
      %v218 = vunpack.c.l.b16 %v187
      %v219 = vunpack.c.l.b16 %v188
      %v220 = vunpack.c.l.b16 %v189
      %v221 = vunpack.c.l.b16 %v190
      %v222 = vpack.c.b16 %v215, %v214
      %v223 = vpack.c.b16 %v217, %v216
      %v224 = vpack.c.b16 %v219, %v218
      %v225 = vpack.c.b16 %v221, %v220
      %v234 = vunpack.c.l.b16 %v191
      %v235 = vunpack.c.l.b16 %v192
      %v236 = vunpack.c.l.b16 %v193
      %v237 = vunpack.c.l.b16 %v194
      %v238 = vunpack.c.l.b16 %v195
      %v239 = vunpack.c.l.b16 %v196
      %v240 = vunpack.c.l.b16 %v197
      %v241 = vunpack.c.l.b16 %v198
      %v242 = vpack.c.b16 %v235, %v234
      %v243 = vpack.c.b16 %v237, %v236
      %v244 = vpack.c.b16 %v239, %v238
      %v245 = vpack.c.b16 %v241, %v240
      %vm250 = vcmask 523264
      %v252 = vsel %vm250, %v222, 0
      %v255 = vsel %vm250, %v223, 0
      %v258 = vsel %vm250, %v224, 0
      %v261 = vsel %vm250, %v225, 0
      %263 = vmatprep.subr.bf16.mxu0 0
      %264 = vmatpush1.bf16.msra.mxu0 0
      %265 = vmatprep.subr.bf16.mxu0 0
      %266 = vmatpush1.bf16.msra.mxu0 0
      %267 = vmatprep.subr.bf16.mxu0 0
      %268 = vmatpush1.bf16.msra.mxu0 0
      %269 = vmatprep.subr.bf16.mxu0 0
      %270 = vmatpush1.bf16.msra.mxu0 0
      %271 = vmatprep.subr.bf16.mxu0 0
      %272 = vmatpush1.bf16.msra.mxu0 %v245
      %273 = vmatprep.subr.bf16.mxu0 0
      %274 = vmatpush1.bf16.msra.mxu0 %v244
      %275 = vmatprep.subr.bf16.mxu0 0
      %276 = vmatpush1.bf16.msra.mxu0 %v243
      %277 = vmatprep.subr.bf16.mxu0 0
      %278 = vmatpush1.bf16.msra.mxu0 %v242
      %279 = vmatprep.subr.bf16.mxu0 0
      %280 = vmatpush2.bf16.msra.mxu0 0
      %281 = vmatprep.subr.bf16.mxu0 0
      %282 = vmatpush2.bf16.msra.mxu0 0
      %283 = vmatprep.subr.bf16.mxu0 0
      %284 = vmatpush2.bf16.msra.mxu0 0
      %285 = vmatprep.subr.bf16.mxu0 0
      %286 = vmatpush2.bf16.msra.mxu0 0
      %287 = vmatprep.subr.bf16.mxu0 0
      %288 = vmatpush2.bf16.msra.mxu0 0
      %289 = vmatprep.subr.bf16.mxu0 0
      %290 = vmatpush2.bf16.msra.mxu0 0
      %291 = vmatprep.subr.bf16.mxu0 0
      %292 = vmatpush2.bf16.msra.mxu0 0
      %293 = vmatprep.subr.bf16.mxu0 0
      %294 = vmatpush2.bf16.msra.mxu0 0
      %295 = vmatprep.mubr.bf16.mxu0 0
      %296 = vmatmul.mubr.bf16.gmra.mxu0 %v252
      %v297 = vpop.f32.mrf.mxu0
      %v298 = vadd.f32 %v204, %v297
      %v299 = vpop.f32.mrf.mxu0
      %v300 = vpop.f32.mrf.mxu0
      %v301 = vadd.f32 %v204, %v300
      %v302 = vpop.f32.mrf.mxu0
      %303 = vmatprep.mubr.bf16.mxu0 0
      %304 = vmatmul.mubr.bf16.gmra.mxu0 %v255
      %v305 = vpop.f32.mrf.mxu0
      %v306 = vadd.f32 %v204, %v305
      %v307 = vpop.f32.mrf.mxu0
      %v308 = vpop.f32.mrf.mxu0
      %v309 = vadd.f32 %v204, %v308
      %v310 = vpop.f32.mrf.mxu0
      %311 = vmatprep.mubr.bf16.mxu0 0
      %312 = vmatmul.mubr.bf16.gmra.mxu0 %v258
      %v313 = vpop.f32.mrf.mxu0
      %v314 = vadd.f32 %v204, %v313
      %v315 = vpop.f32.mrf.mxu0
      %v316 = vpop.f32.mrf.mxu0
      %v317 = vadd.f32 %v204, %v316
      %v318 = vpop.f32.mrf.mxu0
      %319 = vmatprep.mubr.bf16.mxu0 0
      %320 = vmatmul.mubr.bf16.gmra.mxu0 %v261
      %v321 = vpop.f32.mrf.mxu0
      %v322 = vadd.f32 %v204, %v321
      %v323 = vpop.f32.mrf.mxu0
      %v324 = vpop.f32.mrf.mxu0
      %v325 = vadd.f32 %v204, %v324
      %v326 = vpop.f32.mrf.mxu0
      %327 = vdwg.mxu0
      %v328 = vpack.c.bf16 %v301, %v298
      %v329 = vpack.c.bf16 %v309, %v306
      %v330 = vpack.c.bf16 %v317, %v314
      %v331 = vpack.c.bf16 %v325, %v322
      %v336 = vunpack.c.l.b16 %v328
      %v337 = vunpack.c.h.b16 %v328
      %v338 = vunpack.c.l.b16 %v329
      %v339 = vunpack.c.h.b16 %v329
      %v340 = vunpack.c.l.b16 %v330
      %v341 = vunpack.c.h.b16 %v330
      %v342 = vunpack.c.l.b16 %v331
      %v343 = vunpack.c.h.b16 %v331
      %v344 = vpack.c.b16 %v336, %v336
      %v345 = vpack.c.b16 %v337, %v337
      %v346 = vpack.c.b16 %v338, %v338
      %v347 = vpack.c.b16 %v339, %v339
      %v348 = vpack.c.b16 %v340, %v340
      %v349 = vpack.c.b16 %v341, %v341
      %v350 = vpack.c.b16 %v342, %v342
      %v351 = vpack.c.b16 %v343, %v343
      %360 = vst [vmem:[%s172] sm:$0xf] %v344
      %361 = vst [vmem:[%s172 + $0x4] sm:$0xf] %v345
      %362 = vst [vmem:[%s172 + $0x8] sm:$0xf] %v346
      %363 = vst [vmem:[%s172 + $0xc] sm:$0xf] %v347
      %364 = vst [vmem:[%s172 + $0x10] sm:$0xf] %v348
      %365 = vst [vmem:[%s172 + $0x14] sm:$0xf] %v349
      %366 = vst [vmem:[%s172 + $0x18] sm:$0xf] %v350
      %367 = vst [vmem:[%s172 + $0x1c] sm:$0xf] %v351
      %s368 = smul.u32 8, %s14
      %p369 = scmp.lt.s32.totalorder %s368, 15
      %s370 = scalar_select %p369, %s368, 15
      %s371 = smul.addr %s370, 4
      %s372 = scalar_lea.vmem %s3, %s371
      // Predicated region
      $region33: #{bottleneck_forward.6} parent=31 // pred_check
        %p373 = pneg %p100
      $region34: #{bottleneck_forward.6} parent=31 // pred_check_branch
        %375 = sbr.rel (%p373) target = $region36
      $region35: #{bottleneck_forward.6} parent=31 // pred_region
        %s376 = smul.u32 8, %s14
      $region36: #{bottleneck_forward.6} parent=31 // pred_fallthru
        _
    $region32: #{bottleneck_forward.6} parent=5 // pred_fallthru
      _
    %p377 = scmp.le.s32.totalorder 2, %s9
    // Predicated region
    $region37: #{bottleneck_forward.6} parent=5 // pred_check
      %p378 = pneg %p377
    $region38: #{bottleneck_forward.6} parent=5 // pred_check_branch
      %380 = sbr.rel (%p378) target = $region40
    $region39: #{bottleneck_forward.6} parent=5 // pred_region
      %s381 = ssub.s32 %s9, 2
      // Predicated region
      $region41: #{bottleneck_forward.6} parent=39 // pred_check
        %p382 = pneg %p106
      $region42: #{bottleneck_forward.6} parent=39 // pred_check_branch
        %384 = sbr.rel (%p382) target = $region44
      $region43: #{bottleneck_forward.6} parent=39 // pred_region
        %s385 = smul.u32 8, %s15
        %p386 = scmp.lt.s32.totalorder %s385, 15
        %s387 = scalar_select %p386, %s385, 15
        %s388 = smul.addr %s387, 4
        %s389 = scalar_lea.vmem %s3, %s388
      $region44: #{bottleneck_forward.6} parent=39 // pred_fallthru
        _
    $region40: #{bottleneck_forward.6} parent=5 // pred_fallthru
      _
  $region6: #{bottleneck_forward.6} parent=0 // loop_footer
    %s13 = sadd.s32 1, %s9
  $region7: #{bottleneck_forward.6} parent=0 // loop_footer_branch
    %8 = sbr.rel target = $region3
  $region8: #{bottleneck_forward.6} parent=0 // loop_exit
    _

// kernel: bottleneck_forward.5
$region0: #{bottleneck_forward.5}
  #allocation0 [shape = 'u32[]', space=smem, size = 0x4, offset = 0x4, fixed_abs, tag = 'smem constant byte address 0x4 - core index']
  #allocation1 [shape = 'u32[144,128]{1,0:T(1,128)}', space=vmem, size = 0x12000, scoped, tag = 'internal scratch']
  %s0 = inlined_call_operand.vmem [shape: bf16[2,2,2,9,9,32], index: 0, kind: input, shape index: {}]
  %s1 = inlined_call_operand.vmem [shape: bf16[9,32,32], index: 1, kind: input, shape index: {}]
  %s2 = inlined_call_operand.vmem [shape: f32[1,32], index: 2, kind: input, shape index: {}]
  %s3 = inlined_call_operand.vmem [shape: bf16[2,64,32], index: 3, kind: output, shape index: {}]
  %s4 = sld [smem:[#allocation0]]
  $region45: #{bottleneck_forward.5} parent=0
    _
  %s6 = ssub.s32 1, %s4
  %s7 = scalar_select 0, %s6, %s4
  loop: start=0, step=1, limit=4
  $region2: #{bottleneck_forward.5} parent=0 // loop_pre_header
    _
  $region3: #{bottleneck_forward.5} parent=0 // loop_header
    %s9 = sphi 0, %s13
    %p10 = scmp.ge.s32.totalorder %s9, 4
    %s19 = sphi 0, %s21
    %s22 = sphi 0, %s19
    %s23 = sphi 0, %s22
    %s39 = sphi 0, %s23
    %s43 = sphi 0, %s43
    %s45 = sphi 0, %s43
    %s46 = sphi 0, %s45
    %s60 = sphi 0, %s46
    %s64 = sphi 0, %s64
    %s66 = sphi 0, %s64
    %s67 = sphi 0, %s66
    %s81 = sphi 0, %s67
    %s87 = sphi 0, %s89
    %s90 = sphi 0, %s87
    %s91 = sphi 0, %s90
    %s107 = sphi 0, %s91
  $region4: #{bottleneck_forward.5} parent=0 // loop_header_branch
    %12 = sbr.rel (%p10) target = $region8
  $region5: #{bottleneck_forward.5} parent=0 // loop_body
    %s14 = ssub.s32 %s9, 1
    %s15 = ssub.s32 %s9, 2
    %s16 = sadd.s32 %s9, 1
    %s17 = ssub.s32 %s9, %s16
    %p18 = scmp.eq.s32.totalorder %s17, 0
    %s20 = sadd.s32 %s19, 1
    %s21 = scalar_select %p18, %s19, %s20
    %p24 = pneg %p18
    %p25 = scmp.eq.s32.totalorder %s9, 1
    %p26 = por %p24, %p25
    %p27 = scmp.ne.s32.totalorder %s19, %s22
    %p28 = scmp.eq.s32.totalorder %s9, 0
    %p29 = por %p27, %p28
    %p30 = scmp.ne.s32.totalorder %s19, %s22
    %p31 = scmp.eq.s32.totalorder %s14, 1
    %p32 = por %p30, %p31
    %p33 = scmp.ne.s32.totalorder %s22, %s23
    %p34 = scmp.eq.s32.totalorder %s14, 0
    %p35 = por %p33, %p34
    %p36 = scmp.ne.s32.totalorder %s22, %s23
    %p37 = scmp.eq.s32.totalorder %s15, 1
    %p38 = por %p36, %p37
    %p40 = scmp.ne.s32.totalorder %s23, %s39
    %p41 = scmp.eq.s32.totalorder %s15, 0
    %p42 = por %p40, %p41
    %s44 = sadd.s32 %s43, 1
    %p47 = scmp.eq.s32.totalorder %s9, 1
    %p48 = scmp.ne.s32.totalorder %s43, %s45
    %p49 = scmp.eq.s32.totalorder %s9, 0
    %p50 = por %p48, %p49
    %p51 = scmp.ne.s32.totalorder %s43, %s45
    %p52 = scmp.eq.s32.totalorder %s14, 1
    %p53 = por %p51, %p52
    %p54 = scmp.ne.s32.totalorder %s45, %s46
    %p55 = scmp.eq.s32.totalorder %s14, 0
    %p56 = por %p54, %p55
    %p57 = scmp.ne.s32.totalorder %s45, %s46
    %p58 = scmp.eq.s32.totalorder %s15, 1
    %p59 = por %p57, %p58
    %p61 = scmp.ne.s32.totalorder %s46, %s60
    %p62 = scmp.eq.s32.totalorder %s15, 0
    %p63 = por %p61, %p62
    %s65 = sadd.s32 %s64, 1
    %p68 = scmp.eq.s32.totalorder %s9, 1
    %p69 = scmp.ne.s32.totalorder %s64, %s66
    %p70 = scmp.eq.s32.totalorder %s9, 0
    %p71 = por %p69, %p70
    %p72 = scmp.ne.s32.totalorder %s64, %s66
    %p73 = scmp.eq.s32.totalorder %s14, 1
    %p74 = por %p72, %p73
    %p75 = scmp.ne.s32.totalorder %s66, %s67
    %p76 = scmp.eq.s32.totalorder %s14, 0
    %p77 = por %p75, %p76
    %p78 = scmp.ne.s32.totalorder %s66, %s67
    %p79 = scmp.eq.s32.totalorder %s15, 1
    %p80 = por %p78, %p79
    %p82 = scmp.ne.s32.totalorder %s67, %s81
    %p83 = scmp.eq.s32.totalorder %s15, 0
    %p84 = por %p82, %p83
    %s85 = ssub.s32 %s9, %s16
    %p86 = scmp.eq.s32.totalorder %s85, 0
    %s88 = sadd.s32 %s87, 1
    %s89 = scalar_select %p86, %s87, %s88
    %p92 = pneg %p86
    %p93 = scmp.eq.s32.totalorder %s9, 1
    %p94 = por %p92, %p93
    %p95 = scmp.ne.s32.totalorder %s87, %s90
    %p96 = scmp.eq.s32.totalorder %s9, 0
    %p97 = por %p95, %p96
    %p98 = scmp.ne.s32.totalorder %s87, %s90
    %p99 = scmp.eq.s32.totalorder %s14, 1
    %p100 = por %p98, %p99
    %p101 = scmp.ne.s32.totalorder %s90, %s91
    %p102 = scmp.eq.s32.totalorder %s14, 0
    %p103 = por %p101, %p102
    %p104 = scmp.ne.s32.totalorder %s90, %s91
    %p105 = scmp.eq.s32.totalorder %s15, 1
    %p106 = por %p104, %p105
    %p108 = scmp.ne.s32.totalorder %s91, %s107
    %p109 = scmp.eq.s32.totalorder %s15, 0
    %p110 = por %p108, %p109
    %p111 = scmp.le.s32.totalorder 1, %s9
    %p112 = scmp.lt.s32.totalorder %s9, 3
    %p113 = pnand %p111, %p112
    %p114 = pneg %p113
    // Predicated region
    $region9: #{bottleneck_forward.5} parent=5 // pred_check
      _
    $region10: #{bottleneck_forward.5} parent=5 // pred_check_branch
      %116 = sbr.rel (%p113) target = $region12
    $region11: #{bottleneck_forward.5} parent=5 // pred_region
      %s117 = ssub.s32 %s9, 1
      // Predicated region
      $region13: #{bottleneck_forward.5} parent=11 // pred_check
        %p118 = pneg %p56
      $region14: #{bottleneck_forward.5} parent=11 // pred_check_branch
        %120 = sbr.rel (%p118) target = $region16
      $region15: #{bottleneck_forward.5} parent=11 // pred_region
        _
      $region16: #{bottleneck_forward.5} parent=11 // pred_fallthru
        _
      // Predicated region
      $region17: #{bottleneck_forward.5} parent=11 // pred_check
        %p121 = pneg %p77
      $region18: #{bottleneck_forward.5} parent=11 // pred_check_branch
        %123 = sbr.rel (%p121) target = $region20
      $region19: #{bottleneck_forward.5} parent=11 // pred_region
        _
      $region20: #{bottleneck_forward.5} parent=11 // pred_fallthru
        _
    $region12: #{bottleneck_forward.5} parent=5 // pred_fallthru
      _
    %p124 = scmp.lt.s32.totalorder %s9, 2
    // Predicated region
    $region21: #{bottleneck_forward.5} parent=5 // pred_check
      %p125 = pneg %p124
    $region22: #{bottleneck_forward.5} parent=5 // pred_check_branch
      %127 = sbr.rel (%p125) target = $region24
    $region23: #{bottleneck_forward.5} parent=5 // pred_region
      // Predicated region
      $region25: #{bottleneck_forward.5} parent=23 // pred_check
        %p128 = pneg %p29
      $region26: #{bottleneck_forward.5} parent=23 // pred_check_branch
        %130 = sbr.rel (%p128) target = $region28
      $region27: #{bottleneck_forward.5} parent=23 // pred_region
        %p131 = scmp.lt.s32.totalorder %s9, 1
        %s132 = scalar_select %p131, %s9, 1
        %s133 = smul.addr %s132, 72
        %s134 = smul.addr %s133, 4
        %s135 = scalar_lea.vmem %s0, %s134
      $region28: #{bottleneck_forward.5} parent=23 // pred_fallthru
        _
    $region24: #{bottleneck_forward.5} parent=5 // pred_fallthru
      _
    %p136 = scmp.le.s32.totalorder 1, %s9
    %p137 = scmp.lt.s32.totalorder %s9, 3
    %p138 = pnand %p136, %p137
    %p139 = pneg %p138
    // Predicated region
    $region29: #{bottleneck_forward.5} parent=5 // pred_check
      _
    $region30: #{bottleneck_forward.5} parent=5 // pred_check_branch
      %141 = sbr.rel (%p138) target = $region32
    $region31: #{bottleneck_forward.5} parent=5 // pred_region
      %s142 = ssub.s32 %s9, 1
      %p143 = scmp.lt.s32.totalorder %s14, 1
      %s144 = scalar_select %p143, %s14, 1
      %s145 = smul.addr %s144, 72
      %s146 = smul.addr %s145, 4
      %s147 = scalar_lea.vmem %s0, %s146
      %p148 = pneg %p35
      %p149 = pneg %p32
      %p150 = pneg %p56
      %p151 = pneg %p53
      %p152 = pneg %p77
      %p153 = pneg %p74
      %p154 = pneg %p103
      %p155 = pneg %p100
      %p156 = scmp.lt.s32.totalorder %s14, 1
      %s157 = scalar_select %p156, %s14, 1
      %s158 = smul.addr %s157, 8
      %s159 = smul.addr %s158, 4
      %s160 = scalar_lea.vmem %s3, %s159
      %p161 = scmp.lt.s32.totalorder %s14, 1
      %s162 = scalar_select %p161, %s14, 1
      %s163 = smul.addr %s162, 72
      %s164 = smul.addr %s163, 4
      %s165 = scalar_lea.vmem %s0, %s164
      %p166 = scmp.lt.s32.totalorder %s14, 1
      %s167 = scalar_select %p166, %s14, 1
      %s168 = smul.addr %s167, 8
      %s169 = smul.addr %s168, 4
      %s170 = scalar_lea.vmem %s3, %s169
      %v172 = vld [vmem:[%s165] sm:$0xf]
      %v173 = vld [vmem:[%s165 + $0x8] sm:$0xf]
      %v174 = vld [vmem:[%s165 + $0x10] sm:$0xf]
      %v175 = vld [vmem:[%s165 + $0x18] sm:$0xf]
      %v176 = vld [vmem:[%s165 + $0x20] sm:$0xf]
      %v177 = vld [vmem:[%s165 + $0x28] sm:$0xf]
      %v178 = vld [vmem:[%s165 + $0x30] sm:$0xf]
      %v179 = vld [vmem:[%s165 + $0x38] sm:$0xf]
      %v180 = vld [vmem:[%s1] sm:$0xf]
      %v181 = vld [vmem:[%s1 + $0x4] sm:$0xf]
      %v182 = vld [vmem:[%s1 + $0x8] sm:$0xf]
      %v183 = vld [vmem:[%s1 + $0xc] sm:$0xf]
      %s184 = scalar_lea.vmem %s165, 72
      %v185 = vld [vmem:[%s184] sm:$0xf]
      %v186 = vld [vmem:[%s184 + $0x8] sm:$0xf]
      %v187 = vld [vmem:[%s184 + $0x10] sm:$0xf]
      %v188 = vld [vmem:[%s184 + $0x18] sm:$0xf]
      %v189 = vld [vmem:[%s184 + $0x20] sm:$0xf]
      %v190 = vld [vmem:[%s184 + $0x28] sm:$0xf]
      %v191 = vld [vmem:[%s184 + $0x30] sm:$0xf]
      %v192 = vld [vmem:[%s184 + $0x38] sm:$0xf]
      %s193 = scalar_lea.vmem %s1, 16
      %v194 = vld [vmem:[%s193] sm:$0xf]
      %v195 = vld [vmem:[%s193 + $0x4] sm:$0xf]
      %v196 = vld [vmem:[%s193 + $0x8] sm:$0xf]
      %v197 = vld [vmem:[%s193 + $0xc] sm:$0xf]
      %v206 = vunpack.c.l.b16 %v185
      %v207 = vunpack.c.l.b16 %v186
      %v208 = vunpack.c.l.b16 %v187
      %v209 = vunpack.c.l.b16 %v188
      %v210 = vunpack.c.l.b16 %v189
      %v211 = vunpack.c.l.b16 %v190
      %v212 = vunpack.c.l.b16 %v191
      %v213 = vunpack.c.l.b16 %v192
      %v214 = vpack.c.b16 %v207, %v206
      %v215 = vpack.c.b16 %v209, %v208
      %v216 = vpack.c.b16 %v211, %v210
      %v217 = vpack.c.b16 %v213, %v212
      %v222 = vunpack.c.l.b16 %v194
      %v223 = vunpack.c.l.b16 %v195
      %v224 = vunpack.c.l.b16 %v196
      %v225 = vunpack.c.l.b16 %v197
      %v226 = vpack.c.b16 %v223, %v222
      %v227 = vpack.c.b16 %v225, %v224
      %vm230 = vcmask 261120
      %v232 = vsel %vm230, %v214, 0
      %v235 = vsel %vm230, %v215, 0
      %v238 = vsel %vm230, %v216, 0
      %v241 = vsel %vm230, %v217, 0
      %243 = vmatprep.subr.bf16.mxu0 0
      %244 = vmatpush1.bf16.msra.mxu0 0
      %245 = vmatprep.subr.bf16.mxu0 0
      %246 = vmatpush1.bf16.msra.mxu0 0
      %247 = vmatprep.subr.bf16.mxu0 0
      %248 = vmatpush1.bf16.msra.mxu0 0
      %249 = vmatprep.subr.bf16.mxu0 0
      %250 = vmatpush1.bf16.msra.mxu0 0
      %251 = vmatprep.subr.bf16.mxu0 0
      %252 = vmatpush1.bf16.msra.mxu0 0
      %253 = vmatprep.subr.bf16.mxu0 0
      %254 = vmatpush1.bf16.msra.mxu0 0
      %255 = vmatprep.subr.bf16.mxu0 0
      %256 = vmatpush1.bf16.msra.mxu0 %v227
      %257 = vmatprep.subr.bf16.mxu0 0
      %258 = vmatpush1.bf16.msra.mxu0 %v226
      %259 = vmatprep.subr.bf16.mxu0 0
      %260 = vmatpush2.bf16.msra.mxu0 0
      %261 = vmatprep.subr.bf16.mxu0 0
      %262 = vmatpush2.bf16.msra.mxu0 0
      %263 = vmatprep.subr.bf16.mxu0 0
      %264 = vmatpush2.bf16.msra.mxu0 0
      %265 = vmatprep.subr.bf16.mxu0 0
      %266 = vmatpush2.bf16.msra.mxu0 0
      %267 = vmatprep.subr.bf16.mxu0 0
      %268 = vmatpush2.bf16.msra.mxu0 0
      %269 = vmatprep.subr.bf16.mxu0 0
      %270 = vmatpush2.bf16.msra.mxu0 0
      %271 = vmatprep.subr.bf16.mxu0 0
      %272 = vmatpush2.bf16.msra.mxu0 0
      %273 = vmatprep.subr.bf16.mxu0 0
      %274 = vmatpush2.bf16.msra.mxu0 0
      %275 = vmatprep.mubr.bf16.mxu0 0
      %276 = vmatmul.mubr.bf16.gmra.mxu0 %v232
      %v277 = vpop.f32.mrf.mxu0
      %v278 = vadd.f32 0.0, %v277
      %v279 = vpop.f32.mrf.mxu0
      %v280 = vpop.f32.mrf.mxu0
      %v281 = vadd.f32 0.0, %v280
      %v282 = vpop.f32.mrf.mxu0
      %283 = vmatprep.mubr.bf16.mxu0 0
      %284 = vmatmul.mubr.bf16.gmra.mxu0 %v235
      %v285 = vpop.f32.mrf.mxu0
      %v286 = vadd.f32 0.0, %v285
      %v287 = vpop.f32.mrf.mxu0
      %v288 = vpop.f32.mrf.mxu0
      %v289 = vadd.f32 0.0, %v288
      %v290 = vpop.f32.mrf.mxu0
      %291 = vmatprep.mubr.bf16.mxu0 0
      %292 = vmatmul.mubr.bf16.gmra.mxu0 %v238
      %v293 = vpop.f32.mrf.mxu0
      %v294 = vadd.f32 0.0, %v293
      %v295 = vpop.f32.mrf.mxu0
      %v296 = vpop.f32.mrf.mxu0
      %v297 = vadd.f32 0.0, %v296
      %v298 = vpop.f32.mrf.mxu0
      %299 = vmatprep.mubr.bf16.mxu0 0
      %300 = vmatmul.mubr.bf16.gmra.mxu0 %v241
      %v301 = vpop.f32.mrf.mxu0
      %v302 = vadd.f32 0.0, %v301
      %v303 = vpop.f32.mrf.mxu0
      %v304 = vpop.f32.mrf.mxu0
      %v305 = vadd.f32 0.0, %v304
      %v306 = vpop.f32.mrf.mxu0
      %307 = vdwg.mxu0
      %v316 = vunpack.c.l.b16 %v172
      %v317 = vunpack.c.l.b16 %v173
      %v318 = vunpack.c.l.b16 %v174
      %v319 = vunpack.c.l.b16 %v175
      %v320 = vunpack.c.l.b16 %v176
      %v321 = vunpack.c.l.b16 %v177
      %v322 = vunpack.c.l.b16 %v178
      %v323 = vunpack.c.l.b16 %v179
      %v324 = vpack.c.b16 %v317, %v316
      %v325 = vpack.c.b16 %v319, %v318
      %v326 = vpack.c.b16 %v321, %v320
      %v327 = vpack.c.b16 %v323, %v322
      %v332 = vunpack.c.l.b16 %v180
      %v333 = vunpack.c.l.b16 %v181
      %v334 = vunpack.c.l.b16 %v182
      %v335 = vunpack.c.l.b16 %v183
      %v336 = vpack.c.b16 %v333, %v332
      %v337 = vpack.c.b16 %v335, %v334
      %v341 = vsel %vm230, %v324, 0
      %v344 = vsel %vm230, %v325, 0
      %v347 = vsel %vm230, %v326, 0
      %v350 = vsel %vm230, %v327, 0
      %352 = vmatprep.subr.bf16.mxu0 0
      %353 = vmatpush1.bf16.msra.mxu0 0
      %354 = vmatprep.subr.bf16.mxu0 0
      %355 = vmatpush1.bf16.msra.mxu0 0
      %356 = vmatprep.subr.bf16.mxu0 0
      %357 = vmatpush1.bf16.msra.mxu0 0
      %358 = vmatprep.subr.bf16.mxu0 0
      %359 = vmatpush1.bf16.msra.mxu0 0
      %360 = vmatprep.subr.bf16.mxu0 0
      %361 = vmatpush1.bf16.msra.mxu0 0
      %362 = vmatprep.subr.bf16.mxu0 0
      %363 = vmatpush1.bf16.msra.mxu0 0
      %364 = vmatprep.subr.bf16.mxu0 0
      %365 = vmatpush1.bf16.msra.mxu0 %v337
      %366 = vmatprep.subr.bf16.mxu0 0
      %367 = vmatpush1.bf16.msra.mxu0 %v336
      %368 = vmatprep.subr.bf16.mxu0 0
      %369 = vmatpush2.bf16.msra.mxu0 0
      %370 = vmatprep.subr.bf16.mxu0 0
      %371 = vmatpush2.bf16.msra.mxu0 0
      %372 = vmatprep.subr.bf16.mxu0 0
      %373 = vmatpush2.bf16.msra.mxu0 0
      %374 = vmatprep.subr.bf16.mxu0 0
      %375 = vmatpush2.bf16.msra.mxu0 0
      %376 = vmatprep.subr.bf16.mxu0 0
      %377 = vmatpush2.bf16.msra.mxu0 0
      %378 = vmatprep.subr.bf16.mxu0 0
      %379 = vmatpush2.bf16.msra.mxu0 0
      %380 = vmatprep.subr.bf16.mxu0 0
      %381 = vmatpush2.bf16.msra.mxu0 0
      %382 = vmatprep.subr.bf16.mxu0 0
      %383 = vmatpush2.bf16.msra.mxu0 0
      %384 = vmatprep.mubr.bf16.mxu0 0
      %385 = vmatmul.mubr.bf16.gmra.mxu0 %v341
      %v386 = vpop.f32.mrf.mxu0
      %v387 = vadd.f32 %v278, %v386
      %v388 = vpop.f32.mrf.mxu0
      %v389 = vpop.f32.mrf.mxu0
      %v390 = vadd.f32 %v281, %v389
      %v391 = vpop.f32.mrf.mxu0
      %392 = vmatprep.mubr.bf16.mxu0 0
      %393 = vmatmul.mubr.bf16.gmra.mxu0 %v344
      %v394 = vpop.f32.mrf.mxu0
      %v395 = vadd.f32 %v286, %v394
      %v396 = vpop.f32.mrf.mxu0
      %v397 = vpop.f32.mrf.mxu0
      %v398 = vadd.f32 %v289, %v397
      %v399 = vpop.f32.mrf.mxu0
      %400 = vmatprep.mubr.bf16.mxu0 0
      %401 = vmatmul.mubr.bf16.gmra.mxu0 %v347
      %v402 = vpop.f32.mrf.mxu0
      %v403 = vadd.f32 %v294, %v402
      %v404 = vpop.f32.mrf.mxu0
      %v405 = vpop.f32.mrf.mxu0
      %v406 = vadd.f32 %v297, %v405
      %v407 = vpop.f32.mrf.mxu0
      %408 = vmatprep.mubr.bf16.mxu0 0
      %409 = vmatmul.mubr.bf16.gmra.mxu0 %v350
      %v410 = vpop.f32.mrf.mxu0
      %v411 = vadd.f32 %v302, %v410
      %v412 = vpop.f32.mrf.mxu0
      %v413 = vpop.f32.mrf.mxu0
      %v414 = vadd.f32 %v305, %v413
      %v415 = vpop.f32.mrf.mxu0
      %416 = vdwg.mxu0
      %v417 = vld [vmem:[%s165] sm:$0xf]
      %v418 = vld [vmem:[%s165 + $0x4] sm:$0x1]
      %v419 = vld [vmem:[%s165 + $0x8] sm:$0xf]
      %v420 = vld [vmem:[%s165 + $0xc] sm:$0x1]
      %v421 = vld [vmem:[%s165 + $0x10] sm:$0xf]
      %v422 = vld [vmem:[%s165 + $0x14] sm:$0x1]
      %v423 = vld [vmem:[%s165 + $0x18] sm:$0xf]
      %v424 = vld [vmem:[%s165 + $0x1c] sm:$0x1]
      %v425 = vld [vmem:[%s165 + $0x20] sm:$0xf]
      %v426 = vld [vmem:[%s165 + $0x24] sm:$0x1]
      %v427 = vld [vmem:[%s165 + $0x28] sm:$0xf]
      %v428 = vld [vmem:[%s165 + $0x2c] sm:$0x1]
      %v429 = vld [vmem:[%s165 + $0x30] sm:$0xf]
      %v430 = vld [vmem:[%s165 + $0x34] sm:$0x1]
      %v431 = vld [vmem:[%s165 + $0x38] sm:$0xf]
      %v432 = vld [vmem:[%s165 + $0x3c] sm:$0x1]
      %vm433 = vsmask.f32 3328
      %vm434 = vsmask.f32 7440
      %vm435 = vmor %vm433, %vm434
      %v437 = vshrl.u32 %v417, 16
      %v439 = vrot.slane %v437, 4
      %v440 = vshll.u32 %v417, 16
      %v442 = vrot.slane %v440, 5
      %v443 = vor.u32 %v439, %v442
      %v444 = vrot.slane %v443, 4
      %v446 = vshll.u32 %v418, 16
      %v448 = vrot.slane %v446, 5
      %v449 = vsel %vm435, %v444, %v448
      %v451 = vshrl.u32 %v419, 16
      %v453 = vrot.slane %v451, 4
      %v454 = vshll.u32 %v419, 16
      %v456 = vrot.slane %v454, 5
      %v457 = vor.u32 %v453, %v456
      %v458 = vrot.slane %v457, 4
      %v460 = vshll.u32 %v420, 16
      %v462 = vrot.slane %v460, 5
      %v463 = vsel %vm435, %v458, %v462
      %v465 = vshrl.u32 %v421, 16
      %v467 = vrot.slane %v465, 4
      %v468 = vshll.u32 %v421, 16
      %v470 = vrot.slane %v468, 5
      %v471 = vor.u32 %v467, %v470
      %v472 = vrot.slane %v471, 4
      %v474 = vshll.u32 %v422, 16
      %v476 = vrot.slane %v474, 5
      %v477 = vsel %vm435, %v472, %v476
      %v479 = vshrl.u32 %v423, 16
      %v481 = vrot.slane %v479, 4
      %v482 = vshll.u32 %v423, 16
      %v484 = vrot.slane %v482, 5
      %v485 = vor.u32 %v481, %v484
      %v486 = vrot.slane %v485, 4
      %v488 = vshll.u32 %v424, 16
      %v490 = vrot.slane %v488, 5
      %v491 = vsel %vm435, %v486, %v490
      %v493 = vshrl.u32 %v425, 16
      %v495 = vrot.slane %v493, 4
      %v496 = vshll.u32 %v425, 16
      %v498 = vrot.slane %v496, 5
      %v499 = vor.u32 %v495, %v498
      %v500 = vrot.slane %v499, 4
      %v502 = vshll.u32 %v426, 16
      %v504 = vrot.slane %v502, 5
      %v505 = vsel %vm435, %v500, %v504
      %v507 = vshrl.u32 %v427, 16
      %v509 = vrot.slane %v507, 4
      %v510 = vshll.u32 %v427, 16
      %v512 = vrot.slane %v510, 5
      %v513 = vor.u32 %v509, %v512
      %v514 = vrot.slane %v513, 4
      %v516 = vshll.u32 %v428, 16
      %v518 = vrot.slane %v516, 5
      %v519 = vsel %vm435, %v514, %v518
      %v521 = vshrl.u32 %v429, 16
      %v523 = vrot.slane %v521, 4
      %v524 = vshll.u32 %v429, 16
      %v526 = vrot.slane %v524, 5
      %v527 = vor.u32 %v523, %v526
      %v528 = vrot.slane %v527, 4
      %v530 = vshll.u32 %v430, 16
      %v532 = vrot.slane %v530, 5
      %v533 = vsel %vm435, %v528, %v532
      %v535 = vshrl.u32 %v431, 16
      %v537 = vrot.slane %v535, 4
      %v538 = vshll.u32 %v431, 16
      %v540 = vrot.slane %v538, 5
      %v541 = vor.u32 %v537, %v540
      %v542 = vrot.slane %v541, 4
      %v544 = vshll.u32 %v432, 16
      %v546 = vrot.slane %v544, 5
      %v547 = vsel %vm435, %v542, %v546
      %s548 = scalar_lea.vmem %s1, 32
      %v549 = vld [vmem:[%s548] sm:$0xf]
      %v550 = vld [vmem:[%s548 + $0x4] sm:$0xf]
      %v551 = vld [vmem:[%s548 + $0x8] sm:$0xf]
      %v552 = vld [vmem:[%s548 + $0xc] sm:$0xf]
      %v553 = vunpack.c.l.b16 %v449
      %v554 = vunpack.c.l.b16 %v463
      %v555 = vunpack.c.l.b16 %v477
      %v556 = vunpack.c.l.b16 %v491
      %v557 = vunpack.c.l.b16 %v505
      %v558 = vunpack.c.l.b16 %v519
      %v559 = vunpack.c.l.b16 %v533
      %v560 = vunpack.c.l.b16 %v547
      %v561 = vpack.c.b16 %v554, %v553
      %v562 = vpack.c.b16 %v556, %v555
      %v563 = vpack.c.b16 %v558, %v557
      %v564 = vpack.c.b16 %v560, %v559
      %v569 = vunpack.c.l.b16 %v549
      %v570 = vunpack.c.l.b16 %v550
      %v571 = vunpack.c.l.b16 %v551
      %v572 = vunpack.c.l.b16 %v552
      %v573 = vpack.c.b16 %v570, %v569
      %v574 = vpack.c.b16 %v572, %v571
      %v578 = vsel %vm230, %v561, 0
      %v581 = vsel %vm230, %v562, 0
      %v584 = vsel %vm230, %v563, 0
      %v587 = vsel %vm230, %v564, 0
      %589 = vmatprep.subr.bf16.mxu0 0
      %590 = vmatpush1.bf16.msra.mxu0 0
      %591 = vmatprep.subr.bf16.mxu0 0
      %592 = vmatpush1.bf16.msra.mxu0 0
      %593 = vmatprep.subr.bf16.mxu0 0
      %594 = vmatpush1.bf16.msra.mxu0 0
      %595 = vmatprep.subr.bf16.mxu0 0
      %596 = vmatpush1.bf16.msra.mxu0 0
      %597 = vmatprep.subr.bf16.mxu0 0
      %598 = vmatpush1.bf16.msra.mxu0 0
      %599 = vmatprep.subr.bf16.mxu0 0
      %600 = vmatpush1.bf16.msra.mxu0 0
      %601 = vmatprep.subr.bf16.mxu0 0
      %602 = vmatpush1.bf16.msra.mxu0 %v574
      %603 = vmatprep.subr.bf16.mxu0 0
      %604 = vmatpush1.bf16.msra.mxu0 %v573
      %605 = vmatprep.subr.bf16.mxu0 0
      %606 = vmatpush2.bf16.msra.mxu0 0
      %607 = vmatprep.subr.bf16.mxu0 0
      %608 = vmatpush2.bf16.msra.mxu0 0
      %609 = vmatprep.subr.bf16.mxu0 0
      %610 = vmatpush2.bf16.msra.mxu0 0
      %611 = vmatprep.subr.bf16.mxu0 0
      %612 = vmatpush2.bf16.msra.mxu0 0
      %613 = vmatprep.subr.bf16.mxu0 0
      %614 = vmatpush2.bf16.msra.mxu0 0
      %615 = vmatprep.subr.bf16.mxu0 0
      %616 = vmatpush2.bf16.msra.mxu0 0
      %617 = vmatprep.subr.bf16.mxu0 0
      %618 = vmatpush2.bf16.msra.mxu0 0
      %619 = vmatprep.subr.bf16.mxu0 0
      %620 = vmatpush2.bf16.msra.mxu0 0
      %621 = vmatprep.mubr.bf16.mxu0 0
      %622 = vmatmul.mubr.bf16.gmra.mxu0 %v578
      %v623 = vpop.f32.mrf.mxu0
      %v624 = vadd.f32 0.0, %v623
      %v625 = vpop.f32.mrf.mxu0
      %v626 = vpop.f32.mrf.mxu0
      %v627 = vadd.f32 0.0, %v626
      %v628 = vpop.f32.mrf.mxu0
      %629 = vmatprep.mubr.bf16.mxu0 0
      %630 = vmatmul.mubr.bf16.gmra.mxu0 %v581
      %v631 = vpop.f32.mrf.mxu0
      %v632 = vadd.f32 0.0, %v631
      %v633 = vpop.f32.mrf.mxu0
      %v634 = vpop.f32.mrf.mxu0
      %v635 = vadd.f32 0.0, %v634
      %v636 = vpop.f32.mrf.mxu0
      %637 = vmatprep.mubr.bf16.mxu0 0
      %638 = vmatmul.mubr.bf16.gmra.mxu0 %v584
      %v639 = vpop.f32.mrf.mxu0
      %v640 = vadd.f32 0.0, %v639
      %v641 = vpop.f32.mrf.mxu0
      %v642 = vpop.f32.mrf.mxu0
      %v643 = vadd.f32 0.0, %v642
      %v644 = vpop.f32.mrf.mxu0
      %645 = vmatprep.mubr.bf16.mxu0 0
      %646 = vmatmul.mubr.bf16.gmra.mxu0 %v587
      %v647 = vpop.f32.mrf.mxu0
      %v648 = vadd.f32 0.0, %v647
      %v649 = vpop.f32.mrf.mxu0
      %v650 = vpop.f32.mrf.mxu0
      %v651 = vadd.f32 0.0, %v650
      %v652 = vpop.f32.mrf.mxu0
      %653 = vdwg.mxu0
      %v654 = vadd.f32 %v387, %v624
      %v655 = vadd.f32 %v390, %v627
      %v656 = vadd.f32 %v395, %v632
      %v657 = vadd.f32 %v398, %v635
      %v658 = vadd.f32 %v403, %v640
      %v659 = vadd.f32 %v406, %v643
      %v660 = vadd.f32 %v411, %v648
      %v661 = vadd.f32 %v414, %v651
      %s662 = scalar_lea.vmem %s165, 144
      %v663 = vld [vmem:[%s662] sm:$0xf]
      %v664 = vld [vmem:[%s662 + $0x8] sm:$0xf]
      %v665 = vld [vmem:[%s662 + $0x10] sm:$0xf]
      %v666 = vld [vmem:[%s662 + $0x18] sm:$0xf]
      %v667 = vld [vmem:[%s662 + $0x20] sm:$0xf]
      %v668 = vld [vmem:[%s662 + $0x28] sm:$0xf]
      %v669 = vld [vmem:[%s662 + $0x30] sm:$0xf]
      %v670 = vld [vmem:[%s662 + $0x38] sm:$0xf]
      %s671 = scalar_lea.vmem %s1, 48
      %v672 = vld [vmem:[%s671] sm:$0xf]
      %v673 = vld [vmem:[%s671 + $0x4] sm:$0xf]
      %v674 = vld [vmem:[%s671 + $0x8] sm:$0xf]
      %v675 = vld [vmem:[%s671 + $0xc] sm:$0xf]
      %v684 = vunpack.c.l.b16 %v663
      %v685 = vunpack.c.l.b16 %v664
      %v686 = vunpack.c.l.b16 %v665
      %v687 = vunpack.c.l.b16 %v666
      %v688 = vunpack.c.l.b16 %v667
      %v689 = vunpack.c.l.b16 %v668
      %v690 = vunpack.c.l.b16 %v669
      %v691 = vunpack.c.l.b16 %v670
      %v692 = vpack.c.b16 %v685, %v684
      %v693 = vpack.c.b16 %v687, %v686
      %v694 = vpack.c.b16 %v689, %v688
      %v695 = vpack.c.b16 %v691, %v690
      %v700 = vunpack.c.l.b16 %v672
      %v701 = vunpack.c.l.b16 %v673
      %v702 = vunpack.c.l.b16 %v674
      %v703 = vunpack.c.l.b16 %v675
      %v704 = vpack.c.b16 %v701, %v700
      %v705 = vpack.c.b16 %v703, %v702
      %v709 = vsel %vm230, %v692, 0
      %v712 = vsel %vm230, %v693, 0
      %v715 = vsel %vm230, %v694, 0
      %v718 = vsel %vm230, %v695, 0
      %720 = vmatprep.subr.bf16.mxu0 0
      %721 = vmatpush1.bf16.msra.mxu0 0
      %722 = vmatprep.subr.bf16.mxu0 0
      %723 = vmatpush1.bf16.msra.mxu0 0
      %724 = vmatprep.subr.bf16.mxu0 0
      %725 = vmatpush1.bf16.msra.mxu0 0
      %726 = vmatprep.subr.bf16.mxu0 0
      %727 = vmatpush1.bf16.msra.mxu0 0
      %728 = vmatprep.subr.bf16.mxu0 0
      %729 = vmatpush1.bf16.msra.mxu0 0
      %730 = vmatprep.subr.bf16.mxu0 0
      %731 = vmatpush1.bf16.msra.mxu0 0
      %732 = vmatprep.subr.bf16.mxu0 0
      %733 = vmatpush1.bf16.msra.mxu0 %v705
      %734 = vmatprep.subr.bf16.mxu0 0
      %735 = vmatpush1.bf16.msra.mxu0 %v704
      %736 = vmatprep.subr.bf16.mxu0 0
      %737 = vmatpush2.bf16.msra.mxu0 0
      %738 = vmatprep.subr.bf16.mxu0 0
      %739 = vmatpush2.bf16.msra.mxu0 0
      %740 = vmatprep.subr.bf16.mxu0 0
      %741 = vmatpush2.bf16.msra.mxu0 0
      %742 = vmatprep.subr.bf16.mxu0 0
      %743 = vmatpush2.bf16.msra.mxu0 0
      %744 = vmatprep.subr.bf16.mxu0 0
      %745 = vmatpush2.bf16.msra.mxu0 0
      %746 = vmatprep.subr.bf16.mxu0 0
      %747 = vmatpush2.bf16.msra.mxu0 0
      %748 = vmatprep.subr.bf16.mxu0 0
      %749 = vmatpush2.bf16.msra.mxu0 0
      %750 = vmatprep.subr.bf16.mxu0 0
      %751 = vmatpush2.bf16.msra.mxu0 0
      %752 = vmatprep.mubr.bf16.mxu0 0
      %753 = vmatmul.mubr.bf16.gmra.mxu0 %v709
      %v754 = vpop.f32.mrf.mxu0
      %v755 = vadd.f32 0.0, %v754
      %v756 = vpop.f32.mrf.mxu0
      %v757 = vpop.f32.mrf.mxu0
      %v758 = vadd.f32 0.0, %v757
      %v759 = vpop.f32.mrf.mxu0
      %760 = vmatprep.mubr.bf16.mxu0 0
      %761 = vmatmul.mubr.bf16.gmra.mxu0 %v712
      %v762 = vpop.f32.mrf.mxu0
      %v763 = vadd.f32 0.0, %v762
      %v764 = vpop.f32.mrf.mxu0
      %v765 = vpop.f32.mrf.mxu0
      %v766 = vadd.f32 0.0, %v765
      %v767 = vpop.f32.mrf.mxu0
      %768 = vmatprep.mubr.bf16.mxu0 0
      %769 = vmatmul.mubr.bf16.gmra.mxu0 %v715
      %v770 = vpop.f32.mrf.mxu0
      %v771 = vadd.f32 0.0, %v770
      %v772 = vpop.f32.mrf.mxu0
      %v773 = vpop.f32.mrf.mxu0
      %v774 = vadd.f32 0.0, %v773
      %v775 = vpop.f32.mrf.mxu0
      %776 = vmatprep.mubr.bf16.mxu0 0
      %777 = vmatmul.mubr.bf16.gmra.mxu0 %v718
      %v778 = vpop.f32.mrf.mxu0
      %v779 = vadd.f32 0.0, %v778
      %v780 = vpop.f32.mrf.mxu0
      %v781 = vpop.f32.mrf.mxu0
      %v782 = vadd.f32 0.0, %v781
      %v783 = vpop.f32.mrf.mxu0
      %784 = vdwg.mxu0
      %v785 = vadd.f32 %v654, %v755
      %v786 = vadd.f32 %v655, %v758
      %v787 = vadd.f32 %v656, %v763
      %v788 = vadd.f32 %v657, %v766
      %v789 = vadd.f32 %v658, %v771
      %v790 = vadd.f32 %v659, %v774
      %v791 = vadd.f32 %v660, %v779
      %v792 = vadd.f32 %v661, %v782
      %s793 = scalar_lea.vmem %s165, 216
      %v794 = vld [vmem:[%s793] sm:$0xf]
      %v795 = vld [vmem:[%s793 + $0x8] sm:$0xf]
      %v796 = vld [vmem:[%s793 + $0x10] sm:$0xf]
      %v797 = vld [vmem:[%s793 + $0x18] sm:$0xf]
      %v798 = vld [vmem:[%s793 + $0x20] sm:$0xf]
      %v799 = vld [vmem:[%s793 + $0x28] sm:$0xf]
      %v800 = vld [vmem:[%s793 + $0x30] sm:$0xf]
      %v801 = vld [vmem:[%s793 + $0x38] sm:$0xf]
      %s802 = scalar_lea.vmem %s1, 64
      %v803 = vld [vmem:[%s802] sm:$0xf]
      %v804 = vld [vmem:[%s802 + $0x4] sm:$0xf]
      %v805 = vld [vmem:[%s802 + $0x8] sm:$0xf]
      %v806 = vld [vmem:[%s802 + $0xc] sm:$0xf]
      %v815 = vunpack.c.l.b16 %v794
      %v816 = vunpack.c.l.b16 %v795
      %v817 = vunpack.c.l.b16 %v796
      %v818 = vunpack.c.l.b16 %v797
      %v819 = vunpack.c.l.b16 %v798
      %v820 = vunpack.c.l.b16 %v799
      %v821 = vunpack.c.l.b16 %v800
      %v822 = vunpack.c.l.b16 %v801
      %v823 = vpack.c.b16 %v816, %v815
      %v824 = vpack.c.b16 %v818, %v817
      %v825 = vpack.c.b16 %v820, %v819
      %v826 = vpack.c.b16 %v822, %v821
      %v831 = vunpack.c.l.b16 %v803
      %v832 = vunpack.c.l.b16 %v804
      %v833 = vunpack.c.l.b16 %v805
      %v834 = vunpack.c.l.b16 %v806
      %v835 = vpack.c.b16 %v832, %v831
      %v836 = vpack.c.b16 %v834, %v833
      %v840 = vsel %vm230, %v823, 0
      %v843 = vsel %vm230, %v824, 0
      %v846 = vsel %vm230, %v825, 0
      %v849 = vsel %vm230, %v826, 0
      %851 = vmatprep.subr.bf16.mxu0 0
      %852 = vmatpush1.bf16.msra.mxu0 0
      %853 = vmatprep.subr.bf16.mxu0 0
      %854 = vmatpush1.bf16.msra.mxu0 0
      %855 = vmatprep.subr.bf16.mxu0 0
      %856 = vmatpush1.bf16.msra.mxu0 0
      %857 = vmatprep.subr.bf16.mxu0 0
      %858 = vmatpush1.bf16.msra.mxu0 0
      %859 = vmatprep.subr.bf16.mxu0 0
      %860 = vmatpush1.bf16.msra.mxu0 0
      %861 = vmatprep.subr.bf16.mxu0 0
      %862 = vmatpush1.bf16.msra.mxu0 0
      %863 = vmatprep.subr.bf16.mxu0 0
      %864 = vmatpush1.bf16.msra.mxu0 %v836
      %865 = vmatprep.subr.bf16.mxu0 0
      %866 = vmatpush1.bf16.msra.mxu0 %v835
      %867 = vmatprep.subr.bf16.mxu0 0
      %868 = vmatpush2.bf16.msra.mxu0 0
      %869 = vmatprep.subr.bf16.mxu0 0
      %870 = vmatpush2.bf16.msra.mxu0 0
      %871 = vmatprep.subr.bf16.mxu0 0
      %872 = vmatpush2.bf16.msra.mxu0 0
      %873 = vmatprep.subr.bf16.mxu0 0
      %874 = vmatpush2.bf16.msra.mxu0 0
      %875 = vmatprep.subr.bf16.mxu0 0
      %876 = vmatpush2.bf16.msra.mxu0 0
      %877 = vmatprep.subr.bf16.mxu0 0
      %878 = vmatpush2.bf16.msra.mxu0 0
      %879 = vmatprep.subr.bf16.mxu0 0
      %880 = vmatpush2.bf16.msra.mxu0 0
      %881 = vmatprep.subr.bf16.mxu0 0
      %882 = vmatpush2.bf16.msra.mxu0 0
      %883 = vmatprep.mubr.bf16.mxu0 0
      %884 = vmatmul.mubr.bf16.gmra.mxu0 %v840
      %v885 = vpop.f32.mrf.mxu0
      %v886 = vadd.f32 0.0, %v885
      %v887 = vpop.f32.mrf.mxu0
      %v888 = vpop.f32.mrf.mxu0
      %v889 = vadd.f32 0.0, %v888
      %v890 = vpop.f32.mrf.mxu0
      %891 = vmatprep.mubr.bf16.mxu0 0
      %892 = vmatmul.mubr.bf16.gmra.mxu0 %v843
      %v893 = vpop.f32.mrf.mxu0
      %v894 = vadd.f32 0.0, %v893
      %v895 = vpop.f32.mrf.mxu0
      %v896 = vpop.f32.mrf.mxu0
      %v897 = vadd.f32 0.0, %v896
      %v898 = vpop.f32.mrf.mxu0
      %899 = vmatprep.mubr.bf16.mxu0 0
      %900 = vmatmul.mubr.bf16.gmra.mxu0 %v846
      %v901 = vpop.f32.mrf.mxu0
      %v902 = vadd.f32 0.0, %v901
      %v903 = vpop.f32.mrf.mxu0
      %v904 = vpop.f32.mrf.mxu0
      %v905 = vadd.f32 0.0, %v904
      %v906 = vpop.f32.mrf.mxu0
      %907 = vmatprep.mubr.bf16.mxu0 0
      %908 = vmatmul.mubr.bf16.gmra.mxu0 %v849
      %v909 = vpop.f32.mrf.mxu0
      %v910 = vadd.f32 0.0, %v909
      %v911 = vpop.f32.mrf.mxu0
      %v912 = vpop.f32.mrf.mxu0
      %v913 = vadd.f32 0.0, %v912
      %v914 = vpop.f32.mrf.mxu0
      %915 = vdwg.mxu0
      %v916 = vadd.f32 %v785, %v886
      %v917 = vadd.f32 %v786, %v889
      %v918 = vadd.f32 %v787, %v894
      %v919 = vadd.f32 %v788, %v897
      %v920 = vadd.f32 %v789, %v902
      %v921 = vadd.f32 %v790, %v905
      %v922 = vadd.f32 %v791, %v910
      %v923 = vadd.f32 %v792, %v913
      %v924 = vld [vmem:[%s662] sm:$0xf]
      %v925 = vld [vmem:[%s662 + $0x4] sm:$0x1]
      %v926 = vld [vmem:[%s662 + $0x8] sm:$0xf]
      %v927 = vld [vmem:[%s662 + $0xc] sm:$0x1]
      %v928 = vld [vmem:[%s662 + $0x10] sm:$0xf]
      %v929 = vld [vmem:[%s662 + $0x14] sm:$0x1]
      %v930 = vld [vmem:[%s662 + $0x18] sm:$0xf]
      %v931 = vld [vmem:[%s662 + $0x1c] sm:$0x1]
      %v932 = vld [vmem:[%s662 + $0x20] sm:$0xf]
      %v933 = vld [vmem:[%s662 + $0x24] sm:$0x1]
      %v934 = vld [vmem:[%s662 + $0x28] sm:$0xf]
      %v935 = vld [vmem:[%s662 + $0x2c] sm:$0x1]
      %v936 = vld [vmem:[%s662 + $0x30] sm:$0xf]
      %v937 = vld [vmem:[%s662 + $0x34] sm:$0x1]
      %v938 = vld [vmem:[%s662 + $0x38] sm:$0xf]
      %v939 = vld [vmem:[%s662 + $0x3c] sm:$0x1]
      %v941 = vshrl.u32 %v924, 16
      %v943 = vrot.slane %v941, 4
      %v944 = vshll.u32 %v924, 16
      %v946 = vrot.slane %v944, 5
      %v947 = vor.u32 %v943, %v946
      %v948 = vrot.slane %v947, 4
      %v950 = vshll.u32 %v925, 16
      %v952 = vrot.slane %v950, 5
      %v953 = vsel %vm435, %v948, %v952
      %v955 = vshrl.u32 %v926, 16
      %v957 = vrot.slane %v955, 4
      %v958 = vshll.u32 %v926, 16
      %v960 = vrot.slane %v958, 5
      %v961 = vor.u32 %v957, %v960
      %v962 = vrot.slane %v961, 4
      %v964 = vshll.u32 %v927, 16
      %v966 = vrot.slane %v964, 5
      %v967 = vsel %vm435, %v962, %v966
      %v969 = vshrl.u32 %v928, 16
      %v971 = vrot.slane %v969, 4
      %v972 = vshll.u32 %v928, 16
      %v974 = vrot.slane %v972, 5
      %v975 = vor.u32 %v971, %v974
      %v976 = vrot.slane %v975, 4
      %v978 = vshll.u32 %v929, 16
      %v980 = vrot.slane %v978, 5
      %v981 = vsel %vm435, %v976, %v980
      %v983 = vshrl.u32 %v930, 16
      %v985 = vrot.slane %v983, 4
      %v986 = vshll.u32 %v930, 16
      %v988 = vrot.slane %v986, 5
      %v989 = vor.u32 %v985, %v988
      %v990 = vrot.slane %v989, 4
      %v992 = vshll.u32 %v931, 16
      %v994 = vrot.slane %v992, 5
      %v995 = vsel %vm435, %v990, %v994
      %v997 = vshrl.u32 %v932, 16
      %v999 = vrot.slane %v997, 4
      %v1000 = vshll.u32 %v932, 16
      %v1002 = vrot.slane %v1000, 5
      %v1003 = vor.u32 %v999, %v1002
      %v1004 = vrot.slane %v1003, 4
      %v1006 = vshll.u32 %v933, 16
      %v1008 = vrot.slane %v1006, 5
      %v1009 = vsel %vm435, %v1004, %v1008
      %v1011 = vshrl.u32 %v934, 16
      %v1013 = vrot.slane %v1011, 4
      %v1014 = vshll.u32 %v934, 16
      %v1016 = vrot.slane %v1014, 5
      %v1017 = vor.u32 %v1013, %v1016
      %v1018 = vrot.slane %v1017, 4
      %v1020 = vshll.u32 %v935, 16
      %v1022 = vrot.slane %v1020, 5
      %v1023 = vsel %vm435, %v1018, %v1022
      %v1025 = vshrl.u32 %v936, 16
      %v1027 = vrot.slane %v1025, 4
      %v1028 = vshll.u32 %v936, 16
      %v1030 = vrot.slane %v1028, 5
      %v1031 = vor.u32 %v1027, %v1030
      %v1032 = vrot.slane %v1031, 4
      %v1034 = vshll.u32 %v937, 16
      %v1036 = vrot.slane %v1034, 5
      %v1037 = vsel %vm435, %v1032, %v1036
      %v1039 = vshrl.u32 %v938, 16
      %v1041 = vrot.slane %v1039, 4
      %v1042 = vshll.u32 %v938, 16
      %v1044 = vrot.slane %v1042, 5
      %v1045 = vor.u32 %v1041, %v1044
      %v1046 = vrot.slane %v1045, 4
      %v1048 = vshll.u32 %v939, 16
      %v1050 = vrot.slane %v1048, 5
      %v1051 = vsel %vm435, %v1046, %v1050
      %s1052 = scalar_lea.vmem %s1, 80
      %v1053 = vld [vmem:[%s1052] sm:$0xf]
      %v1054 = vld [vmem:[%s1052 + $0x4] sm:$0xf]
      %v1055 = vld [vmem:[%s1052 + $0x8] sm:$0xf]
      %v1056 = vld [vmem:[%s1052 + $0xc] sm:$0xf]
      %v1057 = vunpack.c.l.b16 %v953
      %v1058 = vunpack.c.l.b16 %v967
      %v1059 = vunpack.c.l.b16 %v981
      %v1060 = vunpack.c.l.b16 %v995
      %v1061 = vunpack.c.l.b16 %v1009
      %v1062 = vunpack.c.l.b16 %v1023
      %v1063 = vunpack.c.l.b16 %v1037
      %v1064 = vunpack.c.l.b16 %v1051
      %v1065 = vpack.c.b16 %v1058, %v1057
      %v1066 = vpack.c.b16 %v1060, %v1059
      %v1067 = vpack.c.b16 %v1062, %v1061
      %v1068 = vpack.c.b16 %v1064, %v1063
      %v1073 = vunpack.c.l.b16 %v1053
      %v1074 = vunpack.c.l.b16 %v1054
      %v1075 = vunpack.c.l.b16 %v1055
      %v1076 = vunpack.c.l.b16 %v1056
      %v1077 = vpack.c.b16 %v1074, %v1073
      %v1078 = vpack.c.b16 %v1076, %v1075
      %v1082 = vsel %vm230, %v1065, 0
      %v1085 = vsel %vm230, %v1066, 0
      %v1088 = vsel %vm230, %v1067, 0
      %v1091 = vsel %vm230, %v1068, 0
      %1093 = vmatprep.subr.bf16.mxu0 0
      %1094 = vmatpush1.bf16.msra.mxu0 0
      %1095 = vmatprep.subr.bf16.mxu0 0
      %1096 = vmatpush1.bf16.msra.mxu0 0
      %1097 = vmatprep.subr.bf16.mxu0 0
      %1098 = vmatpush1.bf16.msra.mxu0 0
      %1099 = vmatprep.subr.bf16.mxu0 0
      %1100 = vmatpush1.bf16.msra.mxu0 0
      %1101 = vmatprep.subr.bf16.mxu0 0
      %1102 = vmatpush1.bf16.msra.mxu0 0
      %1103 = vmatprep.subr.bf16.mxu0 0
      %1104 = vmatpush1.bf16.msra.mxu0 0
      %1105 = vmatprep.subr.bf16.mxu0 0
      %1106 = vmatpush1.bf16.msra.mxu0 %v1078
      %1107 = vmatprep.subr.bf16.mxu0 0
      %1108 = vmatpush1.bf16.msra.mxu0 %v1077
      %1109 = vmatprep.subr.bf16.mxu0 0
      %1110 = vmatpush2.bf16.msra.mxu0 0
      %1111 = vmatprep.subr.bf16.mxu0 0
      %1112 = vmatpush2.bf16.msra.mxu0 0
      %1113 = vmatprep.subr.bf16.mxu0 0
      %1114 = vmatpush2.bf16.msra.mxu0 0
      %1115 = vmatprep.subr.bf16.mxu0 0
      %1116 = vmatpush2.bf16.msra.mxu0 0
      %1117 = vmatprep.subr.bf16.mxu0 0
      %1118 = vmatpush2.bf16.msra.mxu0 0
      %1119 = vmatprep.subr.bf16.mxu0 0
      %1120 = vmatpush2.bf16.msra.mxu0 0
      %1121 = vmatprep.subr.bf16.mxu0 0
      %1122 = vmatpush2.bf16.msra.mxu0 0
      %1123 = vmatprep.subr.bf16.mxu0 0
      %1124 = vmatpush2.bf16.msra.mxu0 0
      %1125 = vmatprep.mubr.bf16.mxu0 0
      %1126 = vmatmul.mubr.bf16.gmra.mxu0 %v1082
      %v1127 = vpop.f32.mrf.mxu0
      %v1128 = vadd.f32 0.0, %v1127
      %v1129 = vpop.f32.mrf.mxu0
      %v1130 = vpop.f32.mrf.mxu0
      %v1131 = vadd.f32 0.0, %v1130
      %v1132 = vpop.f32.mrf.mxu0
      %1133 = vmatprep.mubr.bf16.mxu0 0
      %1134 = vmatmul.mubr.bf16.gmra.mxu0 %v1085
      %v1135 = vpop.f32.mrf.mxu0
      %v1136 = vadd.f32 0.0, %v1135
      %v1137 = vpop.f32.mrf.mxu0
      %v1138 = vpop.f32.mrf.mxu0
      %v1139 = vadd.f32 0.0, %v1138
      %v1140 = vpop.f32.mrf.mxu0
      %1141 = vmatprep.mubr.bf16.mxu0 0
      %1142 = vmatmul.mubr.bf16.gmra.mxu0 %v1088
      %v1143 = vpop.f32.mrf.mxu0
      %v1144 = vadd.f32 0.0, %v1143
      %v1145 = vpop.f32.mrf.mxu0
      %v1146 = vpop.f32.mrf.mxu0
      %v1147 = vadd.f32 0.0, %v1146
      %v1148 = vpop.f32.mrf.mxu0
      %1149 = vmatprep.mubr.bf16.mxu0 0
      %1150 = vmatmul.mubr.bf16.gmra.mxu0 %v1091
      %v1151 = vpop.f32.mrf.mxu0
      %v1152 = vadd.f32 0.0, %v1151
      %v1153 = vpop.f32.mrf.mxu0
      %v1154 = vpop.f32.mrf.mxu0
      %v1155 = vadd.f32 0.0, %v1154
      %v1156 = vpop.f32.mrf.mxu0
      %1157 = vdwg.mxu0
      %v1158 = vadd.f32 %v916, %v1128
      %v1159 = vadd.f32 %v917, %v1131
      %v1160 = vadd.f32 %v918, %v1136
      %v1161 = vadd.f32 %v919, %v1139
      %v1162 = vadd.f32 %v920, %v1144
      %v1163 = vadd.f32 %v921, %v1147
      %v1164 = vadd.f32 %v922, %v1152
      %v1165 = vadd.f32 %v923, %v1155
      %s1166 = scalar_lea.vmem %s165, 8
      %v1167 = vld [vmem:[%s1166] sm:$0xf]
      %v1168 = vld [vmem:[%s1166 + $0x8] sm:$0xf]
      %v1169 = vld [vmem:[%s1166 + $0x10] sm:$0xf]
      %v1170 = vld [vmem:[%s1166 + $0x18] sm:$0xf]
      %v1171 = vld [vmem:[%s1166 + $0x20] sm:$0xf]
      %v1172 = vld [vmem:[%s1166 + $0x28] sm:$0xf]
      %v1173 = vld [vmem:[%s1166 + $0x30] sm:$0xf]
      %v1174 = vld [vmem:[%s1166 + $0x38] sm:$0xf]
      %s1175 = scalar_lea.vmem %s1, 96
      %v1176 = vld [vmem:[%s1175] sm:$0xf]
      %v1177 = vld [vmem:[%s1175 + $0x4] sm:$0xf]
      %v1178 = vld [vmem:[%s1175 + $0x8] sm:$0xf]
      %v1179 = vld [vmem:[%s1175 + $0xc] sm:$0xf]
      %v1188 = vunpack.c.l.b16 %v1167
      %v1189 = vunpack.c.l.b16 %v1168
      %v1190 = vunpack.c.l.b16 %v1169
      %v1191 = vunpack.c.l.b16 %v1170
      %v1192 = vunpack.c.l.b16 %v1171
      %v1193 = vunpack.c.l.b16 %v1172
      %v1194 = vunpack.c.l.b16 %v1173
      %v1195 = vunpack.c.l.b16 %v1174
      %v1196 = vpack.c.b16 %v1189, %v1188
      %v1197 = vpack.c.b16 %v1191, %v1190
      %v1198 = vpack.c.b16 %v1193, %v1192
      %v1199 = vpack.c.b16 %v1195, %v1194
      %v1204 = vunpack.c.l.b16 %v1176
      %v1205 = vunpack.c.l.b16 %v1177
      %v1206 = vunpack.c.l.b16 %v1178
      %v1207 = vunpack.c.l.b16 %v1179
      %v1208 = vpack.c.b16 %v1205, %v1204
      %v1209 = vpack.c.b16 %v1207, %v1206
      %v1213 = vsel %vm230, %v1196, 0
      %v1216 = vsel %vm230, %v1197, 0
      %v1219 = vsel %vm230, %v1198, 0
      %v1222 = vsel %vm230, %v1199, 0
      %1224 = vmatprep.subr.bf16.mxu0 0
      %1225 = vmatpush1.bf16.msra.mxu0 0
      %1226 = vmatprep.subr.bf16.mxu0 0
      %1227 = vmatpush1.bf16.msra.mxu0 0
      %1228 = vmatprep.subr.bf16.mxu0 0
      %1229 = vmatpush1.bf16.msra.mxu0 0
      %1230 = vmatprep.subr.bf16.mxu0 0
      %1231 = vmatpush1.bf16.msra.mxu0 0
      %1232 = vmatprep.subr.bf16.mxu0 0
      %1233 = vmatpush1.bf16.msra.mxu0 0
      %1234 = vmatprep.subr.bf16.mxu0 0
      %1235 = vmatpush1.bf16.msra.mxu0 0
      %1236 = vmatprep.subr.bf16.mxu0 0
      %1237 = vmatpush1.bf16.msra.mxu0 %v1209
      %1238 = vmatprep.subr.bf16.mxu0 0
      %1239 = vmatpush1.bf16.msra.mxu0 %v1208
      %1240 = vmatprep.subr.bf16.mxu0 0
      %1241 = vmatpush2.bf16.msra.mxu0 0
      %1242 = vmatprep.subr.bf16.mxu0 0
      %1243 = vmatpush2.bf16.msra.mxu0 0
      %1244 = vmatprep.subr.bf16.mxu0 0
      %1245 = vmatpush2.bf16.msra.mxu0 0
      %1246 = vmatprep.subr.bf16.mxu0 0
      %1247 = vmatpush2.bf16.msra.mxu0 0
      %1248 = vmatprep.subr.bf16.mxu0 0
      %1249 = vmatpush2.bf16.msra.mxu0 0
      %1250 = vmatprep.subr.bf16.mxu0 0
      %1251 = vmatpush2.bf16.msra.mxu0 0
      %1252 = vmatprep.subr.bf16.mxu0 0
      %1253 = vmatpush2.bf16.msra.mxu0 0
      %1254 = vmatprep.subr.bf16.mxu0 0
      %1255 = vmatpush2.bf16.msra.mxu0 0
      %1256 = vmatprep.mubr.bf16.mxu0 0
      %1257 = vmatmul.mubr.bf16.gmra.mxu0 %v1213
      %v1258 = vpop.f32.mrf.mxu0
      %v1259 = vadd.f32 0.0, %v1258
      %v1260 = vpop.f32.mrf.mxu0
      %v1261 = vpop.f32.mrf.mxu0
      %v1262 = vadd.f32 0.0, %v1261
      %v1263 = vpop.f32.mrf.mxu0
      %1264 = vmatprep.mubr.bf16.mxu0 0
      %1265 = vmatmul.mubr.bf16.gmra.mxu0 %v1216
      %v1266 = vpop.f32.mrf.mxu0
      %v1267 = vadd.f32 0.0, %v1266
      %v1268 = vpop.f32.mrf.mxu0
      %v1269 = vpop.f32.mrf.mxu0
      %v1270 = vadd.f32 0.0, %v1269
      %v1271 = vpop.f32.mrf.mxu0
      %1272 = vmatprep.mubr.bf16.mxu0 0
      %1273 = vmatmul.mubr.bf16.gmra.mxu0 %v1219
      %v1274 = vpop.f32.mrf.mxu0
      %v1275 = vadd.f32 0.0, %v1274
      %v1276 = vpop.f32.mrf.mxu0
      %v1277 = vpop.f32.mrf.mxu0
      %v1278 = vadd.f32 0.0, %v1277
      %v1279 = vpop.f32.mrf.mxu0
      %1280 = vmatprep.mubr.bf16.mxu0 0
      %1281 = vmatmul.mubr.bf16.gmra.mxu0 %v1222
      %v1282 = vpop.f32.mrf.mxu0
      %v1283 = vadd.f32 0.0, %v1282
      %v1284 = vpop.f32.mrf.mxu0
      %v1285 = vpop.f32.mrf.mxu0
      %v1286 = vadd.f32 0.0, %v1285
      %v1287 = vpop.f32.mrf.mxu0
      %1288 = vdwg.mxu0
      %v1289 = vadd.f32 %v1158, %v1259
      %v1290 = vadd.f32 %v1159, %v1262
      %v1291 = vadd.f32 %v1160, %v1267
      %v1292 = vadd.f32 %v1161, %v1270
      %v1293 = vadd.f32 %v1162, %v1275
      %v1294 = vadd.f32 %v1163, %v1278
      %v1295 = vadd.f32 %v1164, %v1283
      %v1296 = vadd.f32 %v1165, %v1286
      %s1297 = scalar_lea.vmem %s165, 80
      %v1298 = vld [vmem:[%s1297] sm:$0xf]
      %v1299 = vld [vmem:[%s1297 + $0x8] sm:$0xf]
      %v1300 = vld [vmem:[%s1297 + $0x10] sm:$0xf]
      %v1301 = vld [vmem:[%s1297 + $0x18] sm:$0xf]
      %v1302 = vld [vmem:[%s1297 + $0x20] sm:$0xf]
      %v1303 = vld [vmem:[%s1297 + $0x28] sm:$0xf]
      %v1304 = vld [vmem:[%s1297 + $0x30] sm:$0xf]
      %v1305 = vld [vmem:[%s1297 + $0x38] sm:$0xf]
      %s1306 = scalar_lea.vmem %s1, 112
      %v1307 = vld [vmem:[%s1306] sm:$0xf]
      %v1308 = vld [vmem:[%s1306 + $0x4] sm:$0xf]
      %v1309 = vld [vmem:[%s1306 + $0x8] sm:$0xf]
      %v1310 = vld [vmem:[%s1306 + $0xc] sm:$0xf]
      %v1319 = vunpack.c.l.b16 %v1298
      %v1320 = vunpack.c.l.b16 %v1299
      %v1321 = vunpack.c.l.b16 %v1300
      %v1322 = vunpack.c.l.b16 %v1301
      %v1323 = vunpack.c.l.b16 %v1302
      %v1324 = vunpack.c.l.b16 %v1303
      %v1325 = vunpack.c.l.b16 %v1304
      %v1326 = vunpack.c.l.b16 %v1305
      %v1327 = vpack.c.b16 %v1320, %v1319
      %v1328 = vpack.c.b16 %v1322, %v1321
      %v1329 = vpack.c.b16 %v1324, %v1323
      %v1330 = vpack.c.b16 %v1326, %v1325
      %v1335 = vunpack.c.l.b16 %v1307
      %v1336 = vunpack.c.l.b16 %v1308
      %v1337 = vunpack.c.l.b16 %v1309
      %v1338 = vunpack.c.l.b16 %v1310
      %v1339 = vpack.c.b16 %v1336, %v1335
      %v1340 = vpack.c.b16 %v1338, %v1337
      %v1344 = vsel %vm230, %v1327, 0
      %v1347 = vsel %vm230, %v1328, 0
      %v1350 = vsel %vm230, %v1329, 0
      %v1353 = vsel %vm230, %v1330, 0
      %1355 = vmatprep.subr.bf16.mxu0 0
      %1356 = vmatpush1.bf16.msra.mxu0 0
      %1357 = vmatprep.subr.bf16.mxu0 0
      %1358 = vmatpush1.bf16.msra.mxu0 0
      %1359 = vmatprep.subr.bf16.mxu0 0
      %1360 = vmatpush1.bf16.msra.mxu0 0
      %1361 = vmatprep.subr.bf16.mxu0 0
      %1362 = vmatpush1.bf16.msra.mxu0 0
      %1363 = vmatprep.subr.bf16.mxu0 0
      %1364 = vmatpush1.bf16.msra.mxu0 0
      %1365 = vmatprep.subr.bf16.mxu0 0
      %1366 = vmatpush1.bf16.msra.mxu0 0
      %1367 = vmatprep.subr.bf16.mxu0 0
      %1368 = vmatpush1.bf16.msra.mxu0 %v1340
      %1369 = vmatprep.subr.bf16.mxu0 0
      %1370 = vmatpush1.bf16.msra.mxu0 %v1339
      %1371 = vmatprep.subr.bf16.mxu0 0
      %1372 = vmatpush2.bf16.msra.mxu0 0
      %1373 = vmatprep.subr.bf16.mxu0 0
      %1374 = vmatpush2.bf16.msra.mxu0 0
      %1375 = vmatprep.subr.bf16.mxu0 0
      %1376 = vmatpush2.bf16.msra.mxu0 0
      %1377 = vmatprep.subr.bf16.mxu0 0
      %1378 = vmatpush2.bf16.msra.mxu0 0
      %1379 = vmatprep.subr.bf16.mxu0 0
      %1380 = vmatpush2.bf16.msra.mxu0 0
      %1381 = vmatprep.subr.bf16.mxu0 0
      %1382 = vmatpush2.bf16.msra.mxu0 0
      %1383 = vmatprep.subr.bf16.mxu0 0
      %1384 = vmatpush2.bf16.msra.mxu0 0
      %1385 = vmatprep.subr.bf16.mxu0 0
      %1386 = vmatpush2.bf16.msra.mxu0 0
      %1387 = vmatprep.mubr.bf16.mxu0 0
      %1388 = vmatmul.mubr.bf16.gmra.mxu0 %v1344
      %v1389 = vpop.f32.mrf.mxu0
      %v1390 = vadd.f32 0.0, %v1389
      %v1391 = vpop.f32.mrf.mxu0
      %v1392 = vpop.f32.mrf.mxu0
      %v1393 = vadd.f32 0.0, %v1392
      %v1394 = vpop.f32.mrf.mxu0
      %1395 = vmatprep.mubr.bf16.mxu0 0
      %1396 = vmatmul.mubr.bf16.gmra.mxu0 %v1347
      %v1397 = vpop.f32.mrf.mxu0
      %v1398 = vadd.f32 0.0, %v1397
      %v1399 = vpop.f32.mrf.mxu0
      %v1400 = vpop.f32.mrf.mxu0
      %v1401 = vadd.f32 0.0, %v1400
      %v1402 = vpop.f32.mrf.mxu0
      %1403 = vmatprep.mubr.bf16.mxu0 0
      %1404 = vmatmul.mubr.bf16.gmra.mxu0 %v1350
      %v1405 = vpop.f32.mrf.mxu0
      %v1406 = vadd.f32 0.0, %v1405
      %v1407 = vpop.f32.mrf.mxu0
      %v1408 = vpop.f32.mrf.mxu0
      %v1409 = vadd.f32 0.0, %v1408
      %v1410 = vpop.f32.mrf.mxu0
      %1411 = vmatprep.mubr.bf16.mxu0 0
      %1412 = vmatmul.mubr.bf16.gmra.mxu0 %v1353
      %v1413 = vpop.f32.mrf.mxu0
      %v1414 = vadd.f32 0.0, %v1413
      %v1415 = vpop.f32.mrf.mxu0
      %v1416 = vpop.f32.mrf.mxu0
      %v1417 = vadd.f32 0.0, %v1416
      %v1418 = vpop.f32.mrf.mxu0
      %1419 = vdwg.mxu0
      %v1420 = vadd.f32 %v1289, %v1390
      %v1421 = vadd.f32 %v1290, %v1393
      %v1422 = vadd.f32 %v1291, %v1398
      %v1423 = vadd.f32 %v1292, %v1401
      %v1424 = vadd.f32 %v1293, %v1406
      %v1425 = vadd.f32 %v1294, %v1409
      %v1426 = vadd.f32 %v1295, %v1414
      %v1427 = vadd.f32 %v1296, %v1417
      %v1428 = vld [vmem:[%s1166] sm:$0xf]
      %v1429 = vld [vmem:[%s1166 + $0x4] sm:$0x1]
      %v1430 = vld [vmem:[%s1166 + $0x8] sm:$0xf]
      %v1431 = vld [vmem:[%s1166 + $0xc] sm:$0x1]
      %v1432 = vld [vmem:[%s1166 + $0x10] sm:$0xf]
      %v1433 = vld [vmem:[%s1166 + $0x14] sm:$0x1]
      %v1434 = vld [vmem:[%s1166 + $0x18] sm:$0xf]
      %v1435 = vld [vmem:[%s1166 + $0x1c] sm:$0x1]
      %v1436 = vld [vmem:[%s1166 + $0x20] sm:$0xf]
      %v1437 = vld [vmem:[%s1166 + $0x24] sm:$0x1]
      %v1438 = vld [vmem:[%s1166 + $0x28] sm:$0xf]
      %v1439 = vld [vmem:[%s1166 + $0x2c] sm:$0x1]
      %v1440 = vld [vmem:[%s1166 + $0x30] sm:$0xf]
      %v1441 = vld [vmem:[%s1166 + $0x34] sm:$0x1]
      %v1442 = vld [vmem:[%s1166 + $0x38] sm:$0xf]
      %v1443 = vld [vmem:[%s1166 + $0x3c] sm:$0x1]
      %v1445 = vshrl.u32 %v1428, 16
      %v1447 = vrot.slane %v1445, 4
      %v1448 = vshll.u32 %v1428, 16
      %v1450 = vrot.slane %v1448, 5
      %v1451 = vor.u32 %v1447, %v1450
      %v1452 = vrot.slane %v1451, 4
      %v1454 = vshll.u32 %v1429, 16
      %v1456 = vrot.slane %v1454, 5
      %v1457 = vsel %vm435, %v1452, %v1456
      %v1459 = vshrl.u32 %v1430, 16
      %v1461 = vrot.slane %v1459, 4
      %v1462 = vshll.u32 %v1430, 16
      %v1464 = vrot.slane %v1462, 5
      %v1465 = vor.u32 %v1461, %v1464
      %v1466 = vrot.slane %v1465, 4
      %v1468 = vshll.u32 %v1431, 16
      %v1470 = vrot.slane %v1468, 5
      %v1471 = vsel %vm435, %v1466, %v1470
      %v1473 = vshrl.u32 %v1432, 16
      %v1475 = vrot.slane %v1473, 4
      %v1476 = vshll.u32 %v1432, 16
      %v1478 = vrot.slane %v1476, 5
      %v1479 = vor.u32 %v1475, %v1478
      %v1480 = vrot.slane %v1479, 4
      %v1482 = vshll.u32 %v1433, 16
      %v1484 = vrot.slane %v1482, 5
      %v1485 = vsel %vm435, %v1480, %v1484
      %v1487 = vshrl.u32 %v1434, 16
      %v1489 = vrot.slane %v1487, 4
      %v1490 = vshll.u32 %v1434, 16
      %v1492 = vrot.slane %v1490, 5
      %v1493 = vor.u32 %v1489, %v1492
      %v1494 = vrot.slane %v1493, 4
      %v1496 = vshll.u32 %v1435, 16
      %v1498 = vrot.slane %v1496, 5
      %v1499 = vsel %vm435, %v1494, %v1498
      %v1501 = vshrl.u32 %v1436, 16
      %v1503 = vrot.slane %v1501, 4
      %v1504 = vshll.u32 %v1436, 16
      %v1506 = vrot.slane %v1504, 5
      %v1507 = vor.u32 %v1503, %v1506
      %v1508 = vrot.slane %v1507, 4
      %v1510 = vshll.u32 %v1437, 16
      %v1512 = vrot.slane %v1510, 5
      %v1513 = vsel %vm435, %v1508, %v1512
      %v1515 = vshrl.u32 %v1438, 16
      %v1517 = vrot.slane %v1515, 4
      %v1518 = vshll.u32 %v1438, 16
      %v1520 = vrot.slane %v1518, 5
      %v1521 = vor.u32 %v1517, %v1520
      %v1522 = vrot.slane %v1521, 4
      %v1524 = vshll.u32 %v1439, 16
      %v1526 = vrot.slane %v1524, 5
      %v1527 = vsel %vm435, %v1522, %v1526
      %v1529 = vshrl.u32 %v1440, 16
      %v1531 = vrot.slane %v1529, 4
      %v1532 = vshll.u32 %v1440, 16
      %v1534 = vrot.slane %v1532, 5
      %v1535 = vor.u32 %v1531, %v1534
      %v1536 = vrot.slane %v1535, 4
      %v1538 = vshll.u32 %v1441, 16
      %v1540 = vrot.slane %v1538, 5
      %v1541 = vsel %vm435, %v1536, %v1540
      %v1543 = vshrl.u32 %v1442, 16
      %v1545 = vrot.slane %v1543, 4
      %v1546 = vshll.u32 %v1442, 16
      %v1548 = vrot.slane %v1546, 5
      %v1549 = vor.u32 %v1545, %v1548
      %v1550 = vrot.slane %v1549, 4
      %v1552 = vshll.u32 %v1443, 16
      %v1554 = vrot.slane %v1552, 5
      %v1555 = vsel %vm435, %v1550, %v1554
      %s1556 = scalar_lea.vmem %s1, 128
      %v1557 = vld [vmem:[%s1556] sm:$0xf]
      %v1558 = vld [vmem:[%s1556 + $0x4] sm:$0xf]
      %v1559 = vld [vmem:[%s1556 + $0x8] sm:$0xf]
      %v1560 = vld [vmem:[%s1556 + $0xc] sm:$0xf]
      %v1561 = vunpack.c.l.b16 %v1457
      %v1562 = vunpack.c.l.b16 %v1471
      %v1563 = vunpack.c.l.b16 %v1485
      %v1564 = vunpack.c.l.b16 %v1499
      %v1565 = vunpack.c.l.b16 %v1513
      %v1566 = vunpack.c.l.b16 %v1527
      %v1567 = vunpack.c.l.b16 %v1541
      %v1568 = vunpack.c.l.b16 %v1555
      %v1569 = vpack.c.b16 %v1562, %v1561
      %v1570 = vpack.c.b16 %v1564, %v1563
      %v1571 = vpack.c.b16 %v1566, %v1565
      %v1572 = vpack.c.b16 %v1568, %v1567
      %v1577 = vunpack.c.l.b16 %v1557
      %v1578 = vunpack.c.l.b16 %v1558
      %v1579 = vunpack.c.l.b16 %v1559
      %v1580 = vunpack.c.l.b16 %v1560
      %v1581 = vpack.c.b16 %v1578, %v1577
      %v1582 = vpack.c.b16 %v1580, %v1579
      %v1586 = vsel %vm230, %v1569, 0
      %v1589 = vsel %vm230, %v1570, 0
      %v1592 = vsel %vm230, %v1571, 0
      %v1595 = vsel %vm230, %v1572, 0
      %1597 = vmatprep.subr.bf16.mxu0 0
      %1598 = vmatpush1.bf16.msra.mxu0 0
      %1599 = vmatprep.subr.bf16.mxu0 0
      %1600 = vmatpush1.bf16.msra.mxu0 0
      %1601 = vmatprep.subr.bf16.mxu0 0
      %1602 = vmatpush1.bf16.msra.mxu0 0
      %1603 = vmatprep.subr.bf16.mxu0 0
      %1604 = vmatpush1.bf16.msra.mxu0 0
      %1605 = vmatprep.subr.bf16.mxu0 0
      %1606 = vmatpush1.bf16.msra.mxu0 0
      %1607 = vmatprep.subr.bf16.mxu0 0
      %1608 = vmatpush1.bf16.msra.mxu0 0
      %1609 = vmatprep.subr.bf16.mxu0 0
      %1610 = vmatpush1.bf16.msra.mxu0 %v1582
      %1611 = vmatprep.subr.bf16.mxu0 0
      %1612 = vmatpush1.bf16.msra.mxu0 %v1581
      %1613 = vmatprep.subr.bf16.mxu0 0
      %1614 = vmatpush2.bf16.msra.mxu0 0
      %1615 = vmatprep.subr.bf16.mxu0 0
      %1616 = vmatpush2.bf16.msra.mxu0 0
      %1617 = vmatprep.subr.bf16.mxu0 0
      %1618 = vmatpush2.bf16.msra.mxu0 0
      %1619 = vmatprep.subr.bf16.mxu0 0
      %1620 = vmatpush2.bf16.msra.mxu0 0
      %1621 = vmatprep.subr.bf16.mxu0 0
      %1622 = vmatpush2.bf16.msra.mxu0 0
      %1623 = vmatprep.subr.bf16.mxu0 0
      %1624 = vmatpush2.bf16.msra.mxu0 0
      %1625 = vmatprep.subr.bf16.mxu0 0
      %1626 = vmatpush2.bf16.msra.mxu0 0
      %1627 = vmatprep.subr.bf16.mxu0 0
      %1628 = vmatpush2.bf16.msra.mxu0 0
      %1629 = vmatprep.mubr.bf16.mxu0 0
      %1630 = vmatmul.mubr.bf16.gmra.mxu0 %v1586
      %v1631 = vpop.f32.mrf.mxu0
      %v1632 = vadd.f32 0.0, %v1631
      %v1633 = vpop.f32.mrf.mxu0
      %v1634 = vpop.f32.mrf.mxu0
      %v1635 = vadd.f32 0.0, %v1634
      %v1636 = vpop.f32.mrf.mxu0
      %1637 = vmatprep.mubr.bf16.mxu0 0
      %1638 = vmatmul.mubr.bf16.gmra.mxu0 %v1589
      %v1639 = vpop.f32.mrf.mxu0
      %v1640 = vadd.f32 0.0, %v1639
      %v1641 = vpop.f32.mrf.mxu0
      %v1642 = vpop.f32.mrf.mxu0
      %v1643 = vadd.f32 0.0, %v1642
      %v1644 = vpop.f32.mrf.mxu0
      %1645 = vmatprep.mubr.bf16.mxu0 0
      %1646 = vmatmul.mubr.bf16.gmra.mxu0 %v1592
      %v1647 = vpop.f32.mrf.mxu0
      %v1648 = vadd.f32 0.0, %v1647
      %v1649 = vpop.f32.mrf.mxu0
      %v1650 = vpop.f32.mrf.mxu0
      %v1651 = vadd.f32 0.0, %v1650
      %v1652 = vpop.f32.mrf.mxu0
      %1653 = vmatprep.mubr.bf16.mxu0 0
      %1654 = vmatmul.mubr.bf16.gmra.mxu0 %v1595
      %v1655 = vpop.f32.mrf.mxu0
      %v1656 = vadd.f32 0.0, %v1655
      %v1657 = vpop.f32.mrf.mxu0
      %v1658 = vpop.f32.mrf.mxu0
      %v1659 = vadd.f32 0.0, %v1658
      %v1660 = vpop.f32.mrf.mxu0
      %1661 = vdwg.mxu0
      %v1662 = vadd.f32 %v1420, %v1632
      %v1663 = vadd.f32 %v1421, %v1635
      %v1664 = vadd.f32 %v1422, %v1640
      %v1665 = vadd.f32 %v1423, %v1643
      %v1666 = vadd.f32 %v1424, %v1648
      %v1667 = vadd.f32 %v1425, %v1651
      %v1668 = vadd.f32 %v1426, %v1656
      %v1669 = vadd.f32 %v1427, %v1659
      %v1670 = vld [vmem:[%s2] sm:$0x1]
      %v1672 = vlaneseq
      %v1673 = vshrl.u32 %v1672, 7
      %v1674 = vsub.s32 0, %v1673
      %v1675 = vrot.slane %v1670, %v1674
      %v1677 = vadd.f32 %v1662, %v1675
      %v1678 = vadd.f32 %v1663, %v1675
      %v1679 = vadd.f32 %v1664, %v1675
      %v1680 = vadd.f32 %v1665, %v1675
      %v1681 = vadd.f32 %v1666, %v1675
      %v1682 = vadd.f32 %v1667, %v1675
      %v1683 = vadd.f32 %v1668, %v1675
      %v1684 = vadd.f32 %v1669, %v1675
      %v1685 = vmax.f32 %v1677, 0.0
      %v1686 = vmax.f32 %v1678, 0.0
      %v1687 = vmax.f32 %v1679, 0.0
      %v1688 = vmax.f32 %v1680, 0.0
      %v1689 = vmax.f32 %v1681, 0.0
      %v1690 = vmax.f32 %v1682, 0.0
      %v1691 = vmax.f32 %v1683, 0.0
      %v1692 = vmax.f32 %v1684, 0.0
      %v1693 = vpack.c.bf16 %v1686, %v1685
      %v1694 = vpack.c.bf16 %v1688, %v1687
      %v1695 = vpack.c.bf16 %v1690, %v1689
      %v1696 = vpack.c.bf16 %v1692, %v1691
      %v1701 = vunpack.c.l.b16 %v1693
      %v1702 = vunpack.c.h.b16 %v1693
      %v1703 = vunpack.c.l.b16 %v1694
      %v1704 = vunpack.c.h.b16 %v1694
      %v1705 = vunpack.c.l.b16 %v1695
      %v1706 = vunpack.c.h.b16 %v1695
      %v1707 = vunpack.c.l.b16 %v1696
      %v1708 = vunpack.c.h.b16 %v1696
      %v1709 = vpack.c.b16 %v1701, %v1701
      %v1710 = vpack.c.b16 %v1702, %v1702
      %v1711 = vpack.c.b16 %v1703, %v1703
      %v1712 = vpack.c.b16 %v1704, %v1704
      %v1713 = vpack.c.b16 %v1705, %v1705
      %v1714 = vpack.c.b16 %v1706, %v1706
      %v1715 = vpack.c.b16 %v1707, %v1707
      %v1716 = vpack.c.b16 %v1708, %v1708
      %vm1725 = vcmask 257024
      %1726 = vst.msk [vmem:[%s170] sm:$0xf] %vm1725, %v1709
      %1727 = vst.msk [vmem:[%s170 + $0x4] sm:$0xf] %vm1725, %v1710
      %1728 = vst.msk [vmem:[%s170 + $0x8] sm:$0xf] %vm1725, %v1711
      %1729 = vst.msk [vmem:[%s170 + $0xc] sm:$0xf] %vm1725, %v1712
      %1730 = vst.msk [vmem:[%s170 + $0x10] sm:$0xf] %vm1725, %v1713
      %1731 = vst.msk [vmem:[%s170 + $0x14] sm:$0xf] %vm1725, %v1714
      %1732 = vst.msk [vmem:[%s170 + $0x18] sm:$0xf] %vm1725, %v1715
      %1733 = vst.msk [vmem:[%s170 + $0x1c] sm:$0xf] %vm1725, %v1716
      %p1734 = scmp.lt.s32.totalorder %s14, 1
      %s1735 = scalar_select %p1734, %s14, 1
      %s1736 = smul.addr %s1735, 8
      %s1737 = smul.addr %s1736, 4
      %s1738 = scalar_lea.vmem %s3, %s1737
      // Predicated region
      $region33: #{bottleneck_forward.5} parent=31 // pred_check
        %p1739 = pneg %p100
      $region34: #{bottleneck_forward.5} parent=31 // pred_check_branch
        %1741 = sbr.rel (%p1739) target = $region36
      $region35: #{bottleneck_forward.5} parent=31 // pred_region
        _
      $region36: #{bottleneck_forward.5} parent=31 // pred_fallthru
        _
    $region32: #{bottleneck_forward.5} parent=5 // pred_fallthru
      _
    %p1742 = scmp.le.s32.totalorder 2, %s9
    // Predicated region
    $region37: #{bottleneck_forward.5} parent=5 // pred_check
      %p1743 = pneg %p1742
    $region38: #{bottleneck_forward.5} parent=5 // pred_check_branch
      %1745 = sbr.rel (%p1743) target = $region40
    $region39: #{bottleneck_forward.5} parent=5 // pred_region
      %s1746 = ssub.s32 %s9, 2
      // Predicated region
      $region41: #{bottleneck_forward.5} parent=39 // pred_check
        %p1747 = pneg %p106
      $region42: #{bottleneck_forward.5} parent=39 // pred_check_branch
        %1749 = sbr.rel (%p1747) target = $region44
      $region43: #{bottleneck_forward.5} parent=39 // pred_region
        %p1750 = scmp.lt.s32.totalorder %s15, 1
        %s1751 = scalar_select %p1750, %s15, 1
        %s1752 = smul.addr %s1751, 8
        %s1753 = smul.addr %s1752, 4
        %s1754 = scalar_lea.vmem %s3, %s1753
      $region44: #{bottleneck_forward.5} parent=39 // pred_fallthru
        _
    $region40: #{bottleneck_forward.5} parent=5 // pred_fallthru
      _
  $region6: #{bottleneck_forward.5} parent=0 // loop_footer
    %s13 = sadd.s32 1, %s9
  $region7: #{bottleneck_forward.5} parent=0 // loop_footer_branch
    %8 = sbr.rel target = $region3
  $region8: #{bottleneck_forward.5} parent=0 // loop_exit
    _

// kernel: bottleneck_forward.7
$region0: #{bottleneck_forward.7}
  #allocation0 [shape = 'u32[]', space=smem, size = 0x4, offset = 0x4, fixed_abs, tag = 'smem constant byte address 0x4 - core index']
  #allocation1 [shape = 'u32[144,128]{1,0:T(1,128)}', space=vmem, size = 0x12000, scoped, tag = 'internal scratch']
  %s0 = inlined_call_operand.vmem [shape: bf16[128,32], index: 0, kind: input, shape index: {}]
  %s1 = inlined_call_operand.vmem [shape: bf16[32,128], index: 1, kind: input, shape index: {}]
  %s2 = inlined_call_operand.vmem [shape: f32[1,128], index: 2, kind: input, shape index: {}]
  %s3 = inlined_call_operand.vmem [shape: bf16[128,128], index: 3, kind: input, shape index: {}]
  %s4 = inlined_call_operand.hbm [shape: f32[128,128], index: 4, kind: output, shape index: {}]
  %s5 = sld [smem:[#allocation0]]
  $region49: #{bottleneck_forward.7} parent=0
    _
  %s7 = ssub.s32 1, %s5
  %s8 = scalar_select 0, %s7, %s5
  $region1: #{bottleneck_forward.7} parent=0
    #allocation2 [shape = 'u8[65536]{0}', space=vmem, size = 0x10000, scoped, tag = 'output window, operand 0']
    #allocation3 [shape = 's32[2]{0}', space=sflag, size = 0x8, scoped, tag = 'scoped memory for bottleneck_forward.7']
    %9 = vsyncpa [#allocation3], 0
    %s10 = scalar_lea.sflag [#allocation3], 1
    %11 = vsyncpa %s10, 0
    loop: start=0, step=1, limit=4
    $region2: #{bottleneck_forward.7} parent=1 // loop_pre_header
      _
    $region3: #{bottleneck_forward.7} parent=1 // loop_header
      %s13 = sphi 0, %s17
      %p14 = scmp.ge.s32.totalorder %s13, 4
      %s23 = sphi 0, %s25
      %s26 = sphi 0, %s23
      %s27 = sphi 0, %s26
      %s43 = sphi 0, %s27
      %s47 = sphi 0, %s47
      %s49 = sphi 0, %s47
      %s50 = sphi 0, %s49
      %s64 = sphi 0, %s50
      %s68 = sphi 0, %s68
      %s70 = sphi 0, %s68
      %s71 = sphi 0, %s70
      %s85 = sphi 0, %s71
      %s91 = sphi 0, %s93
      %s94 = sphi 0, %s91
      %s95 = sphi 0, %s94
      %s111 = sphi 0, %s95
      %s117 = sphi 0, %s119
      %s120 = sphi 0, %s117
      %s121 = sphi 0, %s120
      %s137 = sphi 0, %s121
    $region4: #{bottleneck_forward.7} parent=1 // loop_header_branch
      %16 = sbr.rel (%p14) target = $region8
    $region5: #{bottleneck_forward.7} parent=1 // loop_body
      %s18 = ssub.s32 %s13, 1
      %s19 = ssub.s32 %s13, 2
      %s20 = sadd.s32 %s13, 1
      %s21 = ssub.s32 %s13, %s20
      %p22 = scmp.eq.s32.totalorder %s21, 0
      %s24 = sadd.s32 %s23, 1
      %s25 = scalar_select %p22, %s23, %s24
      %p28 = pneg %p22
      %p29 = scmp.eq.s32.totalorder %s13, 1
      %p30 = por %p28, %p29
      %p31 = scmp.ne.s32.totalorder %s23, %s26
      %p32 = scmp.eq.s32.totalorder %s13, 0
      %p33 = por %p31, %p32
      %p34 = scmp.ne.s32.totalorder %s23, %s26
      %p35 = scmp.eq.s32.totalorder %s18, 1
      %p36 = por %p34, %p35
      %p37 = scmp.ne.s32.totalorder %s26, %s27
      %p38 = scmp.eq.s32.totalorder %s18, 0
      %p39 = por %p37, %p38
      %p40 = scmp.ne.s32.totalorder %s26, %s27
      %p41 = scmp.eq.s32.totalorder %s19, 1
      %p42 = por %p40, %p41
      %p44 = scmp.ne.s32.totalorder %s27, %s43
      %p45 = scmp.eq.s32.totalorder %s19, 0
      %p46 = por %p44, %p45
      %s48 = sadd.s32 %s47, 1
      %p51 = scmp.eq.s32.totalorder %s13, 1
      %p52 = scmp.ne.s32.totalorder %s47, %s49
      %p53 = scmp.eq.s32.totalorder %s13, 0
      %p54 = por %p52, %p53
      %p55 = scmp.ne.s32.totalorder %s47, %s49
      %p56 = scmp.eq.s32.totalorder %s18, 1
      %p57 = por %p55, %p56
      %p58 = scmp.ne.s32.totalorder %s49, %s50
      %p59 = scmp.eq.s32.totalorder %s18, 0
      %p60 = por %p58, %p59
      %p61 = scmp.ne.s32.totalorder %s49, %s50
      %p62 = scmp.eq.s32.totalorder %s19, 1
      %p63 = por %p61, %p62
      %p65 = scmp.ne.s32.totalorder %s50, %s64
      %p66 = scmp.eq.s32.totalorder %s19, 0
      %p67 = por %p65, %p66
      %s69 = sadd.s32 %s68, 1
      %p72 = scmp.eq.s32.totalorder %s13, 1
      %p73 = scmp.ne.s32.totalorder %s68, %s70
      %p74 = scmp.eq.s32.totalorder %s13, 0
      %p75 = por %p73, %p74
      %p76 = scmp.ne.s32.totalorder %s68, %s70
      %p77 = scmp.eq.s32.totalorder %s18, 1
      %p78 = por %p76, %p77
      %p79 = scmp.ne.s32.totalorder %s70, %s71
      %p80 = scmp.eq.s32.totalorder %s18, 0
      %p81 = por %p79, %p80
      %p82 = scmp.ne.s32.totalorder %s70, %s71
      %p83 = scmp.eq.s32.totalorder %s19, 1
      %p84 = por %p82, %p83
      %p86 = scmp.ne.s32.totalorder %s71, %s85
      %p87 = scmp.eq.s32.totalorder %s19, 0
      %p88 = por %p86, %p87
      %s89 = ssub.s32 %s13, %s20
      %p90 = scmp.eq.s32.totalorder %s89, 0
      %s92 = sadd.s32 %s91, 1
      %s93 = scalar_select %p90, %s91, %s92
      %p96 = pneg %p90
      %p97 = scmp.eq.s32.totalorder %s13, 1
      %p98 = por %p96, %p97
      %p99 = scmp.ne.s32.totalorder %s91, %s94
      %p100 = scmp.eq.s32.totalorder %s13, 0
      %p101 = por %p99, %p100
      %p102 = scmp.ne.s32.totalorder %s91, %s94
      %p103 = scmp.eq.s32.totalorder %s18, 1
      %p104 = por %p102, %p103
      %p105 = scmp.ne.s32.totalorder %s94, %s95
      %p106 = scmp.eq.s32.totalorder %s18, 0
      %p107 = por %p105, %p106
      %p108 = scmp.ne.s32.totalorder %s94, %s95
      %p109 = scmp.eq.s32.totalorder %s19, 1
      %p110 = por %p108, %p109
      %p112 = scmp.ne.s32.totalorder %s95, %s111
      %p113 = scmp.eq.s32.totalorder %s19, 0
      %p114 = por %p112, %p113
      %s115 = ssub.s32 %s13, %s20
      %p116 = scmp.eq.s32.totalorder %s115, 0
      %s118 = sadd.s32 %s117, 1
      %s119 = scalar_select %p116, %s117, %s118
      %p122 = pneg %p116
      %p123 = scmp.eq.s32.totalorder %s13, 1
      %p124 = por %p122, %p123
      %p125 = scmp.ne.s32.totalorder %s117, %s120
      %p126 = scmp.eq.s32.totalorder %s13, 0
      %p127 = por %p125, %p126
      %p128 = scmp.ne.s32.totalorder %s117, %s120
      %p129 = scmp.eq.s32.totalorder %s18, 1
      %p130 = por %p128, %p129
      %p131 = scmp.ne.s32.totalorder %s120, %s121
      %p132 = scmp.eq.s32.totalorder %s18, 0
      %p133 = por %p131, %p132
      %p134 = scmp.ne.s32.totalorder %s120, %s121
      %p135 = scmp.eq.s32.totalorder %s19, 1
      %p136 = por %p134, %p135
      %p138 = scmp.ne.s32.totalorder %s121, %s137
      %p139 = scmp.eq.s32.totalorder %s19, 0
      %p140 = por %p138, %p139
      %p141 = scmp.le.s32.totalorder 1, %s13
      %p142 = scmp.lt.s32.totalorder %s13, 3
      %p143 = pnand %p141, %p142
      %p144 = pneg %p143
      // Predicated region
      $region9: #{bottleneck_forward.7} parent=5 // pred_check
        _
      $region10: #{bottleneck_forward.7} parent=5 // pred_check_branch
        %146 = sbr.rel (%p143) target = $region12
      $region11: #{bottleneck_forward.7} parent=5 // pred_region
        %s147 = ssub.s32 %s13, 1
        // Predicated region
        $region13: #{bottleneck_forward.7} parent=11 // pred_check
          %p148 = pneg %p60
        $region14: #{bottleneck_forward.7} parent=11 // pred_check_branch
          %150 = sbr.rel (%p148) target = $region16
        $region15: #{bottleneck_forward.7} parent=11 // pred_region
          _
        $region16: #{bottleneck_forward.7} parent=11 // pred_fallthru
          _
        // Predicated region
        $region17: #{bottleneck_forward.7} parent=11 // pred_check
          %p151 = pneg %p81
        $region18: #{bottleneck_forward.7} parent=11 // pred_check_branch
          %153 = sbr.rel (%p151) target = $region20
        $region19: #{bottleneck_forward.7} parent=11 // pred_region
          _
        $region20: #{bottleneck_forward.7} parent=11 // pred_fallthru
          _
      $region12: #{bottleneck_forward.7} parent=5 // pred_fallthru
        _
      %p154 = scmp.lt.s32.totalorder %s13, 2
      // Predicated region
      $region21: #{bottleneck_forward.7} parent=5 // pred_check
        %p155 = pneg %p154
      $region22: #{bottleneck_forward.7} parent=5 // pred_check_branch
        %157 = sbr.rel (%p155) target = $region24
      $region23: #{bottleneck_forward.7} parent=5 // pred_region
        // Predicated region
        $region25: #{bottleneck_forward.7} parent=23 // pred_check
          %p158 = pneg %p33
        $region26: #{bottleneck_forward.7} parent=23 // pred_check_branch
          %160 = sbr.rel (%p158) target = $region28
        $region27: #{bottleneck_forward.7} parent=23 // pred_region
          %s161 = smul.u32 8, %s13
          %p162 = scmp.lt.s32.totalorder %s161, 15
          %s163 = scalar_select %p162, %s161, 15
          %s164 = smul.addr %s163, 4
          %s165 = scalar_lea.vmem %s0, %s164
          %s166 = smul.u32 8, %s13
        $region28: #{bottleneck_forward.7} parent=23 // pred_fallthru
          _
        // Predicated region
        $region29: #{bottleneck_forward.7} parent=23 // pred_check
          %p167 = pneg %p101
        $region30: #{bottleneck_forward.7} parent=23 // pred_check_branch
          %169 = sbr.rel (%p167) target = $region32
        $region31: #{bottleneck_forward.7} parent=23 // pred_region
          %s170 = smul.u32 8, %s13
          %p171 = scmp.lt.s32.totalorder %s170, 15
          %s172 = scalar_select %p171, %s170, 15
          %s173 = smul.addr %s172, 4
          %s174 = scalar_lea.vmem %s3, %s173
          %s175 = smul.u32 8, %s13
        $region32: #{bottleneck_forward.7} parent=23 // pred_fallthru
          _
      $region24: #{bottleneck_forward.7} parent=5 // pred_fallthru
        _
      %p176 = scmp.le.s32.totalorder 1, %s13
      %p177 = scmp.lt.s32.totalorder %s13, 3
      %p178 = pnand %p176, %p177
      %p179 = pneg %p178
      // Predicated region
      $region33: #{bottleneck_forward.7} parent=5 // pred_check
        _
      $region34: #{bottleneck_forward.7} parent=5 // pred_check_branch
        %181 = sbr.rel (%p178) target = $region36
      $region35: #{bottleneck_forward.7} parent=5 // pred_region
        %s182 = ssub.s32 %s13, 1
        %s183 = smul.u32 8, %s18
        %p184 = scmp.lt.s32.totalorder %s183, 15
        %s185 = scalar_select %p184, %s183, 15
        %s186 = smul.addr %s185, 4
        %s187 = scalar_lea.vmem %s0, %s186
        %p188 = pneg %p39
        %p189 = pneg %p36
        %p190 = pneg %p60
        %p191 = pneg %p57
        %p192 = pneg %p81
        %p193 = pneg %p78
        %s194 = smul.u32 8, %s18
        %p195 = scmp.lt.s32.totalorder %s194, 15
        %s196 = scalar_select %p195, %s194, 15
        %s197 = smul.addr %s196, 4
        %s198 = scalar_lea.vmem %s3, %s197
        %p199 = pneg %p107
        %p200 = pneg %p104
        %p201 = pneg %p133
        %p202 = pneg %p130
        %s203 = sand.u32 %s120, 1
        %s204 = scalar_lea.sflag [#allocation3], %s203
        %s205 = sand.u32 %s120, 1
        %s206 = smul.addr %s205, 64
        %s207 = scalar_lea.vmem [#allocation2], %s206
        %s208 = smul.u32 8, %s18
        %p209 = scmp.lt.s32.totalorder %s208, 15
        %s210 = scalar_select %p209, %s208, 15
        %s211 = smul.addr %s210, 4
        %s212 = scalar_lea.vmem %s0, %s211
        %s213 = smul.u32 8, %s18
        %s214 = smul.u32 8, %s18
        %p215 = scmp.lt.s32.totalorder %s214, 15
        %s216 = scalar_select %p215, %s214, 15
        %s217 = smul.addr %s216, 4
        %s218 = scalar_lea.vmem %s3, %s217
        %s219 = smul.u32 8, %s18
        %s220 = smul.u32 8, %s18
        %v222 = vld [vmem:[%s212] sm:$0xf]
        %v223 = vld [vmem:[%s212 + $0x4] sm:$0xf]
        %v224 = vld [vmem:[%s212 + $0x8] sm:$0xf]
        %v225 = vld [vmem:[%s212 + $0xc] sm:$0xf]
        %v226 = vld [vmem:[%s212 + $0x10] sm:$0xf]
        %v227 = vld [vmem:[%s212 + $0x14] sm:$0xf]
        %v228 = vld [vmem:[%s212 + $0x18] sm:$0xf]
        %v229 = vld [vmem:[%s212 + $0x1c] sm:$0xf]
        %v230 = vld [vmem:[%s1] sm:$0xf]
        %v231 = vld [vmem:[%s1 + $0x4] sm:$0xf]
        %v232 = vld [vmem:[%s1 + $0x8] sm:$0xf]
        %v233 = vld [vmem:[%s1 + $0xc] sm:$0xf]
        %v234 = vld [vmem:[%s2] sm:$0x1]
        %v236 = vlaneseq
        %v237 = vshrl.u32 %v236, 7
        %v238 = vsub.s32 0, %v237
        %v239 = vrot.slane %v234, %v238
        %v249 = vunpack.c.l.b16 %v222
        %v250 = vunpack.c.l.b16 %v223
        %v251 = vunpack.c.l.b16 %v224
        %v252 = vunpack.c.l.b16 %v225
        %v253 = vunpack.c.l.b16 %v226
        %v254 = vunpack.c.l.b16 %v227
        %v255 = vunpack.c.l.b16 %v228
        %v256 = vunpack.c.l.b16 %v229
        %v257 = vpack.c.b16 %v250, %v249
        %v258 = vpack.c.b16 %v252, %v251
        %v259 = vpack.c.b16 %v254, %v253
        %v260 = vpack.c.b16 %v256, %v255
        %v265 = vunpack.c.l.b16 %v230
        %v266 = vunpack.c.l.b16 %v231
        %v267 = vunpack.c.l.b16 %v232
        %v268 = vunpack.c.l.b16 %v233
        %v269 = vpack.c.b16 %v266, %v265
        %v270 = vpack.c.b16 %v268, %v267
        %vm273 = vcmask 261120
        %v275 = vsel %vm273, %v257, 0
        %v278 = vsel %vm273, %v258, 0
        %v281 = vsel %vm273, %v259, 0
        %v284 = vsel %vm273, %v260, 0
        %286 = vmatprep.subr.bf16.mxu0 0
        %287 = vmatpush1.bf16.msra.mxu0 0
        %288 = vmatprep.subr.bf16.mxu0 0
        %289 = vmatpush1.bf16.msra.mxu0 0
        %290 = vmatprep.subr.bf16.mxu0 0
        %291 = vmatpush1.bf16.msra.mxu0 0
        %292 = vmatprep.subr.bf16.mxu0 0
        %293 = vmatpush1.bf16.msra.mxu0 0
        %294 = vmatprep.subr.bf16.mxu0 0
        %295 = vmatpush1.bf16.msra.mxu0 0
        %296 = vmatprep.subr.bf16.mxu0 0
        %297 = vmatpush1.bf16.msra.mxu0 0
        %298 = vmatprep.subr.bf16.mxu0 0
        %299 = vmatpush1.bf16.msra.mxu0 %v270
        %300 = vmatprep.subr.bf16.mxu0 0
        %301 = vmatpush1.bf16.msra.mxu0 %v269
        %302 = vmatprep.subr.bf16.mxu0 0
        %303 = vmatpush2.bf16.msra.mxu0 0
        %304 = vmatprep.subr.bf16.mxu0 0
        %305 = vmatpush2.bf16.msra.mxu0 0
        %306 = vmatprep.subr.bf16.mxu0 0
        %307 = vmatpush2.bf16.msra.mxu0 0
        %308 = vmatprep.subr.bf16.mxu0 0
        %309 = vmatpush2.bf16.msra.mxu0 0
        %310 = vmatprep.subr.bf16.mxu0 0
        %311 = vmatpush2.bf16.msra.mxu0 0
        %312 = vmatprep.subr.bf16.mxu0 0
        %313 = vmatpush2.bf16.msra.mxu0 0
        %314 = vmatprep.subr.bf16.mxu0 0
        %315 = vmatpush2.bf16.msra.mxu0 0
        %316 = vmatprep.subr.bf16.mxu0 0
        %317 = vmatpush2.bf16.msra.mxu0 0
        %318 = vmatprep.mubr.bf16.mxu0 0
        %319 = vmatmul.mubr.bf16.gmra.mxu0 %v275
        %v320 = vpop.f32.mrf.mxu0
        %v321 = vadd.f32 %v239, %v320
        %v322 = vpop.f32.mrf.mxu0
        %v323 = vpop.f32.mrf.mxu0
        %v324 = vadd.f32 %v239, %v323
        %v325 = vpop.f32.mrf.mxu0
        %326 = vmatprep.mubr.bf16.mxu0 0
        %327 = vmatmul.mubr.bf16.gmra.mxu0 %v278
        %v328 = vpop.f32.mrf.mxu0
        %v329 = vadd.f32 %v239, %v328
        %v330 = vpop.f32.mrf.mxu0
        %v331 = vpop.f32.mrf.mxu0
        %v332 = vadd.f32 %v239, %v331
        %v333 = vpop.f32.mrf.mxu0
        %334 = vmatprep.mubr.bf16.mxu0 0
        %335 = vmatmul.mubr.bf16.gmra.mxu0 %v281
        %v336 = vpop.f32.mrf.mxu0
        %v337 = vadd.f32 %v239, %v336
        %v338 = vpop.f32.mrf.mxu0
        %v339 = vpop.f32.mrf.mxu0
        %v340 = vadd.f32 %v239, %v339
        %v341 = vpop.f32.mrf.mxu0
        %342 = vmatprep.mubr.bf16.mxu0 0
        %343 = vmatmul.mubr.bf16.gmra.mxu0 %v284
        %v344 = vpop.f32.mrf.mxu0
        %v345 = vadd.f32 %v239, %v344
        %v346 = vpop.f32.mrf.mxu0
        %v347 = vpop.f32.mrf.mxu0
        %v348 = vadd.f32 %v239, %v347
        %v349 = vpop.f32.mrf.mxu0
        %350 = vdwg.mxu0
        %v351 = vld [vmem:[%s218] sm:$0xf]
        %v352 = vld [vmem:[%s218 + $0x4] sm:$0xf]
        %v353 = vld [vmem:[%s218 + $0x8] sm:$0xf]
        %v354 = vld [vmem:[%s218 + $0xc] sm:$0xf]
        %v355 = vld [vmem:[%s218 + $0x10] sm:$0xf]
        %v356 = vld [vmem:[%s218 + $0x14] sm:$0xf]
        %v357 = vld [vmem:[%s218 + $0x18] sm:$0xf]
        %v358 = vld [vmem:[%s218 + $0x1c] sm:$0xf]
        %v359 = vunpack.c.l.bf16 %v351
        %v360 = vunpack.c.l.bf16 %v352
        %v361 = vunpack.c.l.bf16 %v353
        %v362 = vunpack.c.l.bf16 %v354
        %v363 = vunpack.c.l.bf16 %v355
        %v364 = vunpack.c.l.bf16 %v356
        %v365 = vunpack.c.l.bf16 %v357
        %v366 = vunpack.c.l.bf16 %v358
        %v367 = vadd.f32 %v321, %v359
        %v368 = vadd.f32 %v324, %v360
        %v369 = vadd.f32 %v329, %v361
        %v370 = vadd.f32 %v332, %v362
        %v371 = vadd.f32 %v337, %v363
        %v372 = vadd.f32 %v340, %v364
        %v373 = vadd.f32 %v345, %v365
        %v374 = vadd.f32 %v348, %v366
        %375 = vst [vmem:[%s207] sm:$0xff] %v367
        %376 = vst [vmem:[%s207 + $0x8] sm:$0xff] %v368
        %377 = vst [vmem:[%s207 + $0x10] sm:$0xff] %v369
        %378 = vst [vmem:[%s207 + $0x18] sm:$0xff] %v370
        %379 = vst [vmem:[%s207 + $0x20] sm:$0xff] %v371
        %380 = vst [vmem:[%s207 + $0x28] sm:$0xff] %v372
        %381 = vst [vmem:[%s207 + $0x30] sm:$0xff] %v373
        %382 = vst [vmem:[%s207 + $0x38] sm:$0xff] %v374
        %s383 = sand.u32 %s120, 1
        %s384 = scalar_lea.sflag [#allocation3], %s383
        %s385 = sand.u32 %s120, 1
        %s386 = smul.addr %s385, 64
        %s387 = scalar_lea.vmem [#allocation2], %s386
        // Predicated region
        $region37: #{bottleneck_forward.7} parent=35 // pred_check
          %p388 = pneg %p130
        $region38: #{bottleneck_forward.7} parent=35 // pred_check_branch
          %390 = sbr.rel (%p388) target = $region40
        $region39: #{bottleneck_forward.7} parent=35 // pred_region
          %s391 = smul.u32 8, %s18
          %s393 = ssub.s32 1024, 1024
          %394 = vsyncadd %s384, %s393
          %s395 = smul.addr %s391, 128
          %s396 = scalar_lea.hbm %s4, %s395
          %s397 = sshll.u32 %s387, 4
          %s398 = int_to_ptr.vmem [resolvable:$true] %s397
          %403 = dma.vmem_to_hbm [thread:$0]  %s398, 1024, %s396, %s384, 128, 128, 8
        $region40: #{bottleneck_forward.7} parent=35 // pred_fallthru
          _
      $region36: #{bottleneck_forward.7} parent=5 // pred_fallthru
        _
      %p404 = scmp.le.s32.totalorder 2, %s13
      // Predicated region
      $region41: #{bottleneck_forward.7} parent=5 // pred_check
        %p405 = pneg %p404
      $region42: #{bottleneck_forward.7} parent=5 // pred_check_branch
        %407 = sbr.rel (%p405) target = $region44
      $region43: #{bottleneck_forward.7} parent=5 // pred_region
        %s408 = ssub.s32 %s13, 2
        // Predicated region
        $region45: #{bottleneck_forward.7} parent=43 // pred_check
          %p409 = pneg %p136
        $region46: #{bottleneck_forward.7} parent=43 // pred_check_branch
          %411 = sbr.rel (%p409) target = $region48
        $region47: #{bottleneck_forward.7} parent=43 // pred_region
          %s412 = sand.u32 %s121, 1
          %s413 = scalar_lea.sflag [#allocation3], %s412
          %s414 = sand.u32 %s121, 1
          %s415 = smul.addr %s414, 64
          %s416 = scalar_lea.vmem [#allocation2], %s415
          %417 = dma.done %s413, 1024
        $region48: #{bottleneck_forward.7} parent=43 // pred_fallthru
          _
      $region44: #{bottleneck_forward.7} parent=5 // pred_fallthru
        _
    $region6: #{bottleneck_forward.7} parent=1 // loop_footer
      %s17 = sadd.s32 1, %s13
    $region7: #{bottleneck_forward.7} parent=1 // loop_footer_branch
      %12 = sbr.rel target = $region3
    $region8: #{bottleneck_forward.7} parent=1 // loop_exit
      _
    %418 = vsyncpa [#allocation3], 1
    %s419 = scalar_lea.sflag [#allocation3], 1
    %420 = vsyncpa %s419, 1

</llo_original>
